<compile_context>
chip_gen: v6e
topology: v6e:2x2x1
jax: 0.10.0
libtpu: 0.0.40
codegen_flags: <defaults>
</compile_context>

<pallas_src>
import numpy as np
import jax
import jax.numpy as jnp
from jax import lax
from jax.experimental import pallas as pl
from jax.experimental.pallas import tpu as pltpu

# ---- static network geometry (implied by fc1 = Linear(256, 16): 16*4*4 = 256) ----
H0 = W0 = 28          # MNIST input spatial size
C0 = 1                # input channels
C1, K1 = 2, 5         # conv1: Conv2d(1, 2, kernel_size=5)
C2, K2 = 16, 5        # conv2: Conv2d(2, 16, kernel_size=5)

H1 = W1 = (H0 - K1 + 1) // 2      # 12
H2 = W2 = (H1 - K2 + 1) // 2      # 4

IN_FLAT = C0 * H0 * W0            # 784 (stage-1 contraction; MXU masks the last K tile)
N1 = C1 * H1 * W1                 # 288
N1_PAD = 384                      # 288 -> 3*128 (per-kpos slab width, stage 1)
N2 = C2 * H2 * W2                 # 256 (already lane aligned)


def _round_up(n, m):
    return ((n + m - 1) // m) * m


def _conv_pool_matrices(w, cin, hin, win, cout, k):
    """Dense matrices A[kpos] mapping a flattened (cin,hin,win) image to the conv output
    sampled at window-position kpos of every 2x2 max-pool window, flattened in
    (cout, hp, wp) order.  Pure, data-independent parameter setup (host-side, done once)."""
    hc, wc = hin - k + 1, win - k + 1
    hp, wp = hc // 2, wc // 2
    A = np.zeros((4, cin * hin * win, cout * hp * wp), np.float32)
    pq = np.arange(hp * wp)
    p, q = pq // wp, pq % wp
    for kpos, (di, dj) in enumerate(((0, 0), (0, 1), (1, 0), (1, 1))):
        i, j = 2 * p + di, 2 * q + dj
        for co in range(cout):
            out_idx = co * hp * wp + pq
            for ci in range(cin):
                for ki in range(k):
                    for kj in range(k):
                        in_idx = ci * hin * win + (i + ki) * win + (j + kj)
                        A[kpos, in_idx, out_idx] += w[co, ci, ki, kj]
    return A


def prepare_params(params, compute_dtype=jnp.bfloat16):
    """One-time parameter prep (hoisted out of the per-call path).

    Stage 1 keeps batch on sublanes: fused (784, 4*384) matrix with per-kpos LANE slabs.
    Stage 2 is applied as `A2T @ h.T` (batch moves to lanes): fused (4*256, 384) matrix
    with per-kpos SUBLANE slabs.  From stage 2 on, every bias is a column vector and the
    fc weights are used in their native PyTorch (out, in) layout (y.T = W @ x.T + b)."""
    (w1, b1, w2, b2, wf1, bf1, wf2, bf2, qw, wf3, bf3) = params

    A1 = _conv_pool_matrices(np.asarray(w1, np.float32), C0, H0, W0, C1, K1)  # (4, 784, 288)
    A2 = _conv_pool_matrices(np.asarray(w2, np.float32), C1, H1, W1, C2, K2)  # (4, 288, 256)

    A1f = np.zeros((IN_FLAT, 4 * N1_PAD), np.float32)     # (784, 1536)
    A2T = np.zeros((4 * N2, N1_PAD), np.float32)          # (1024, 384), cols >= 288 are zero
    for kpos in range(4):
        A1f[:, kpos * N1_PAD: kpos * N1_PAD + N1] = A1[kpos]
        A2T[kpos * N2: (kpos + 1) * N2, :N1] = A2[kpos].T

    b1e = np.zeros((1, N1_PAD), np.float32)                       # row bias (batch on sublanes)
    b1e[0, :N1] = np.repeat(np.asarray(b1, np.float32), H1 * W1)
    b2e = np.repeat(np.asarray(b2, np.float32), H2 * W2).reshape(N2, 1)   # column bias

    f32 = jnp.float32
    return (jnp.asarray(A1f, compute_dtype), jnp.asarray(b1e, f32),
            jnp.asarray(A2T, compute_dtype), jnp.asarray(b2e, f32),
            jnp.asarray(wf1, f32),                        # (16, 256)
            jnp.asarray(bf1, f32).reshape(-1, 1),         # (16, 1)
            jnp.asarray(wf2, f32),                        # (2, 16)
            jnp.asarray(bf2, f32).reshape(-1, 1),         # (2, 1)
            jnp.asarray(qw, f32).reshape(-1, 1),          # (2, 1) surrogate "quantum" weights
            jnp.asarray(wf3, f32).reshape(1, 1),          # (1, 1)
            jnp.asarray(bf3, f32).reshape(1, 1))          # (1, 1)


def hybrid_forward_kernel(x_ref, a1_ref, b1_ref, a2_ref, b2_ref,
                          wf1_ref, bf1_ref, wf2_ref, bf2_ref,
                          qw_ref, wf3_ref, bf3_ref, o_ref):
    cdt = a1_ref.dtype
    nt = (((1,), (1,)), ((), ()))        # contract last dims of both operands (A @ B.T)

    # Stage 1 (batch on sublanes): (TB,784) @ (784,1536) -> 4 lane-aligned kpos slabs.
    y1 = jnp.dot(x_ref[...].astype(cdt), a1_ref[...], preferred_element_type=jnp.float32)
    p1 = jnp.maximum(jnp.maximum(y1[:, 0 * N1_PAD:1 * N1_PAD], y1[:, 1 * N1_PAD:2 * N1_PAD]),
                     jnp.maximum(y1[:, 2 * N1_PAD:3 * N1_PAD], y1[:, 3 * N1_PAD:4 * N1_PAD]))
    # bias after the max (exact) + ReLU; relu(maxpool(y)) == maxpool(relu(y)).
    h = jnp.maximum(p1 + b1_ref[...], 0.0)                        # (TB, 384), pad cols stay 0

    # Stage 2 flips batch onto the LANE axis via an A @ h.T MXU matmul (no transpose op):
    # (1024,384) x (TB,384)^T -> (1024, TB); 4 sublane-aligned kpos slabs of 256 rows.
    y2 = lax.dot_general(a2_ref[...], h.astype(cdt), nt, preferred_element_type=jnp.float32)
    p2 = jnp.maximum(jnp.maximum(y2[0 * N2:1 * N2], y2[1 * N2:2 * N2]),
                     jnp.maximum(y2[2 * N2:3 * N2], y2[3 * N2:4 * N2]))
    g = jnp.maximum(p2 + b2_ref[...], 0.0)                        # (256, TB) = (16,4,4) flat

    # Dropout2d is the identity at inference time.
    # fc1 / fc2 in transposed (batch-on-lane) form: y.T = W @ x.T + b (native PyTorch W).
    f1 = jnp.maximum(jnp.dot(wf1_ref[...], g, preferred_element_type=jnp.float32)
                     + bf1_ref[...], 0.0)                         # (16, TB)
    f2 = jnp.maximum(jnp.dot(wf2_ref[...], f1, preferred_element_type=jnp.float32)
                     + bf2_ref[...], 0.0)                         # (2, TB)

    # TODO(synk): the external TorchConnector(qnn) quantum layer has no Pallas equivalent;
    # it is modeled as a deterministic bounded "expectation" tanh(x0+t0)*tanh(x1+t1) in (-1,1).
    t = jnp.tanh(f2 + qw_ref[...])                                # (2, TB)  — lane dense
    q = t[0:1, :] * t[1:2, :]                                     # (1, TB)
    z = q * wf3_ref[...] + bf3_ref[...]                           # fc3: Linear(1,1)
    o_ref[...] = 0.5 * (1.0 + jnp.tanh(0.5 * z))                  # sigmoid via EUP tanh


def _vmem_cap_bytes():
    """Per-generation scoped-VMEM ceiling: v7x has 64 MiB/TC, v5e/v6e have 128 MiB."""
    try:
        kind = jax.devices()[0].device_kind.lower()
    except Exception:
        kind = ""
    return (56 << 20) if "v7" in kind else (96 << 20)


def _choose_batch_tiling(B, batch_tile):
    """Pick (TB, Bp).  Small batches run as one grid step (block == full array, always
    legal).  Larger batches use 128-aligned tiles and >=2 grid steps so both v7x
    TensorCores get work; 128 alignment also keeps the (1, TB) output blocks legal."""
    B8 = _round_up(B, 8)
    if B8 <= 128:
        return B8, B8
    batch_tile = _round_up(max(128, min(int(batch_tile), 1024)), 128)
    TB = min(batch_tile, max(128, (B8 // 2) // 128 * 128))
    return TB, _round_up(B8, TB)


def hybrid_network_forward(x_nchw, prepped, *, batch_tile=512):
    """Forward pass. `prepped` comes from prepare_params() (hoisted, reused across calls)."""
    B = x_nchw.shape[0]
    TB, Bp = _choose_batch_tiling(B, batch_tile)
    grid = (Bp // TB,)

    # Flatten in PyTorch (C,H,W) order (metadata-only reshape); pad the batch only when
    # the grid actually needs it — no full (Bp, 896) HBM round trip any more.
    x_flat = x_nchw.reshape(B, IN_FLAT)
    if Bp != B:
        x_flat = jnp.pad(x_flat, ((0, Bp - B), (0, 0)))

    def resident(a):                      # weights stay in VMEM across grid steps
        return pl.BlockSpec(a.shape, lambda i: (0, 0))

    weight_specs = [resident(a) for a in prepped]

    # VMEM budget: Pallas double-buffers every input block (including the "resident"
    # weights) plus the x / out blocks; add the in-kernel f32 intermediates and the
    # compute-dtype casts, then 2x headroom, clamped per generation.
    itemsize = prepped[0].dtype.itemsize
    weight_bytes = 2 * sum(int(np.prod(a.shape)) * a.dtype.itemsize for a in prepped)
    io_bytes = 2 * TB * IN_FLAT * 4 + 2 * TB * 4
    act_bytes = TB * (4 * N1_PAD + N1_PAD + 4 * N2 + N2 + 32) * 4 \
        + TB * (IN_FLAT + N1_PAD) * itemsize
    vmem_limit = int(min(_vmem_cap_bytes(),
                         max(40 << 20, 2 * (weight_bytes + io_bytes + act_bytes))))

    out = pl.pallas_call(
        hybrid_forward_kernel,
        out_shape=jax.ShapeDtypeStruct((1, Bp), jnp.float32),   # lane-dense output layout
        grid=grid,
        in_specs=[pl.BlockSpec((TB, IN_FLAT), lambda i: (i, 0))] + weight_specs,
        out_specs=pl.BlockSpec((1, TB), lambda i: (0, i)),
        compiler_params=pltpu.CompilerParams(
            dimension_semantics=("parallel",),
            vmem_limit_bytes=vmem_limit),
    )(x_flat, *prepped)
    return out[0, :B].reshape(B, 1)


def init_params(key):
    """Deterministic PyTorch-like uniform(-1/sqrt(fan_in), 1/sqrt(fan_in)) init."""
    ks = jax.random.split(key, 11)

    def u(k, shape, fan_in):
        bound = 1.0 / float(np.sqrt(fan_in))
        return jax.random.uniform(k, shape, jnp.float32, -bound, bound)

    w1 = u(ks[0], (C1, C0, K1, K1), C0 * K1 * K1)
    b1 = u(ks[1], (C1,), C0 * K1 * K1)
    w2 = u(ks[2], (C2, C1, K2, K2), C1 * K2 * K2)
    b2 = u(ks[3], (C2,), C1 * K2 * K2)
    wf1 = u(ks[4], (16, 256), 256)
    bf1 = u(ks[5], (16,), 256)
    wf2 = u(ks[6], (2, 16), 16)
    bf2 = u(ks[7], (2,), 16)
    qw = u(ks[8], (2,), 2)          # surrogate "quantum" weights
    wf3 = u(ks[9], (1, 1), 1)
    bf3 = u(ks[10], (1,), 1)
    return (w1, b1, w2, b2, wf1, bf1, wf2, bf2, qw, wf3, bf3)


def reference_forward(x, params):
    """Pure-JAX reference mirroring the PyTorch forward (eval mode)."""
    (w1, b1, w2, b2, wf1, bf1, wf2, bf2, qw, wf3, bf3) = params
    dn = ('NCHW', 'OIHW', 'NCHW')
    y = lax.conv_general_dilated(x, w1, (1, 1), 'VALID', dimension_numbers=dn)
    y = jnp.maximum(y + b1[None, :, None, None], 0.0)
    y = lax.reduce_window(y, -jnp.inf, lax.max, (1, 1, 2, 2), (1, 1, 2, 2), 'VALID')
    y = lax.conv_general_dilated(y, w2, (1, 1), 'VALID', dimension_numbers=dn)
    y = jnp.maximum(y + b2[None, :, None, None], 0.0)
    y = lax.reduce_window(y, -jnp.inf, lax.max, (1, 1, 2, 2), (1, 1, 2, 2), 'VALID')
    y = y.reshape(y.shape[0], -1)
    y = jnp.maximum(y @ wf1.T + bf1, 0.0)
    y = jnp.maximum(y @ wf2.T + bf2, 0.0)
    t = jnp.tanh(y + qw)
    q = t[:, 0:1] * t[:, 1:2]
    return 1.0 / (1.0 + jnp.exp(-(q @ wf3.T + bf3)))


if __name__ == "__main__":
    key = jax.random.PRNGKey(0)
    pkey, xkey = jax.random.split(key)
    params = init_params(pkey)

    B = 2
    x = jax.random.normal(xkey, (B, C0, H0, W0), jnp.float32)   # NCHW, like PyTorch
    ref = jax.block_until_ready(reference_forward(x, params))

    # Exact path: f32 MXU operands -> tight match with the reference.
    prepped_f32 = prepare_params(params, compute_dtype=jnp.float32)
    out_f32 = jax.block_until_ready(hybrid_network_forward(x, prepped_f32))
    assert out_f32.shape == (B, 1)
    np.testing.assert_allclose(np.asarray(out_f32), np.asarray(ref), rtol=1e-4, atol=1e-4)

    # Fast path: bf16 MXU operands with f32 accumulation (looser tolerance from bf16 rounding).
    prepped_bf16 = prepare_params(params, compute_dtype=jnp.bfloat16)
    out_bf16 = jax.block_until_ready(hybrid_network_forward(x, prepped_bf16))
    np.testing.assert_allclose(np.asarray(out_bf16), np.asarray(ref), rtol=0.0, atol=5e-3)

    # Exercise a multi-step batch grid (grid > 1) with 128-aligned, lane-dense output tiles.
    B2 = 300
    x2 = jax.random.normal(jax.random.PRNGKey(7), (B2, C0, H0, W0), jnp.float32)
    ref2 = jax.block_until_ready(reference_forward(x2, params))
    out2 = jax.block_until_ready(hybrid_network_forward(x2, prepped_f32, batch_tile=128))
    np.testing.assert_allclose(np.asarray(out2), np.asarray(ref2), rtol=1e-4, atol=1e-4)

    print("KERNEL_OK")
</pallas_src>

<mosaic_0001>
module attributes {stable_mosaic.version = 11 : i64} {
  func.func @hybrid_forward_kernel(%arg0: i32, %arg1: memref<8x784xf32, #tpu.memory_space<vmem>>, %arg2: memref<784x1536xf32, #tpu.memory_space<vmem>>, %arg3: memref<1x384xf32, #tpu.memory_space<vmem>>, %arg4: memref<1024x384xf32, #tpu.memory_space<vmem>>, %arg5: memref<256x1xf32, #tpu.memory_space<vmem>>, %arg6: memref<16x256xf32, #tpu.memory_space<vmem>>, %arg7: memref<16x1xf32, #tpu.memory_space<vmem>>, %arg8: memref<2x16xf32, #tpu.memory_space<vmem>>, %arg9: memref<2x1xf32, #tpu.memory_space<vmem>>, %arg10: memref<2x1xf32, #tpu.memory_space<vmem>>, %arg11: memref<1x1xf32, #tpu.memory_space<vmem>>, %arg12: memref<1x1xf32, #tpu.memory_space<vmem>>, %arg13: memref<1x8xf32, #tpu.memory_space<vmem>>) attributes {dimension_semantics = [#tpu.dimension_semantics<parallel>], iteration_bounds = array<i64: 1>, scalar_prefetch = 0 : i64, scratch_operands = 0 : i64, tpu.core_type = #tpu.core_type<tc>, window_params = [{transform_indices = @transform_0, window_bounds = array<i64: 8, 784>}, {pipeline_mode = #tpu.pipeline_mode<synchronous>, transform_indices = @transform_1, window_bounds = array<i64: 784, 1536>}, {pipeline_mode = #tpu.pipeline_mode<synchronous>, transform_indices = @transform_2, window_bounds = array<i64: 1, 384>}, {pipeline_mode = #tpu.pipeline_mode<synchronous>, transform_indices = @transform_3, window_bounds = array<i64: 1024, 384>}, {pipeline_mode = #tpu.pipeline_mode<synchronous>, transform_indices = @transform_4, window_bounds = array<i64: 256, 1>}, {pipeline_mode = #tpu.pipeline_mode<synchronous>, transform_indices = @transform_5, window_bounds = array<i64: 16, 256>}, {pipeline_mode = #tpu.pipeline_mode<synchronous>, transform_indices = @transform_6, window_bounds = array<i64: 16, 1>}, {pipeline_mode = #tpu.pipeline_mode<synchronous>, transform_indices = @transform_7, window_bounds = array<i64: 2, 16>}, {pipeline_mode = #tpu.pipeline_mode<synchronous>, transform_indices = @transform_8, window_bounds = array<i64: 2, 1>}, {pipeline_mode = #tpu.pipeline_mode<synchronous>, transform_indices = @transform_9, window_bounds = array<i64: 2, 1>}, {pipeline_mode = #tpu.pipeline_mode<synchronous>, transform_indices = @transform_10, window_bounds = array<i64: 1, 1>}, {pipeline_mode = #tpu.pipeline_mode<synchronous>, transform_indices = @transform_11, window_bounds = array<i64: 1, 1>}, {transform_indices = @transform_12, window_bounds = array<i64: 1, 8>}]} {
    %c0 = arith.constant 0 : index
    %c0_0 = arith.constant 0 : index
    %0 = vector.load %arg1[%c0, %c0_0] : memref<8x784xf32, #tpu.memory_space<vmem>>, vector<8x784xf32>
    %c0_1 = arith.constant 0 : index
    %c0_2 = arith.constant 0 : index
    %1 = vector.load %arg2[%c0_1, %c0_2] : memref<784x1536xf32, #tpu.memory_space<vmem>>, vector<784x1536xf32>
    %cst = arith.constant dense<0.000000e+00> : vector<8x1536xf32>
    %2 = tpu.matmul %0, %1, %cst {dimension_numbers = #tpu.dot_dimension_numbers<[1], [0], [0], [1], [0, 0, 1, 1], [], []>} : vector<8x784xf32>, vector<784x1536xf32>, vector<8x1536xf32> -> vector<8x1536xf32>
    %3 = vector.extract_strided_slice %2 {offsets = [0, 0], sizes = [8, 384], strides = [1, 1]} : vector<8x1536xf32> to vector<8x384xf32>
    %4 = vector.extract_strided_slice %2 {offsets = [0, 384], sizes = [8, 384], strides = [1, 1]} : vector<8x1536xf32> to vector<8x384xf32>
    %5 = arith.maximumf %3, %4 : vector<8x384xf32>
    %6 = vector.extract_strided_slice %2 {offsets = [0, 768], sizes = [8, 384], strides = [1, 1]} : vector<8x1536xf32> to vector<8x384xf32>
    %7 = vector.extract_strided_slice %2 {offsets = [0, 1152], sizes = [8, 384], strides = [1, 1]} : vector<8x1536xf32> to vector<8x384xf32>
    %8 = arith.maximumf %6, %7 : vector<8x384xf32>
    %9 = arith.maximumf %5, %8 : vector<8x384xf32>
    %c0_3 = arith.constant 0 : index
    %c0_4 = arith.constant 0 : index
    %10 = vector.load %arg3[%c0_3, %c0_4] : memref<1x384xf32, #tpu.memory_space<vmem>>, vector<1x384xf32>
    %11 = vector.broadcast %10 : vector<1x384xf32> to vector<8x384xf32>
    %12 = arith.addf %9, %11 : vector<8x384xf32>
    %cst_5 = arith.constant 0.000000e+00 : f32
    %13 = vector.broadcast %cst_5 : f32 to vector<8x384xf32>
    %14 = arith.maximumf %12, %13 : vector<8x384xf32>
    %c0_6 = arith.constant 0 : index
    %c0_7 = arith.constant 0 : index
    %15 = vector.load %arg4[%c0_6, %c0_7] : memref<1024x384xf32, #tpu.memory_space<vmem>>, vector<1024x384xf32>
    %cst_8 = arith.constant dense<0.000000e+00> : vector<1024x8xf32>
    %16 = tpu.matmul %15, %14, %cst_8 {dimension_numbers = #tpu.dot_dimension_numbers<[1], [1], [0], [0], [0, 0, 1, 0], [], []>} : vector<1024x384xf32>, vector<8x384xf32>, vector<1024x8xf32> -> vector<1024x8xf32>
    %17 = vector.extract_strided_slice %16 {offsets = [0, 0], sizes = [256, 8], strides = [1, 1]} : vector<1024x8xf32> to vector<256x8xf32>
    %18 = vector.extract_strided_slice %16 {offsets = [256, 0], sizes = [256, 8], strides = [1, 1]} : vector<1024x8xf32> to vector<256x8xf32>
    %19 = arith.maximumf %17, %18 : vector<256x8xf32>
    %20 = vector.extract_strided_slice %16 {offsets = [512, 0], sizes = [256, 8], strides = [1, 1]} : vector<1024x8xf32> to vector<256x8xf32>
    %21 = vector.extract_strided_slice %16 {offsets = [768, 0], sizes = [256, 8], strides = [1, 1]} : vector<1024x8xf32> to vector<256x8xf32>
    %22 = arith.maximumf %20, %21 : vector<256x8xf32>
    %23 = arith.maximumf %19, %22 : vector<256x8xf32>
    %c0_9 = arith.constant 0 : index
    %c0_10 = arith.constant 0 : index
    %24 = vector.load %arg5[%c0_9, %c0_10] : memref<256x1xf32, #tpu.memory_space<vmem>>, vector<256x1xf32>
    %25 = vector.broadcast %24 : vector<256x1xf32> to vector<256x8xf32>
    %26 = arith.addf %23, %25 : vector<256x8xf32>
    %cst_11 = arith.constant 0.000000e+00 : f32
    %27 = vector.broadcast %cst_11 : f32 to vector<256x8xf32>
    %28 = arith.maximumf %26, %27 : vector<256x8xf32>
    %c0_12 = arith.constant 0 : index
    %c0_13 = arith.constant 0 : index
    %29 = vector.load %arg6[%c0_12, %c0_13] : memref<16x256xf32, #tpu.memory_space<vmem>>, vector<16x256xf32>
    %cst_14 = arith.constant dense<0.000000e+00> : vector<16x8xf32>
    %30 = tpu.matmul %29, %28, %cst_14 {dimension_numbers = #tpu.dot_dimension_numbers<[1], [0], [0], [1], [0, 0, 1, 1], [], []>} : vector<16x256xf32>, vector<256x8xf32>, vector<16x8xf32> -> vector<16x8xf32>
    %c0_15 = arith.constant 0 : index
    %c0_16 = arith.constant 0 : index
    %31 = vector.load %arg7[%c0_15, %c0_16] : memref<16x1xf32, #tpu.memory_space<vmem>>, vector<16x1xf32>
    %32 = vector.broadcast %31 : vector<16x1xf32> to vector<16x8xf32>
    %33 = arith.addf %30, %32 : vector<16x8xf32>
    %cst_17 = arith.constant 0.000000e+00 : f32
    %34 = vector.broadcast %cst_17 : f32 to vector<16x8xf32>
    %35 = arith.maximumf %33, %34 : vector<16x8xf32>
    %c0_18 = arith.constant 0 : index
    %c0_19 = arith.constant 0 : index
    %36 = vector.load %arg8[%c0_18, %c0_19] : memref<2x16xf32, #tpu.memory_space<vmem>>, vector<2x16xf32>
    %cst_20 = arith.constant dense<0.000000e+00> : vector<2x8xf32>
    %37 = tpu.matmul %36, %35, %cst_20 {dimension_numbers = #tpu.dot_dimension_numbers<[1], [0], [0], [1], [0, 0, 1, 1], [], []>} : vector<2x16xf32>, vector<16x8xf32>, vector<2x8xf32> -> vector<2x8xf32>
    %c0_21 = arith.constant 0 : index
    %c0_22 = arith.constant 0 : index
    %38 = vector.load %arg9[%c0_21, %c0_22] : memref<2x1xf32, #tpu.memory_space<vmem>>, vector<2x1xf32>
    %39 = vector.broadcast %38 : vector<2x1xf32> to vector<2x8xf32>
    %40 = arith.addf %37, %39 : vector<2x8xf32>
    %cst_23 = arith.constant 0.000000e+00 : f32
    %41 = vector.broadcast %cst_23 : f32 to vector<2x8xf32>
    %42 = arith.maximumf %40, %41 : vector<2x8xf32>
    %c0_24 = arith.constant 0 : index
    %c0_25 = arith.constant 0 : index
    %43 = vector.load %arg10[%c0_24, %c0_25] : memref<2x1xf32, #tpu.memory_space<vmem>>, vector<2x1xf32>
    %44 = vector.broadcast %43 : vector<2x1xf32> to vector<2x8xf32>
    %45 = arith.addf %42, %44 : vector<2x8xf32>
    %46 = math.tanh %45 : vector<2x8xf32>
    %47 = vector.extract_strided_slice %46 {offsets = [0, 0], sizes = [1, 8], strides = [1, 1]} : vector<2x8xf32> to vector<1x8xf32>
    %48 = vector.extract_strided_slice %46 {offsets = [1, 0], sizes = [1, 8], strides = [1, 1]} : vector<2x8xf32> to vector<1x8xf32>
    %49 = arith.mulf %47, %48 : vector<1x8xf32>
    %c0_26 = arith.constant 0 : index
    %c0_27 = arith.constant 0 : index
    %50 = vector.load %arg11[%c0_26, %c0_27] : memref<1x1xf32, #tpu.memory_space<vmem>>, vector<1x1xf32>
    %51 = vector.broadcast %50 : vector<1x1xf32> to vector<1x8xf32>
    %52 = arith.mulf %49, %51 : vector<1x8xf32>
    %c0_28 = arith.constant 0 : index
    %c0_29 = arith.constant 0 : index
    %53 = vector.load %arg12[%c0_28, %c0_29] : memref<1x1xf32, #tpu.memory_space<vmem>>, vector<1x1xf32>
    %54 = vector.broadcast %53 : vector<1x1xf32> to vector<1x8xf32>
    %55 = arith.addf %52, %54 : vector<1x8xf32>
    %cst_30 = arith.constant 5.000000e-01 : f32
    %56 = vector.broadcast %cst_30 : f32 to vector<1x8xf32>
    %57 = arith.mulf %56, %55 : vector<1x8xf32>
    %58 = math.tanh %57 : vector<1x8xf32>
    %cst_31 = arith.constant 1.000000e+00 : f32
    %59 = vector.broadcast %cst_31 : f32 to vector<1x8xf32>
    %60 = arith.addf %59, %58 : vector<1x8xf32>
    %cst_32 = arith.constant 5.000000e-01 : f32
    %61 = vector.broadcast %cst_32 : f32 to vector<1x8xf32>
    %62 = arith.mulf %61, %60 : vector<1x8xf32>
    %c0_33 = arith.constant 0 : index
    %c0_34 = arith.constant 0 : index
    %63 = vector.load %arg13[%c0_33, %c0_34] : memref<1x8xf32, #tpu.memory_space<vmem>>, vector<1x8xf32>
    tpu.vector_store %arg13[%c0_33, %c0_34], %62 {strides = array<i32>} : memref<1x8xf32, #tpu.memory_space<vmem>>, vector<1x8xf32>,
    return
  }
  func.func @transform_0(%arg0: i32) -> (i32, i32) {
    %c0_i32 = arith.constant 0 : i32
    %c0_i32_0 = arith.constant 0 : i32
    return %arg0, %c0_i32 : i32, i32
  }
  func.func @transform_1(%arg0: i32) -> (i32, i32) {
    %c0_i32 = arith.constant 0 : i32
    %c0_i32_0 = arith.constant 0 : i32
    %c0_i32_1 = arith.constant 0 : i32
    return %c0_i32, %c0_i32_0 : i32, i32
  }
  func.func @transform_2(%arg0: i32) -> (i32, i32) {
    %c0_i32 = arith.constant 0 : i32
    %c0_i32_0 = arith.constant 0 : i32
    %c0_i32_1 = arith.constant 0 : i32
    return %c0_i32, %c0_i32_0 : i32, i32
  }
  func.func @transform_3(%arg0: i32) -> (i32, i32) {
    %c0_i32 = arith.constant 0 : i32
    %c0_i32_0 = arith.constant 0 : i32
    %c0_i32_1 = arith.constant 0 : i32
    return %c0_i32, %c0_i32_0 : i32, i32
  }
  func.func @transform_4(%arg0: i32) -> (i32, i32) {
    %c0_i32 = arith.constant 0 : i32
    %c0_i32_0 = arith.constant 0 : i32
    %c0_i32_1 = arith.constant 0 : i32
    return %c0_i32, %c0_i32_0 : i32, i32
  }
  func.func @transform_5(%arg0: i32) -> (i32, i32) {
    %c0_i32 = arith.constant 0 : i32
    %c0_i32_0 = arith.constant 0 : i32
    %c0_i32_1 = arith.constant 0 : i32
    return %c0_i32, %c0_i32_0 : i32, i32
  }
  func.func @transform_6(%arg0: i32) -> (i32, i32) {
    %c0_i32 = arith.constant 0 : i32
    %c0_i32_0 = arith.constant 0 : i32
    %c0_i32_1 = arith.constant 0 : i32
    return %c0_i32, %c0_i32_0 : i32, i32
  }
  func.func @transform_7(%arg0: i32) -> (i32, i32) {
    %c0_i32 = arith.constant 0 : i32
    %c0_i32_0 = arith.constant 0 : i32
    %c0_i32_1 = arith.constant 0 : i32
    return %c0_i32, %c0_i32_0 : i32, i32
  }
  func.func @transform_8(%arg0: i32) -> (i32, i32) {
    %c0_i32 = arith.constant 0 : i32
    %c0_i32_0 = arith.constant 0 : i32
    %c0_i32_1 = arith.constant 0 : i32
    return %c0_i32, %c0_i32_0 : i32, i32
  }
  func.func @transform_9(%arg0: i32) -> (i32, i32) {
    %c0_i32 = arith.constant 0 : i32
    %c0_i32_0 = arith.constant 0 : i32
    %c0_i32_1 = arith.constant 0 : i32
    return %c0_i32, %c0_i32_0 : i32, i32
  }
  func.func @transform_10(%arg0: i32) -> (i32, i32) {
    %c0_i32 = arith.constant 0 : i32
    %c0_i32_0 = arith.constant 0 : i32
    %c0_i32_1 = arith.constant 0 : i32
    return %c0_i32, %c0_i32_0 : i32, i32
  }
  func.func @transform_11(%arg0: i32) -> (i32, i32) {
    %c0_i32 = arith.constant 0 : i32
    %c0_i32_0 = arith.constant 0 : i32
    %c0_i32_1 = arith.constant 0 : i32
    return %c0_i32, %c0_i32_0 : i32, i32
  }
  func.func @transform_12(%arg0: i32) -> (i32, i32) {
    %c0_i32 = arith.constant 0 : i32
    %c0_i32_0 = arith.constant 0 : i32
    return %c0_i32, %arg0 : i32, i32
  }
}

</mosaic_0001>

<llo_original>
// kernel: tpu_custom_call.1
$region0: #{tpu_custom_call.1}
  #allocation0 [shape = 'u32[]', space=smem, size = 0x4, offset = 0x4, fixed_abs, tag = 'smem constant byte address 0x4 - core index']
  #allocation1 [shape = 'u32[144,128]{1,0:T(1,128)}', space=vmem, size = 0x12000, scoped, tag = 'internal scratch']
  #allocation2 [shape = 'f32[1,1]{1,0:T(1,128)S(1)}', space=vmem, size = 0x200, scoped, tag = 'scoped memory for tpu_custom_call.1']
  #allocation3 [shape = 'f32[1,1]{1,0:T(1,128)S(1)}', space=vmem, size = 0x200, scoped, tag = 'scoped memory for tpu_custom_call.1']
  %s0 = inlined_call_operand.hbm [shape: f32[8,784], index: 0, kind: input, shape index: {}]
  %s1 = inlined_call_operand.hbm [shape: f32[784,1536], index: 1, kind: input, shape index: {}]
  %s2 = inlined_call_operand.hbm [shape: f32[1,384], index: 2, kind: input, shape index: {}]
  %s3 = inlined_call_operand.hbm [shape: f32[1024,384], index: 3, kind: input, shape index: {}]
  %s4 = inlined_call_operand.vmem [shape: f32[256,1], index: 4, kind: input, shape index: {}]
  %s5 = inlined_call_operand.hbm [shape: f32[16,256], index: 5, kind: input, shape index: {}]
  %s6 = inlined_call_operand.vmem [shape: f32[16,1], index: 6, kind: input, shape index: {}]
  %s7 = inlined_call_operand.hbm [shape: f32[2,16], index: 7, kind: input, shape index: {}]
  %s8 = inlined_call_operand.vmem [shape: f32[2,1], index: 8, kind: input, shape index: {}]
  %s9 = inlined_call_operand.vmem [shape: f32[2,1], index: 9, kind: input, shape index: {}]
  %s10 = inlined_call_operand.<no memory space> [shape: f32[1,1], index: 10, kind: input, shape index: {}]
  %s11 = inlined_call_operand.<no memory space> [shape: f32[1,1], index: 11, kind: input, shape index: {}]
  %s12 = inlined_call_operand.hbm [shape: f32[1,8], index: 12, kind: output, shape index: {}]
  %s13 = sld [smem:[#allocation0]]
  $region82: #{tpu_custom_call.1} parent=0
    _
  %s15 = ssub.s32 1, %s13
  %s16 = scalar_select 0, %s15, %s13
  %v17 = vstv %s10
  %18 = vst [vmem:[#allocation2] sm:$0x1] %v17
  %v19 = vstv %s11
  %20 = vst [vmem:[#allocation3] sm:$0x1] %v19
  $region1: #{tpu_custom_call.1} parent=0
    #allocation4 [shape = 'u8[28672]{0}', space=vmem, size = 0x7000, scoped, tag = 'input window, operand 0, single buffered']
    #allocation5 [shape = 's32[1]{0}', space=sflag, size = 0x4, scoped, tag = 'scoped memory for tpu_custom_call.1']
    #allocation6 [shape = 's32[1]{0}', space=sflag, size = 0x4, scoped, tag = 'scoped memory for tpu_custom_call.1']
    #allocation7 [shape = 'u8[4816896]{0}', space=vmem, size = 0x498000, scoped, tag = 'input window, operand 1, single buffered']
    #allocation8 [shape = 's32[1]{0}', space=sflag, size = 0x4, scoped, tag = 'scoped memory for tpu_custom_call.1']
    #allocation9 [shape = 'u8[1536]{0}', space=vmem, size = 0x800, scoped, tag = 'input window, operand 2, single buffered']
    #allocation10 [shape = 'u8[1572864]{0}', space=vmem, size = 0x180000, scoped, tag = 'input window, operand 3, single buffered']
    #allocation11 [shape = 's32[1]{0}', space=sflag, size = 0x4, scoped, tag = 'scoped memory for tpu_custom_call.1']
    #allocation12 [shape = 'u8[16384]{0}', space=vmem, size = 0x4000, scoped, tag = 'input window, operand 5, single buffered']
    #allocation13 [shape = 'u8[1024]{0}', space=vmem, size = 0x400, scoped, tag = 'input window, operand 7, single buffered']
    #allocation14 [shape = 's32[1]{0}', space=sflag, size = 0x4, scoped, tag = 'scoped memory for tpu_custom_call.1']
    #allocation15 [shape = 'u8[512]{0}', space=vmem, size = 0x400, scoped, tag = 'output window, operand 0, single buffered']
    %21 = vsyncpa [#allocation5], 0
    %22 = vsyncpa [#allocation8], 0
    %23 = vsyncpa [#allocation11], 0
    %24 = vsyncpa [#allocation14], 0
    %25 = vsyncpa [#allocation6], 0
    // Predicated region
    $region2: #{tpu_custom_call.1} parent=1 // pred_check
      _
    $region3: #{tpu_custom_call.1} parent=1 // pred_check_branch
      %27 = sbr.rel (0) target = $region5
    $region4: #{tpu_custom_call.1} parent=1 // pred_region
      %s29 = ssub.s32 896, 896
      %30 = vsyncadd [#allocation5], %s29
      %s32 = sshll.u32 [#allocation4], 4
      %s33 = int_to_ptr.vmem [resolvable:$true] %s32
      %35 = dma.hbm_to_vmem [thread:$0]  %s0, 896, %s33, [#allocation5]
    $region5: #{tpu_custom_call.1} parent=1 // pred_fallthru
      _
    // Predicated region
    $region6: #{tpu_custom_call.1} parent=1 // pred_check
      _
    $region7: #{tpu_custom_call.1} parent=1 // pred_check_branch
      %37 = sbr.rel (0) target = $region9
    $region8: #{tpu_custom_call.1} parent=1 // pred_region
      %s39 = ssub.s32 150528, 150528
      %40 = vsyncadd [#allocation8], %s39
      %s41 = sshll.u32 [#allocation7], 4
      %s42 = int_to_ptr.vmem [resolvable:$true] %s41
      %47 = dma.hbm_to_vmem [thread:$0]  %s1, 150528, %s42, [#allocation8], 1536, 1536, 96
    $region9: #{tpu_custom_call.1} parent=1 // pred_fallthru
      _
    // Predicated region
    $region10: #{tpu_custom_call.1} parent=1 // pred_check
      _
    $region11: #{tpu_custom_call.1} parent=1 // pred_check_branch
      %49 = sbr.rel (0) target = $region13
    $region12: #{tpu_custom_call.1} parent=1 // pred_region
      %s51 = ssub.s32 48, 48
      %52 = vsyncadd [#allocation8], %s51
      %s54 = sshll.u32 [#allocation9], 4
      %s55 = int_to_ptr.vmem [resolvable:$true] %s54
      %57 = dma.hbm_to_vmem [thread:$0]  %s2, 48, %s55, [#allocation8]
    $region13: #{tpu_custom_call.1} parent=1 // pred_fallthru
      _
    // Predicated region
    $region14: #{tpu_custom_call.1} parent=1 // pred_check
      _
    $region15: #{tpu_custom_call.1} parent=1 // pred_check_branch
      %59 = sbr.rel (0) target = $region17
    $region16: #{tpu_custom_call.1} parent=1 // pred_region
      %s61 = ssub.s32 49152, 49152
      %62 = vsyncadd [#allocation11], %s61
      %s63 = sshll.u32 [#allocation10], 4
      %s64 = int_to_ptr.vmem [resolvable:$true] %s63
      %69 = dma.hbm_to_vmem [thread:$0]  %s3, 49152, %s64, [#allocation11], 384, 384, 24
    $region17: #{tpu_custom_call.1} parent=1 // pred_fallthru
      _
    // Predicated region
    $region18: #{tpu_custom_call.1} parent=1 // pred_check
      _
    $region19: #{tpu_custom_call.1} parent=1 // pred_check_branch
      %71 = sbr.rel (0) target = $region21
    $region20: #{tpu_custom_call.1} parent=1 // pred_region
      _
    $region21: #{tpu_custom_call.1} parent=1 // pred_fallthru
      _
    // Predicated region
    $region22: #{tpu_custom_call.1} parent=1 // pred_check
      _
    $region23: #{tpu_custom_call.1} parent=1 // pred_check_branch
      %73 = sbr.rel (0) target = $region25
    $region24: #{tpu_custom_call.1} parent=1 // pred_region
      %s75 = ssub.s32 512, 512
      %76 = vsyncadd [#allocation11], %s75
      %s77 = sshll.u32 [#allocation12], 4
      %s78 = int_to_ptr.vmem [resolvable:$true] %s77
      %83 = dma.hbm_to_vmem [thread:$0]  %s5, 512, %s78, [#allocation11], 256, 256, 16
    $region25: #{tpu_custom_call.1} parent=1 // pred_fallthru
      _
    // Predicated region
    $region26: #{tpu_custom_call.1} parent=1 // pred_check
      _
    $region27: #{tpu_custom_call.1} parent=1 // pred_check_branch
      %85 = sbr.rel (0) target = $region29
    $region28: #{tpu_custom_call.1} parent=1 // pred_region
      _
    $region29: #{tpu_custom_call.1} parent=1 // pred_fallthru
      _
    // Predicated region
    $region30: #{tpu_custom_call.1} parent=1 // pred_check
      _
    $region31: #{tpu_custom_call.1} parent=1 // pred_check_branch
      %87 = sbr.rel (0) target = $region33
    $region32: #{tpu_custom_call.1} parent=1 // pred_region
      %s89 = ssub.s32 32, 32
      %90 = vsyncadd [#allocation14], %s89
      %s92 = sshll.u32 [#allocation13], 4
      %s93 = int_to_ptr.vmem [resolvable:$true] %s92
      %95 = dma.hbm_to_vmem [thread:$0]  %s7, 32, %s93, [#allocation14]
    $region33: #{tpu_custom_call.1} parent=1 // pred_fallthru
      _
    // Predicated region
    $region34: #{tpu_custom_call.1} parent=1 // pred_check
      _
    $region35: #{tpu_custom_call.1} parent=1 // pred_check_branch
      %97 = sbr.rel (0) target = $region37
    $region36: #{tpu_custom_call.1} parent=1 // pred_region
      _
    $region37: #{tpu_custom_call.1} parent=1 // pred_fallthru
      _
    // Predicated region
    $region38: #{tpu_custom_call.1} parent=1 // pred_check
      _
    $region39: #{tpu_custom_call.1} parent=1 // pred_check_branch
      %99 = sbr.rel (0) target = $region41
    $region40: #{tpu_custom_call.1} parent=1 // pred_region
      _
    $region41: #{tpu_custom_call.1} parent=1 // pred_fallthru
      _
    // Predicated region
    $region42: #{tpu_custom_call.1} parent=1 // pred_check
      _
    $region43: #{tpu_custom_call.1} parent=1 // pred_check_branch
      %101 = sbr.rel (0) target = $region45
    $region44: #{tpu_custom_call.1} parent=1 // pred_region
      _
    $region45: #{tpu_custom_call.1} parent=1 // pred_fallthru
      _
    // Predicated region
    $region46: #{tpu_custom_call.1} parent=1 // pred_check
      _
    $region47: #{tpu_custom_call.1} parent=1 // pred_check_branch
      %103 = sbr.rel (0) target = $region49
    $region48: #{tpu_custom_call.1} parent=1 // pred_region
      _
    $region49: #{tpu_custom_call.1} parent=1 // pred_fallthru
      _
    // Predicated region
    $region50: #{tpu_custom_call.1} parent=1 // pred_check
      _
    $region51: #{tpu_custom_call.1} parent=1 // pred_check_branch
      %105 = sbr.rel (0) target = $region53
    $region52: #{tpu_custom_call.1} parent=1 // pred_region
      %106 = dma.done [#allocation5], 896
    $region53: #{tpu_custom_call.1} parent=1 // pred_fallthru
      _
    // Predicated region
    $region54: #{tpu_custom_call.1} parent=1 // pred_check
      _
    $region55: #{tpu_custom_call.1} parent=1 // pred_check_branch
      %108 = sbr.rel (0) target = $region57
    $region56: #{tpu_custom_call.1} parent=1 // pred_region
      %109 = dma.done [#allocation8], 150528
    $region57: #{tpu_custom_call.1} parent=1 // pred_fallthru
      _
    // Predicated region
    $region58: #{tpu_custom_call.1} parent=1 // pred_check
      _
    $region59: #{tpu_custom_call.1} parent=1 // pred_check_branch
      %111 = sbr.rel (0) target = $region61
    $region60: #{tpu_custom_call.1} parent=1 // pred_region
      %112 = dma.done [#allocation8], 48
    $region61: #{tpu_custom_call.1} parent=1 // pred_fallthru
      _
    // Predicated region
    $region62: #{tpu_custom_call.1} parent=1 // pred_check
      _
    $region63: #{tpu_custom_call.1} parent=1 // pred_check_branch
      %114 = sbr.rel (0) target = $region65
    $region64: #{tpu_custom_call.1} parent=1 // pred_region
      %115 = dma.done [#allocation11], 49152
    $region65: #{tpu_custom_call.1} parent=1 // pred_fallthru
      _
    // Predicated region
    $region66: #{tpu_custom_call.1} parent=1 // pred_check
      _
    $region67: #{tpu_custom_call.1} parent=1 // pred_check_branch
      %117 = sbr.rel (0) target = $region69
    $region68: #{tpu_custom_call.1} parent=1 // pred_region
      %118 = dma.done [#allocation11], 512
    $region69: #{tpu_custom_call.1} parent=1 // pred_fallthru
      _
    // Predicated region
    $region70: #{tpu_custom_call.1} parent=1 // pred_check
      _
    $region71: #{tpu_custom_call.1} parent=1 // pred_check_branch
      %120 = sbr.rel (0) target = $region73
    $region72: #{tpu_custom_call.1} parent=1 // pred_region
      %121 = dma.done [#allocation14], 32
    $region73: #{tpu_custom_call.1} parent=1 // pred_fallthru
      _
    %v122 = vld [vmem:[#allocation4] sm:$0xff]
    %v123 = vld [vmem:[#allocation4 + $0x8] sm:$0xff]
    %v124 = vld [vmem:[#allocation4 + $0x10] sm:$0xff]
    %v125 = vld [vmem:[#allocation4 + $0x18] sm:$0xff]
    %v126 = vld [vmem:[#allocation4 + $0x20] sm:$0xff]
    %v127 = vld [vmem:[#allocation4 + $0x28] sm:$0xff]
    %v128 = vld [vmem:[#allocation4 + $0x30] sm:$0xff]
    %v129 = vld [vmem:[#allocation7] sm:$0xff]
    %v130 = vld [vmem:[#allocation7 + $0x8] sm:$0xff]
    %v131 = vld [vmem:[#allocation7 + $0x10] sm:$0xff]
    %v132 = vld [vmem:[#allocation7 + $0x18] sm:$0xff]
    %v133 = vld [vmem:[#allocation7 + $0x20] sm:$0xff]
    %v134 = vld [vmem:[#allocation7 + $0x28] sm:$0xff]
    %v135 = vld [vmem:[#allocation7 + $0x30] sm:$0xff]
    %v136 = vld [vmem:[#allocation7 + $0x38] sm:$0xff]
    %v137 = vld [vmem:[#allocation7 + $0x40] sm:$0xff]
    %v138 = vld [vmem:[#allocation7 + $0x48] sm:$0xff]
    %v139 = vld [vmem:[#allocation7 + $0x50] sm:$0xff]
    %v140 = vld [vmem:[#allocation7 + $0x58] sm:$0xff]
    %v141 = vld [vmem:[#allocation7 + $0x60] sm:$0xff]
    %v142 = vld [vmem:[#allocation7 + $0x68] sm:$0xff]
    %v143 = vld [vmem:[#allocation7 + $0x70] sm:$0xff]
    %v144 = vld [vmem:[#allocation7 + $0x78] sm:$0xff]
    %v145 = vld [vmem:[#allocation7 + $0x80] sm:$0xff]
    %v146 = vld [vmem:[#allocation7 + $0x88] sm:$0xff]
    %v147 = vld [vmem:[#allocation7 + $0x90] sm:$0xff]
    %v148 = vld [vmem:[#allocation7 + $0x98] sm:$0xff]
    %v149 = vld [vmem:[#allocation7 + $0xa0] sm:$0xff]
    %v150 = vld [vmem:[#allocation7 + $0xa8] sm:$0xff]
    %v151 = vld [vmem:[#allocation7 + $0xb0] sm:$0xff]
    %v152 = vld [vmem:[#allocation7 + $0xb8] sm:$0xff]
    %v153 = vld [vmem:[#allocation7 + $0xc0] sm:$0xff]
    %v154 = vld [vmem:[#allocation7 + $0xc8] sm:$0xff]
    %v155 = vld [vmem:[#allocation7 + $0xd0] sm:$0xff]
    %v156 = vld [vmem:[#allocation7 + $0xd8] sm:$0xff]
    %v157 = vld [vmem:[#allocation7 + $0xe0] sm:$0xff]
    %v158 = vld [vmem:[#allocation7 + $0xe8] sm:$0xff]
    %v159 = vld [vmem:[#allocation7 + $0xf0] sm:$0xff]
    %v160 = vld [vmem:[#allocation7 + $0xf8] sm:$0xff]
    %v161 = vld [vmem:[#allocation7 + $0x100] sm:$0xff]
    %v162 = vld [vmem:[#allocation7 + $0x108] sm:$0xff]
    %v163 = vld [vmem:[#allocation7 + $0x110] sm:$0xff]
    %v164 = vld [vmem:[#allocation7 + $0x118] sm:$0xff]
    %v165 = vld [vmem:[#allocation7 + $0x120] sm:$0xff]
    %v166 = vld [vmem:[#allocation7 + $0x128] sm:$0xff]
    %v167 = vld [vmem:[#allocation7 + $0x130] sm:$0xff]
    %v168 = vld [vmem:[#allocation7 + $0x138] sm:$0xff]
    %v169 = vld [vmem:[#allocation7 + $0x140] sm:$0xff]
    %v170 = vld [vmem:[#allocation7 + $0x148] sm:$0xff]
    %v171 = vld [vmem:[#allocation7 + $0x150] sm:$0xff]
    %v172 = vld [vmem:[#allocation7 + $0x158] sm:$0xff]
    %v173 = vld [vmem:[#allocation7 + $0x160] sm:$0xff]
    %v174 = vld [vmem:[#allocation7 + $0x168] sm:$0xff]
    %v175 = vld [vmem:[#allocation7 + $0x170] sm:$0xff]
    %v176 = vld [vmem:[#allocation7 + $0x178] sm:$0xff]
    %v177 = vld [vmem:[#allocation7 + $0x180] sm:$0xff]
    %v178 = vld [vmem:[#allocation7 + $0x188] sm:$0xff]
    %v179 = vld [vmem:[#allocation7 + $0x190] sm:$0xff]
    %v180 = vld [vmem:[#allocation7 + $0x198] sm:$0xff]
    %v181 = vld [vmem:[#allocation7 + $0x1a0] sm:$0xff]
    %v182 = vld [vmem:[#allocation7 + $0x1a8] sm:$0xff]
    %v183 = vld [vmem:[#allocation7 + $0x1b0] sm:$0xff]
    %v184 = vld [vmem:[#allocation7 + $0x1b8] sm:$0xff]
    %v185 = vld [vmem:[#allocation7 + $0x1c0] sm:$0xff]
    %v186 = vld [vmem:[#allocation7 + $0x1c8] sm:$0xff]
    %v187 = vld [vmem:[#allocation7 + $0x1d0] sm:$0xff]
    %v188 = vld [vmem:[#allocation7 + $0x1d8] sm:$0xff]
    %v189 = vld [vmem:[#allocation7 + $0x1e0] sm:$0xff]
    %v190 = vld [vmem:[#allocation7 + $0x1e8] sm:$0xff]
    %v191 = vld [vmem:[#allocation7 + $0x1f0] sm:$0xff]
    %v192 = vld [vmem:[#allocation7 + $0x1f8] sm:$0xff]
    %v193 = vld [vmem:[#allocation7 + $0x200] sm:$0xff]
    %v194 = vld [vmem:[#allocation7 + $0x208] sm:$0xff]
    %v195 = vld [vmem:[#allocation7 + $0x210] sm:$0xff]
    %v196 = vld [vmem:[#allocation7 + $0x218] sm:$0xff]
    %v197 = vld [vmem:[#allocation7 + $0x220] sm:$0xff]
    %v198 = vld [vmem:[#allocation7 + $0x228] sm:$0xff]
    %v199 = vld [vmem:[#allocation7 + $0x230] sm:$0xff]
    %v200 = vld [vmem:[#allocation7 + $0x238] sm:$0xff]
    %v201 = vld [vmem:[#allocation7 + $0x240] sm:$0xff]
    %v202 = vld [vmem:[#allocation7 + $0x248] sm:$0xff]
    %v203 = vld [vmem:[#allocation7 + $0x250] sm:$0xff]
    %v204 = vld [vmem:[#allocation7 + $0x258] sm:$0xff]
    %v205 = vld [vmem:[#allocation7 + $0x260] sm:$0xff]
    %v206 = vld [vmem:[#allocation7 + $0x268] sm:$0xff]
    %v207 = vld [vmem:[#allocation7 + $0x270] sm:$0xff]
    %v208 = vld [vmem:[#allocation7 + $0x278] sm:$0xff]
    %v209 = vld [vmem:[#allocation7 + $0x280] sm:$0xff]
    %v210 = vld [vmem:[#allocation7 + $0x288] sm:$0xff]
    %v211 = vld [vmem:[#allocation7 + $0x290] sm:$0xff]
    %v212 = vld [vmem:[#allocation7 + $0x298] sm:$0xff]
    %v213 = vld [vmem:[#allocation7 + $0x2a0] sm:$0xff]
    %v214 = vld [vmem:[#allocation7 + $0x2a8] sm:$0xff]
    %v215 = vld [vmem:[#allocation7 + $0x2b0] sm:$0xff]
    %v216 = vld [vmem:[#allocation7 + $0x2b8] sm:$0xff]
    %v217 = vld [vmem:[#allocation7 + $0x2c0] sm:$0xff]
    %v218 = vld [vmem:[#allocation7 + $0x2c8] sm:$0xff]
    %v219 = vld [vmem:[#allocation7 + $0x2d0] sm:$0xff]
    %v220 = vld [vmem:[#allocation7 + $0x2d8] sm:$0xff]
    %v221 = vld [vmem:[#allocation7 + $0x2e0] sm:$0xff]
    %v222 = vld [vmem:[#allocation7 + $0x2e8] sm:$0xff]
    %v223 = vld [vmem:[#allocation7 + $0x2f0] sm:$0xff]
    %v224 = vld [vmem:[#allocation7 + $0x2f8] sm:$0xff]
    %v225 = vld [vmem:[#allocation7 + $0x300] sm:$0xff]
    %v226 = vld [vmem:[#allocation7 + $0x308] sm:$0xff]
    %v227 = vld [vmem:[#allocation7 + $0x310] sm:$0xff]
    %v228 = vld [vmem:[#allocation7 + $0x318] sm:$0xff]
    %v229 = vld [vmem:[#allocation7 + $0x320] sm:$0xff]
    %v230 = vld [vmem:[#allocation7 + $0x328] sm:$0xff]
    %v231 = vld [vmem:[#allocation7 + $0x330] sm:$0xff]
    %v232 = vld [vmem:[#allocation7 + $0x338] sm:$0xff]
    %v233 = vld [vmem:[#allocation7 + $0x340] sm:$0xff]
    %v234 = vld [vmem:[#allocation7 + $0x348] sm:$0xff]
    %v235 = vld [vmem:[#allocation7 + $0x350] sm:$0xff]
    %v236 = vld [vmem:[#allocation7 + $0x358] sm:$0xff]
    %v237 = vld [vmem:[#allocation7 + $0x360] sm:$0xff]
    %v238 = vld [vmem:[#allocation7 + $0x368] sm:$0xff]
    %v239 = vld [vmem:[#allocation7 + $0x370] sm:$0xff]
    %v240 = vld [vmem:[#allocation7 + $0x378] sm:$0xff]
    %v241 = vld [vmem:[#allocation7 + $0x380] sm:$0xff]
    %v242 = vld [vmem:[#allocation7 + $0x388] sm:$0xff]
    %v243 = vld [vmem:[#allocation7 + $0x390] sm:$0xff]
    %v244 = vld [vmem:[#allocation7 + $0x398] sm:$0xff]
    %v245 = vld [vmem:[#allocation7 + $0x3a0] sm:$0xff]
    %v246 = vld [vmem:[#allocation7 + $0x3a8] sm:$0xff]
    %v247 = vld [vmem:[#allocation7 + $0x3b0] sm:$0xff]
    %v248 = vld [vmem:[#allocation7 + $0x3b8] sm:$0xff]
    %v249 = vld [vmem:[#allocation7 + $0x3c0] sm:$0xff]
    %v250 = vld [vmem:[#allocation7 + $0x3c8] sm:$0xff]
    %v251 = vld [vmem:[#allocation7 + $0x3d0] sm:$0xff]
    %v252 = vld [vmem:[#allocation7 + $0x3d8] sm:$0xff]
    %v253 = vld [vmem:[#allocation7 + $0x3e0] sm:$0xff]
    %v254 = vld [vmem:[#allocation7 + $0x3e8] sm:$0xff]
    %v255 = vld [vmem:[#allocation7 + $0x3f0] sm:$0xff]
    %v256 = vld [vmem:[#allocation7 + $0x3f8] sm:$0xff]
    %v257 = vld [vmem:[#allocation7 + $0x400] sm:$0xff]
    %v258 = vld [vmem:[#allocation7 + $0x408] sm:$0xff]
    %v259 = vld [vmem:[#allocation7 + $0x410] sm:$0xff]
    %v260 = vld [vmem:[#allocation7 + $0x418] sm:$0xff]
    %v261 = vld [vmem:[#allocation7 + $0x420] sm:$0xff]
    %v262 = vld [vmem:[#allocation7 + $0x428] sm:$0xff]
    %v263 = vld [vmem:[#allocation7 + $0x430] sm:$0xff]
    %v264 = vld [vmem:[#allocation7 + $0x438] sm:$0xff]
    %v265 = vld [vmem:[#allocation7 + $0x440] sm:$0xff]
    %v266 = vld [vmem:[#allocation7 + $0x448] sm:$0xff]
    %v267 = vld [vmem:[#allocation7 + $0x450] sm:$0xff]
    %v268 = vld [vmem:[#allocation7 + $0x458] sm:$0xff]
    %v269 = vld [vmem:[#allocation7 + $0x460] sm:$0xff]
    %v270 = vld [vmem:[#allocation7 + $0x468] sm:$0xff]
    %v271 = vld [vmem:[#allocation7 + $0x470] sm:$0xff]
    %v272 = vld [vmem:[#allocation7 + $0x478] sm:$0xff]
    %v273 = vld [vmem:[#allocation7 + $0x480] sm:$0xff]
    %v274 = vld [vmem:[#allocation7 + $0x488] sm:$0xff]
    %v275 = vld [vmem:[#allocation7 + $0x490] sm:$0xff]
    %v276 = vld [vmem:[#allocation7 + $0x498] sm:$0xff]
    %v277 = vld [vmem:[#allocation7 + $0x4a0] sm:$0xff]
    %v278 = vld [vmem:[#allocation7 + $0x4a8] sm:$0xff]
    %v279 = vld [vmem:[#allocation7 + $0x4b0] sm:$0xff]
    %v280 = vld [vmem:[#allocation7 + $0x4b8] sm:$0xff]
    %v281 = vld [vmem:[#allocation7 + $0x4c0] sm:$0xff]
    %v282 = vld [vmem:[#allocation7 + $0x4c8] sm:$0xff]
    %v283 = vld [vmem:[#allocation7 + $0x4d0] sm:$0xff]
    %v284 = vld [vmem:[#allocation7 + $0x4d8] sm:$0xff]
    %v285 = vld [vmem:[#allocation7 + $0x4e0] sm:$0xff]
    %v286 = vld [vmem:[#allocation7 + $0x4e8] sm:$0xff]
    %v287 = vld [vmem:[#allocation7 + $0x4f0] sm:$0xff]
    %v288 = vld [vmem:[#allocation7 + $0x4f8] sm:$0xff]
    %v289 = vld [vmem:[#allocation7 + $0x500] sm:$0xff]
    %v290 = vld [vmem:[#allocation7 + $0x508] sm:$0xff]
    %v291 = vld [vmem:[#allocation7 + $0x510] sm:$0xff]
    %v292 = vld [vmem:[#allocation7 + $0x518] sm:$0xff]
    %v293 = vld [vmem:[#allocation7 + $0x520] sm:$0xff]
    %v294 = vld [vmem:[#allocation7 + $0x528] sm:$0xff]
    %v295 = vld [vmem:[#allocation7 + $0x530] sm:$0xff]
    %v296 = vld [vmem:[#allocation7 + $0x538] sm:$0xff]
    %v297 = vld [vmem:[#allocation7 + $0x540] sm:$0xff]
    %v298 = vld [vmem:[#allocation7 + $0x548] sm:$0xff]
    %v299 = vld [vmem:[#allocation7 + $0x550] sm:$0xff]
    %v300 = vld [vmem:[#allocation7 + $0x558] sm:$0xff]
    %v301 = vld [vmem:[#allocation7 + $0x560] sm:$0xff]
    %v302 = vld [vmem:[#allocation7 + $0x568] sm:$0xff]
    %v303 = vld [vmem:[#allocation7 + $0x570] sm:$0xff]
    %v304 = vld [vmem:[#allocation7 + $0x578] sm:$0xff]
    %v305 = vld [vmem:[#allocation7 + $0x580] sm:$0xff]
    %v306 = vld [vmem:[#allocation7 + $0x588] sm:$0xff]
    %v307 = vld [vmem:[#allocation7 + $0x590] sm:$0xff]
    %v308 = vld [vmem:[#allocation7 + $0x598] sm:$0xff]
    %v309 = vld [vmem:[#allocation7 + $0x5a0] sm:$0xff]
    %v310 = vld [vmem:[#allocation7 + $0x5a8] sm:$0xff]
    %v311 = vld [vmem:[#allocation7 + $0x5b0] sm:$0xff]
    %v312 = vld [vmem:[#allocation7 + $0x5b8] sm:$0xff]
    %v313 = vld [vmem:[#allocation7 + $0x5c0] sm:$0xff]
    %v314 = vld [vmem:[#allocation7 + $0x5c8] sm:$0xff]
    %v315 = vld [vmem:[#allocation7 + $0x5d0] sm:$0xff]
    %v316 = vld [vmem:[#allocation7 + $0x5d8] sm:$0xff]
    %v317 = vld [vmem:[#allocation7 + $0x5e0] sm:$0xff]
    %v318 = vld [vmem:[#allocation7 + $0x5e8] sm:$0xff]
    %v319 = vld [vmem:[#allocation7 + $0x5f0] sm:$0xff]
    %v320 = vld [vmem:[#allocation7 + $0x5f8] sm:$0xff]
    %v321 = vld [vmem:[#allocation7 + $0x600] sm:$0xff]
    %v322 = vld [vmem:[#allocation7 + $0x608] sm:$0xff]
    %v323 = vld [vmem:[#allocation7 + $0x610] sm:$0xff]
    %v324 = vld [vmem:[#allocation7 + $0x618] sm:$0xff]
    %v325 = vld [vmem:[#allocation7 + $0x620] sm:$0xff]
    %v326 = vld [vmem:[#allocation7 + $0x628] sm:$0xff]
    %v327 = vld [vmem:[#allocation7 + $0x630] sm:$0xff]
    %v328 = vld [vmem:[#allocation7 + $0x638] sm:$0xff]
    %v329 = vld [vmem:[#allocation7 + $0x640] sm:$0xff]
    %v330 = vld [vmem:[#allocation7 + $0x648] sm:$0xff]
    %v331 = vld [vmem:[#allocation7 + $0x650] sm:$0xff]
    %v332 = vld [vmem:[#allocation7 + $0x658] sm:$0xff]
    %v333 = vld [vmem:[#allocation7 + $0x660] sm:$0xff]
    %v334 = vld [vmem:[#allocation7 + $0x668] sm:$0xff]
    %v335 = vld [vmem:[#allocation7 + $0x670] sm:$0xff]
    %v336 = vld [vmem:[#allocation7 + $0x678] sm:$0xff]
    %v337 = vld [vmem:[#allocation7 + $0x680] sm:$0xff]
    %v338 = vld [vmem:[#allocation7 + $0x688] sm:$0xff]
    %v339 = vld [vmem:[#allocation7 + $0x690] sm:$0xff]
    %v340 = vld [vmem:[#allocation7 + $0x698] sm:$0xff]
    %v341 = vld [vmem:[#allocation7 + $0x6a0] sm:$0xff]
    %v342 = vld [vmem:[#allocation7 + $0x6a8] sm:$0xff]
    %v343 = vld [vmem:[#allocation7 + $0x6b0] sm:$0xff]
    %v344 = vld [vmem:[#allocation7 + $0x6b8] sm:$0xff]
    %v345 = vld [vmem:[#allocation7 + $0x6c0] sm:$0xff]
    %v346 = vld [vmem:[#allocation7 + $0x6c8] sm:$0xff]
    %v347 = vld [vmem:[#allocation7 + $0x6d0] sm:$0xff]
    %v348 = vld [vmem:[#allocation7 + $0x6d8] sm:$0xff]
    %v349 = vld [vmem:[#allocation7 + $0x6e0] sm:$0xff]
    %v350 = vld [vmem:[#allocation7 + $0x6e8] sm:$0xff]
    %v351 = vld [vmem:[#allocation7 + $0x6f0] sm:$0xff]
    %v352 = vld [vmem:[#allocation7 + $0x6f8] sm:$0xff]
    %v353 = vld [vmem:[#allocation7 + $0x700] sm:$0xff]
    %v354 = vld [vmem:[#allocation7 + $0x708] sm:$0xff]
    %v355 = vld [vmem:[#allocation7 + $0x710] sm:$0xff]
    %v356 = vld [vmem:[#allocation7 + $0x718] sm:$0xff]
    %v357 = vld [vmem:[#allocation7 + $0x720] sm:$0xff]
    %v358 = vld [vmem:[#allocation7 + $0x728] sm:$0xff]
    %v359 = vld [vmem:[#allocation7 + $0x730] sm:$0xff]
    %v360 = vld [vmem:[#allocation7 + $0x738] sm:$0xff]
    %v361 = vld [vmem:[#allocation7 + $0x740] sm:$0xff]
    %v362 = vld [vmem:[#allocation7 + $0x748] sm:$0xff]
    %v363 = vld [vmem:[#allocation7 + $0x750] sm:$0xff]
    %v364 = vld [vmem:[#allocation7 + $0x758] sm:$0xff]
    %v365 = vld [vmem:[#allocation7 + $0x760] sm:$0xff]
    %v366 = vld [vmem:[#allocation7 + $0x768] sm:$0xff]
    %v367 = vld [vmem:[#allocation7 + $0x770] sm:$0xff]
    %v368 = vld [vmem:[#allocation7 + $0x778] sm:$0xff]
    %v369 = vld [vmem:[#allocation7 + $0x780] sm:$0xff]
    %v370 = vld [vmem:[#allocation7 + $0x788] sm:$0xff]
    %v371 = vld [vmem:[#allocation7 + $0x790] sm:$0xff]
    %v372 = vld [vmem:[#allocation7 + $0x798] sm:$0xff]
    %v373 = vld [vmem:[#allocation7 + $0x7a0] sm:$0xff]
    %v374 = vld [vmem:[#allocation7 + $0x7a8] sm:$0xff]
    %v375 = vld [vmem:[#allocation7 + $0x7b0] sm:$0xff]
    %v376 = vld [vmem:[#allocation7 + $0x7b8] sm:$0xff]
    %v377 = vld [vmem:[#allocation7 + $0x7c0] sm:$0xff]
    %v378 = vld [vmem:[#allocation7 + $0x7c8] sm:$0xff]
    %v379 = vld [vmem:[#allocation7 + $0x7d0] sm:$0xff]
    %v380 = vld [vmem:[#allocation7 + $0x7d8] sm:$0xff]
    %v381 = vld [vmem:[#allocation7 + $0x7e0] sm:$0xff]
    %v382 = vld [vmem:[#allocation7 + $0x7e8] sm:$0xff]
    %v383 = vld [vmem:[#allocation7 + $0x7f0] sm:$0xff]
    %v384 = vld [vmem:[#allocation7 + $0x7f8] sm:$0xff]
    %v385 = vld [vmem:[#allocation7 + $0x800] sm:$0xff]
    %v386 = vld [vmem:[#allocation7 + $0x808] sm:$0xff]
    %v387 = vld [vmem:[#allocation7 + $0x810] sm:$0xff]
    %v388 = vld [vmem:[#allocation7 + $0x818] sm:$0xff]
    %v389 = vld [vmem:[#allocation7 + $0x820] sm:$0xff]
    %v390 = vld [vmem:[#allocation7 + $0x828] sm:$0xff]
    %v391 = vld [vmem:[#allocation7 + $0x830] sm:$0xff]
    %v392 = vld [vmem:[#allocation7 + $0x838] sm:$0xff]
    %v393 = vld [vmem:[#allocation7 + $0x840] sm:$0xff]
    %v394 = vld [vmem:[#allocation7 + $0x848] sm:$0xff]
    %v395 = vld [vmem:[#allocation7 + $0x850] sm:$0xff]
    %v396 = vld [vmem:[#allocation7 + $0x858] sm:$0xff]
    %v397 = vld [vmem:[#allocation7 + $0x860] sm:$0xff]
    %v398 = vld [vmem:[#allocation7 + $0x868] sm:$0xff]
    %v399 = vld [vmem:[#allocation7 + $0x870] sm:$0xff]
    %v400 = vld [vmem:[#allocation7 + $0x878] sm:$0xff]
    %v401 = vld [vmem:[#allocation7 + $0x880] sm:$0xff]
    %v402 = vld [vmem:[#allocation7 + $0x888] sm:$0xff]
    %v403 = vld [vmem:[#allocation7 + $0x890] sm:$0xff]
    %v404 = vld [vmem:[#allocation7 + $0x898] sm:$0xff]
    %v405 = vld [vmem:[#allocation7 + $0x8a0] sm:$0xff]
    %v406 = vld [vmem:[#allocation7 + $0x8a8] sm:$0xff]
    %v407 = vld [vmem:[#allocation7 + $0x8b0] sm:$0xff]
    %v408 = vld [vmem:[#allocation7 + $0x8b8] sm:$0xff]
    %v409 = vld [vmem:[#allocation7 + $0x8c0] sm:$0xff]
    %v410 = vld [vmem:[#allocation7 + $0x8c8] sm:$0xff]
    %v411 = vld [vmem:[#allocation7 + $0x8d0] sm:$0xff]
    %v412 = vld [vmem:[#allocation7 + $0x8d8] sm:$0xff]
    %v413 = vld [vmem:[#allocation7 + $0x8e0] sm:$0xff]
    %v414 = vld [vmem:[#allocation7 + $0x8e8] sm:$0xff]
    %v415 = vld [vmem:[#allocation7 + $0x8f0] sm:$0xff]
    %v416 = vld [vmem:[#allocation7 + $0x8f8] sm:$0xff]
    %v417 = vld [vmem:[#allocation7 + $0x900] sm:$0xff]
    %v418 = vld [vmem:[#allocation7 + $0x908] sm:$0xff]
    %v419 = vld [vmem:[#allocation7 + $0x910] sm:$0xff]
    %v420 = vld [vmem:[#allocation7 + $0x918] sm:$0xff]
    %v421 = vld [vmem:[#allocation7 + $0x920] sm:$0xff]
    %v422 = vld [vmem:[#allocation7 + $0x928] sm:$0xff]
    %v423 = vld [vmem:[#allocation7 + $0x930] sm:$0xff]
    %v424 = vld [vmem:[#allocation7 + $0x938] sm:$0xff]
    %v425 = vld [vmem:[#allocation7 + $0x940] sm:$0xff]
    %v426 = vld [vmem:[#allocation7 + $0x948] sm:$0xff]
    %v427 = vld [vmem:[#allocation7 + $0x950] sm:$0xff]
    %v428 = vld [vmem:[#allocation7 + $0x958] sm:$0xff]
    %v429 = vld [vmem:[#allocation7 + $0x960] sm:$0xff]
    %v430 = vld [vmem:[#allocation7 + $0x968] sm:$0xff]
    %v431 = vld [vmem:[#allocation7 + $0x970] sm:$0xff]
    %v432 = vld [vmem:[#allocation7 + $0x978] sm:$0xff]
    %v433 = vld [vmem:[#allocation7 + $0x980] sm:$0xff]
    %v434 = vld [vmem:[#allocation7 + $0x988] sm:$0xff]
    %v435 = vld [vmem:[#allocation7 + $0x990] sm:$0xff]
    %v436 = vld [vmem:[#allocation7 + $0x998] sm:$0xff]
    %v437 = vld [vmem:[#allocation7 + $0x9a0] sm:$0xff]
    %v438 = vld [vmem:[#allocation7 + $0x9a8] sm:$0xff]
    %v439 = vld [vmem:[#allocation7 + $0x9b0] sm:$0xff]
    %v440 = vld [vmem:[#allocation7 + $0x9b8] sm:$0xff]
    %v441 = vld [vmem:[#allocation7 + $0x9c0] sm:$0xff]
    %v442 = vld [vmem:[#allocation7 + $0x9c8] sm:$0xff]
    %v443 = vld [vmem:[#allocation7 + $0x9d0] sm:$0xff]
    %v444 = vld [vmem:[#allocation7 + $0x9d8] sm:$0xff]
    %v445 = vld [vmem:[#allocation7 + $0x9e0] sm:$0xff]
    %v446 = vld [vmem:[#allocation7 + $0x9e8] sm:$0xff]
    %v447 = vld [vmem:[#allocation7 + $0x9f0] sm:$0xff]
    %v448 = vld [vmem:[#allocation7 + $0x9f8] sm:$0xff]
    %v449 = vld [vmem:[#allocation7 + $0xa00] sm:$0xff]
    %v450 = vld [vmem:[#allocation7 + $0xa08] sm:$0xff]
    %v451 = vld [vmem:[#allocation7 + $0xa10] sm:$0xff]
    %v452 = vld [vmem:[#allocation7 + $0xa18] sm:$0xff]
    %v453 = vld [vmem:[#allocation7 + $0xa20] sm:$0xff]
    %v454 = vld [vmem:[#allocation7 + $0xa28] sm:$0xff]
    %v455 = vld [vmem:[#allocation7 + $0xa30] sm:$0xff]
    %v456 = vld [vmem:[#allocation7 + $0xa38] sm:$0xff]
    %v457 = vld [vmem:[#allocation7 + $0xa40] sm:$0xff]
    %v458 = vld [vmem:[#allocation7 + $0xa48] sm:$0xff]
    %v459 = vld [vmem:[#allocation7 + $0xa50] sm:$0xff]
    %v460 = vld [vmem:[#allocation7 + $0xa58] sm:$0xff]
    %v461 = vld [vmem:[#allocation7 + $0xa60] sm:$0xff]
    %v462 = vld [vmem:[#allocation7 + $0xa68] sm:$0xff]
    %v463 = vld [vmem:[#allocation7 + $0xa70] sm:$0xff]
    %v464 = vld [vmem:[#allocation7 + $0xa78] sm:$0xff]
    %v465 = vld [vmem:[#allocation7 + $0xa80] sm:$0xff]
    %v466 = vld [vmem:[#allocation7 + $0xa88] sm:$0xff]
    %v467 = vld [vmem:[#allocation7 + $0xa90] sm:$0xff]
    %v468 = vld [vmem:[#allocation7 + $0xa98] sm:$0xff]
    %v469 = vld [vmem:[#allocation7 + $0xaa0] sm:$0xff]
    %v470 = vld [vmem:[#allocation7 + $0xaa8] sm:$0xff]
    %v471 = vld [vmem:[#allocation7 + $0xab0] sm:$0xff]
    %v472 = vld [vmem:[#allocation7 + $0xab8] sm:$0xff]
    %v473 = vld [vmem:[#allocation7 + $0xac0] sm:$0xff]
    %v474 = vld [vmem:[#allocation7 + $0xac8] sm:$0xff]
    %v475 = vld [vmem:[#allocation7 + $0xad0] sm:$0xff]
    %v476 = vld [vmem:[#allocation7 + $0xad8] sm:$0xff]
    %v477 = vld [vmem:[#allocation7 + $0xae0] sm:$0xff]
    %v478 = vld [vmem:[#allocation7 + $0xae8] sm:$0xff]
    %v479 = vld [vmem:[#allocation7 + $0xaf0] sm:$0xff]
    %v480 = vld [vmem:[#allocation7 + $0xaf8] sm:$0xff]
    %v481 = vld [vmem:[#allocation7 + $0xb00] sm:$0xff]
    %v482 = vld [vmem:[#allocation7 + $0xb08] sm:$0xff]
    %v483 = vld [vmem:[#allocation7 + $0xb10] sm:$0xff]
    %v484 = vld [vmem:[#allocation7 + $0xb18] sm:$0xff]
    %v485 = vld [vmem:[#allocation7 + $0xb20] sm:$0xff]
    %v486 = vld [vmem:[#allocation7 + $0xb28] sm:$0xff]
    %v487 = vld [vmem:[#allocation7 + $0xb30] sm:$0xff]
    %v488 = vld [vmem:[#allocation7 + $0xb38] sm:$0xff]
    %v489 = vld [vmem:[#allocation7 + $0xb40] sm:$0xff]
    %v490 = vld [vmem:[#allocation7 + $0xb48] sm:$0xff]
    %v491 = vld [vmem:[#allocation7 + $0xb50] sm:$0xff]
    %v492 = vld [vmem:[#allocation7 + $0xb58] sm:$0xff]
    %v493 = vld [vmem:[#allocation7 + $0xb60] sm:$0xff]
    %v494 = vld [vmem:[#allocation7 + $0xb68] sm:$0xff]
    %v495 = vld [vmem:[#allocation7 + $0xb70] sm:$0xff]
    %v496 = vld [vmem:[#allocation7 + $0xb78] sm:$0xff]
    %v497 = vld [vmem:[#allocation7 + $0xb80] sm:$0xff]
    %v498 = vld [vmem:[#allocation7 + $0xb88] sm:$0xff]
    %v499 = vld [vmem:[#allocation7 + $0xb90] sm:$0xff]
    %v500 = vld [vmem:[#allocation7 + $0xb98] sm:$0xff]
    %v501 = vld [vmem:[#allocation7 + $0xba0] sm:$0xff]
    %v502 = vld [vmem:[#allocation7 + $0xba8] sm:$0xff]
    %v503 = vld [vmem:[#allocation7 + $0xbb0] sm:$0xff]
    %v504 = vld [vmem:[#allocation7 + $0xbb8] sm:$0xff]
    %v505 = vld [vmem:[#allocation7 + $0xbc0] sm:$0xff]
    %v506 = vld [vmem:[#allocation7 + $0xbc8] sm:$0xff]
    %v507 = vld [vmem:[#allocation7 + $0xbd0] sm:$0xff]
    %v508 = vld [vmem:[#allocation7 + $0xbd8] sm:$0xff]
    %v509 = vld [vmem:[#allocation7 + $0xbe0] sm:$0xff]
    %v510 = vld [vmem:[#allocation7 + $0xbe8] sm:$0xff]
    %v511 = vld [vmem:[#allocation7 + $0xbf0] sm:$0xff]
    %v512 = vld [vmem:[#allocation7 + $0xbf8] sm:$0xff]
    %v513 = vld [vmem:[#allocation7 + $0xc00] sm:$0xff]
    %v514 = vld [vmem:[#allocation7 + $0xc08] sm:$0xff]
    %v515 = vld [vmem:[#allocation7 + $0xc10] sm:$0xff]
    %v516 = vld [vmem:[#allocation7 + $0xc18] sm:$0xff]
    %v517 = vld [vmem:[#allocation7 + $0xc20] sm:$0xff]
    %v518 = vld [vmem:[#allocation7 + $0xc28] sm:$0xff]
    %v519 = vld [vmem:[#allocation7 + $0xc30] sm:$0xff]
    %v520 = vld [vmem:[#allocation7 + $0xc38] sm:$0xff]
    %v521 = vld [vmem:[#allocation7 + $0xc40] sm:$0xff]
    %v522 = vld [vmem:[#allocation7 + $0xc48] sm:$0xff]
    %v523 = vld [vmem:[#allocation7 + $0xc50] sm:$0xff]
    %v524 = vld [vmem:[#allocation7 + $0xc58] sm:$0xff]
    %v525 = vld [vmem:[#allocation7 + $0xc60] sm:$0xff]
    %v526 = vld [vmem:[#allocation7 + $0xc68] sm:$0xff]
    %v527 = vld [vmem:[#allocation7 + $0xc70] sm:$0xff]
    %v528 = vld [vmem:[#allocation7 + $0xc78] sm:$0xff]
    %v529 = vld [vmem:[#allocation7 + $0xc80] sm:$0xff]
    %v530 = vld [vmem:[#allocation7 + $0xc88] sm:$0xff]
    %v531 = vld [vmem:[#allocation7 + $0xc90] sm:$0xff]
    %v532 = vld [vmem:[#allocation7 + $0xc98] sm:$0xff]
    %v533 = vld [vmem:[#allocation7 + $0xca0] sm:$0xff]
    %v534 = vld [vmem:[#allocation7 + $0xca8] sm:$0xff]
    %v535 = vld [vmem:[#allocation7 + $0xcb0] sm:$0xff]
    %v536 = vld [vmem:[#allocation7 + $0xcb8] sm:$0xff]
    %v537 = vld [vmem:[#allocation7 + $0xcc0] sm:$0xff]
    %v538 = vld [vmem:[#allocation7 + $0xcc8] sm:$0xff]
    %v539 = vld [vmem:[#allocation7 + $0xcd0] sm:$0xff]
    %v540 = vld [vmem:[#allocation7 + $0xcd8] sm:$0xff]
    %v541 = vld [vmem:[#allocation7 + $0xce0] sm:$0xff]
    %v542 = vld [vmem:[#allocation7 + $0xce8] sm:$0xff]
    %v543 = vld [vmem:[#allocation7 + $0xcf0] sm:$0xff]
    %v544 = vld [vmem:[#allocation7 + $0xcf8] sm:$0xff]
    %v545 = vld [vmem:[#allocation7 + $0xd00] sm:$0xff]
    %v546 = vld [vmem:[#allocation7 + $0xd08] sm:$0xff]
    %v547 = vld [vmem:[#allocation7 + $0xd10] sm:$0xff]
    %v548 = vld [vmem:[#allocation7 + $0xd18] sm:$0xff]
    %v549 = vld [vmem:[#allocation7 + $0xd20] sm:$0xff]
    %v550 = vld [vmem:[#allocation7 + $0xd28] sm:$0xff]
    %v551 = vld [vmem:[#allocation7 + $0xd30] sm:$0xff]
    %v552 = vld [vmem:[#allocation7 + $0xd38] sm:$0xff]
    %v553 = vld [vmem:[#allocation7 + $0xd40] sm:$0xff]
    %v554 = vld [vmem:[#allocation7 + $0xd48] sm:$0xff]
    %v555 = vld [vmem:[#allocation7 + $0xd50] sm:$0xff]
    %v556 = vld [vmem:[#allocation7 + $0xd58] sm:$0xff]
    %v557 = vld [vmem:[#allocation7 + $0xd60] sm:$0xff]
    %v558 = vld [vmem:[#allocation7 + $0xd68] sm:$0xff]
    %v559 = vld [vmem:[#allocation7 + $0xd70] sm:$0xff]
    %v560 = vld [vmem:[#allocation7 + $0xd78] sm:$0xff]
    %v561 = vld [vmem:[#allocation7 + $0xd80] sm:$0xff]
    %v562 = vld [vmem:[#allocation7 + $0xd88] sm:$0xff]
    %v563 = vld [vmem:[#allocation7 + $0xd90] sm:$0xff]
    %v564 = vld [vmem:[#allocation7 + $0xd98] sm:$0xff]
    %v565 = vld [vmem:[#allocation7 + $0xda0] sm:$0xff]
    %v566 = vld [vmem:[#allocation7 + $0xda8] sm:$0xff]
    %v567 = vld [vmem:[#allocation7 + $0xdb0] sm:$0xff]
    %v568 = vld [vmem:[#allocation7 + $0xdb8] sm:$0xff]
    %v569 = vld [vmem:[#allocation7 + $0xdc0] sm:$0xff]
    %v570 = vld [vmem:[#allocation7 + $0xdc8] sm:$0xff]
    %v571 = vld [vmem:[#allocation7 + $0xdd0] sm:$0xff]
    %v572 = vld [vmem:[#allocation7 + $0xdd8] sm:$0xff]
    %v573 = vld [vmem:[#allocation7 + $0xde0] sm:$0xff]
    %v574 = vld [vmem:[#allocation7 + $0xde8] sm:$0xff]
    %v575 = vld [vmem:[#allocation7 + $0xdf0] sm:$0xff]
    %v576 = vld [vmem:[#allocation7 + $0xdf8] sm:$0xff]
    %v577 = vld [vmem:[#allocation7 + $0xe00] sm:$0xff]
    %v578 = vld [vmem:[#allocation7 + $0xe08] sm:$0xff]
    %v579 = vld [vmem:[#allocation7 + $0xe10] sm:$0xff]
    %v580 = vld [vmem:[#allocation7 + $0xe18] sm:$0xff]
    %v581 = vld [vmem:[#allocation7 + $0xe20] sm:$0xff]
    %v582 = vld [vmem:[#allocation7 + $0xe28] sm:$0xff]
    %v583 = vld [vmem:[#allocation7 + $0xe30] sm:$0xff]
    %v584 = vld [vmem:[#allocation7 + $0xe38] sm:$0xff]
    %v585 = vld [vmem:[#allocation7 + $0xe40] sm:$0xff]
    %v586 = vld [vmem:[#allocation7 + $0xe48] sm:$0xff]
    %v587 = vld [vmem:[#allocation7 + $0xe50] sm:$0xff]
    %v588 = vld [vmem:[#allocation7 + $0xe58] sm:$0xff]
    %v589 = vld [vmem:[#allocation7 + $0xe60] sm:$0xff]
    %v590 = vld [vmem:[#allocation7 + $0xe68] sm:$0xff]
    %v591 = vld [vmem:[#allocation7 + $0xe70] sm:$0xff]
    %v592 = vld [vmem:[#allocation7 + $0xe78] sm:$0xff]
    %v593 = vld [vmem:[#allocation7 + $0xe80] sm:$0xff]
    %v594 = vld [vmem:[#allocation7 + $0xe88] sm:$0xff]
    %v595 = vld [vmem:[#allocation7 + $0xe90] sm:$0xff]
    %v596 = vld [vmem:[#allocation7 + $0xe98] sm:$0xff]
    %v597 = vld [vmem:[#allocation7 + $0xea0] sm:$0xff]
    %v598 = vld [vmem:[#allocation7 + $0xea8] sm:$0xff]
    %v599 = vld [vmem:[#allocation7 + $0xeb0] sm:$0xff]
    %v600 = vld [vmem:[#allocation7 + $0xeb8] sm:$0xff]
    %v601 = vld [vmem:[#allocation7 + $0xec0] sm:$0xff]
    %v602 = vld [vmem:[#allocation7 + $0xec8] sm:$0xff]
    %v603 = vld [vmem:[#allocation7 + $0xed0] sm:$0xff]
    %v604 = vld [vmem:[#allocation7 + $0xed8] sm:$0xff]
    %v605 = vld [vmem:[#allocation7 + $0xee0] sm:$0xff]
    %v606 = vld [vmem:[#allocation7 + $0xee8] sm:$0xff]
    %v607 = vld [vmem:[#allocation7 + $0xef0] sm:$0xff]
    %v608 = vld [vmem:[#allocation7 + $0xef8] sm:$0xff]
    %v609 = vld [vmem:[#allocation7 + $0xf00] sm:$0xff]
    %v610 = vld [vmem:[#allocation7 + $0xf08] sm:$0xff]
    %v611 = vld [vmem:[#allocation7 + $0xf10] sm:$0xff]
    %v612 = vld [vmem:[#allocation7 + $0xf18] sm:$0xff]
    %v613 = vld [vmem:[#allocation7 + $0xf20] sm:$0xff]
    %v614 = vld [vmem:[#allocation7 + $0xf28] sm:$0xff]
    %v615 = vld [vmem:[#allocation7 + $0xf30] sm:$0xff]
    %v616 = vld [vmem:[#allocation7 + $0xf38] sm:$0xff]
    %v617 = vld [vmem:[#allocation7 + $0xf40] sm:$0xff]
    %v618 = vld [vmem:[#allocation7 + $0xf48] sm:$0xff]
    %v619 = vld [vmem:[#allocation7 + $0xf50] sm:$0xff]
    %v620 = vld [vmem:[#allocation7 + $0xf58] sm:$0xff]
    %v621 = vld [vmem:[#allocation7 + $0xf60] sm:$0xff]
    %v622 = vld [vmem:[#allocation7 + $0xf68] sm:$0xff]
    %v623 = vld [vmem:[#allocation7 + $0xf70] sm:$0xff]
    %v624 = vld [vmem:[#allocation7 + $0xf78] sm:$0xff]
    %v625 = vld [vmem:[#allocation7 + $0xf80] sm:$0xff]
    %v626 = vld [vmem:[#allocation7 + $0xf88] sm:$0xff]
    %v627 = vld [vmem:[#allocation7 + $0xf90] sm:$0xff]
    %v628 = vld [vmem:[#allocation7 + $0xf98] sm:$0xff]
    %v629 = vld [vmem:[#allocation7 + $0xfa0] sm:$0xff]
    %v630 = vld [vmem:[#allocation7 + $0xfa8] sm:$0xff]
    %v631 = vld [vmem:[#allocation7 + $0xfb0] sm:$0xff]
    %v632 = vld [vmem:[#allocation7 + $0xfb8] sm:$0xff]
    %v633 = vld [vmem:[#allocation7 + $0xfc0] sm:$0xff]
    %v634 = vld [vmem:[#allocation7 + $0xfc8] sm:$0xff]
    %v635 = vld [vmem:[#allocation7 + $0xfd0] sm:$0xff]
    %v636 = vld [vmem:[#allocation7 + $0xfd8] sm:$0xff]
    %v637 = vld [vmem:[#allocation7 + $0xfe0] sm:$0xff]
    %v638 = vld [vmem:[#allocation7 + $0xfe8] sm:$0xff]
    %v639 = vld [vmem:[#allocation7 + $0xff0] sm:$0xff]
    %v640 = vld [vmem:[#allocation7 + $0xff8] sm:$0xff]
    %v641 = vld [vmem:[#allocation7 + $0x1000] sm:$0xff]
    %v642 = vld [vmem:[#allocation7 + $0x1008] sm:$0xff]
    %v643 = vld [vmem:[#allocation7 + $0x1010] sm:$0xff]
    %v644 = vld [vmem:[#allocation7 + $0x1018] sm:$0xff]
    %v645 = vld [vmem:[#allocation7 + $0x1020] sm:$0xff]
    %v646 = vld [vmem:[#allocation7 + $0x1028] sm:$0xff]
    %v647 = vld [vmem:[#allocation7 + $0x1030] sm:$0xff]
    %v648 = vld [vmem:[#allocation7 + $0x1038] sm:$0xff]
    %v649 = vld [vmem:[#allocation7 + $0x1040] sm:$0xff]
    %v650 = vld [vmem:[#allocation7 + $0x1048] sm:$0xff]
    %v651 = vld [vmem:[#allocation7 + $0x1050] sm:$0xff]
    %v652 = vld [vmem:[#allocation7 + $0x1058] sm:$0xff]
    %v653 = vld [vmem:[#allocation7 + $0x1060] sm:$0xff]
    %v654 = vld [vmem:[#allocation7 + $0x1068] sm:$0xff]
    %v655 = vld [vmem:[#allocation7 + $0x1070] sm:$0xff]
    %v656 = vld [vmem:[#allocation7 + $0x1078] sm:$0xff]
    %v657 = vld [vmem:[#allocation7 + $0x1080] sm:$0xff]
    %v658 = vld [vmem:[#allocation7 + $0x1088] sm:$0xff]
    %v659 = vld [vmem:[#allocation7 + $0x1090] sm:$0xff]
    %v660 = vld [vmem:[#allocation7 + $0x1098] sm:$0xff]
    %v661 = vld [vmem:[#allocation7 + $0x10a0] sm:$0xff]
    %v662 = vld [vmem:[#allocation7 + $0x10a8] sm:$0xff]
    %v663 = vld [vmem:[#allocation7 + $0x10b0] sm:$0xff]
    %v664 = vld [vmem:[#allocation7 + $0x10b8] sm:$0xff]
    %v665 = vld [vmem:[#allocation7 + $0x10c0] sm:$0xff]
    %v666 = vld [vmem:[#allocation7 + $0x10c8] sm:$0xff]
    %v667 = vld [vmem:[#allocation7 + $0x10d0] sm:$0xff]
    %v668 = vld [vmem:[#allocation7 + $0x10d8] sm:$0xff]
    %v669 = vld [vmem:[#allocation7 + $0x10e0] sm:$0xff]
    %v670 = vld [vmem:[#allocation7 + $0x10e8] sm:$0xff]
    %v671 = vld [vmem:[#allocation7 + $0x10f0] sm:$0xff]
    %v672 = vld [vmem:[#allocation7 + $0x10f8] sm:$0xff]
    %v673 = vld [vmem:[#allocation7 + $0x1100] sm:$0xff]
    %v674 = vld [vmem:[#allocation7 + $0x1108] sm:$0xff]
    %v675 = vld [vmem:[#allocation7 + $0x1110] sm:$0xff]
    %v676 = vld [vmem:[#allocation7 + $0x1118] sm:$0xff]
    %v677 = vld [vmem:[#allocation7 + $0x1120] sm:$0xff]
    %v678 = vld [vmem:[#allocation7 + $0x1128] sm:$0xff]
    %v679 = vld [vmem:[#allocation7 + $0x1130] sm:$0xff]
    %v680 = vld [vmem:[#allocation7 + $0x1138] sm:$0xff]
    %v681 = vld [vmem:[#allocation7 + $0x1140] sm:$0xff]
    %v682 = vld [vmem:[#allocation7 + $0x1148] sm:$0xff]
    %v683 = vld [vmem:[#allocation7 + $0x1150] sm:$0xff]
    %v684 = vld [vmem:[#allocation7 + $0x1158] sm:$0xff]
    %v685 = vld [vmem:[#allocation7 + $0x1160] sm:$0xff]
    %v686 = vld [vmem:[#allocation7 + $0x1168] sm:$0xff]
    %v687 = vld [vmem:[#allocation7 + $0x1170] sm:$0xff]
    %v688 = vld [vmem:[#allocation7 + $0x1178] sm:$0xff]
    %v689 = vld [vmem:[#allocation7 + $0x1180] sm:$0xff]
    %v690 = vld [vmem:[#allocation7 + $0x1188] sm:$0xff]
    %v691 = vld [vmem:[#allocation7 + $0x1190] sm:$0xff]
    %v692 = vld [vmem:[#allocation7 + $0x1198] sm:$0xff]
    %v693 = vld [vmem:[#allocation7 + $0x11a0] sm:$0xff]
    %v694 = vld [vmem:[#allocation7 + $0x11a8] sm:$0xff]
    %v695 = vld [vmem:[#allocation7 + $0x11b0] sm:$0xff]
    %v696 = vld [vmem:[#allocation7 + $0x11b8] sm:$0xff]
    %v697 = vld [vmem:[#allocation7 + $0x11c0] sm:$0xff]
    %v698 = vld [vmem:[#allocation7 + $0x11c8] sm:$0xff]
    %v699 = vld [vmem:[#allocation7 + $0x11d0] sm:$0xff]
    %v700 = vld [vmem:[#allocation7 + $0x11d8] sm:$0xff]
    %v701 = vld [vmem:[#allocation7 + $0x11e0] sm:$0xff]
    %v702 = vld [vmem:[#allocation7 + $0x11e8] sm:$0xff]
    %v703 = vld [vmem:[#allocation7 + $0x11f0] sm:$0xff]
    %v704 = vld [vmem:[#allocation7 + $0x11f8] sm:$0xff]
    %v705 = vld [vmem:[#allocation7 + $0x1200] sm:$0xff]
    %v706 = vld [vmem:[#allocation7 + $0x1208] sm:$0xff]
    %v707 = vld [vmem:[#allocation7 + $0x1210] sm:$0xff]
    %v708 = vld [vmem:[#allocation7 + $0x1218] sm:$0xff]
    %v709 = vld [vmem:[#allocation7 + $0x1220] sm:$0xff]
    %v710 = vld [vmem:[#allocation7 + $0x1228] sm:$0xff]
    %v711 = vld [vmem:[#allocation7 + $0x1230] sm:$0xff]
    %v712 = vld [vmem:[#allocation7 + $0x1238] sm:$0xff]
    %v713 = vld [vmem:[#allocation7 + $0x1240] sm:$0xff]
    %v714 = vld [vmem:[#allocation7 + $0x1248] sm:$0xff]
    %v715 = vld [vmem:[#allocation7 + $0x1250] sm:$0xff]
    %v716 = vld [vmem:[#allocation7 + $0x1258] sm:$0xff]
    %v717 = vld [vmem:[#allocation7 + $0x1260] sm:$0xff]
    %v718 = vld [vmem:[#allocation7 + $0x1268] sm:$0xff]
    %v719 = vld [vmem:[#allocation7 + $0x1270] sm:$0xff]
    %v720 = vld [vmem:[#allocation7 + $0x1278] sm:$0xff]
    %v721 = vld [vmem:[#allocation7 + $0x1280] sm:$0xff]
    %v722 = vld [vmem:[#allocation7 + $0x1288] sm:$0xff]
    %v723 = vld [vmem:[#allocation7 + $0x1290] sm:$0xff]
    %v724 = vld [vmem:[#allocation7 + $0x1298] sm:$0xff]
    %v725 = vld [vmem:[#allocation7 + $0x12a0] sm:$0xff]
    %v726 = vld [vmem:[#allocation7 + $0x12a8] sm:$0xff]
    %v727 = vld [vmem:[#allocation7 + $0x12b0] sm:$0xff]
    %v728 = vld [vmem:[#allocation7 + $0x12b8] sm:$0xff]
    %v729 = vld [vmem:[#allocation7 + $0x12c0] sm:$0xff]
    %v730 = vld [vmem:[#allocation7 + $0x12c8] sm:$0xff]
    %v731 = vld [vmem:[#allocation7 + $0x12d0] sm:$0xff]
    %v732 = vld [vmem:[#allocation7 + $0x12d8] sm:$0xff]
    %v733 = vld [vmem:[#allocation7 + $0x12e0] sm:$0xff]
    %v734 = vld [vmem:[#allocation7 + $0x12e8] sm:$0xff]
    %v735 = vld [vmem:[#allocation7 + $0x12f0] sm:$0xff]
    %v736 = vld [vmem:[#allocation7 + $0x12f8] sm:$0xff]
    %v737 = vld [vmem:[#allocation7 + $0x1300] sm:$0xff]
    %v738 = vld [vmem:[#allocation7 + $0x1308] sm:$0xff]
    %v739 = vld [vmem:[#allocation7 + $0x1310] sm:$0xff]
    %v740 = vld [vmem:[#allocation7 + $0x1318] sm:$0xff]
    %v741 = vld [vmem:[#allocation7 + $0x1320] sm:$0xff]
    %v742 = vld [vmem:[#allocation7 + $0x1328] sm:$0xff]
    %v743 = vld [vmem:[#allocation7 + $0x1330] sm:$0xff]
    %v744 = vld [vmem:[#allocation7 + $0x1338] sm:$0xff]
    %v745 = vld [vmem:[#allocation7 + $0x1340] sm:$0xff]
    %v746 = vld [vmem:[#allocation7 + $0x1348] sm:$0xff]
    %v747 = vld [vmem:[#allocation7 + $0x1350] sm:$0xff]
    %v748 = vld [vmem:[#allocation7 + $0x1358] sm:$0xff]
    %v749 = vld [vmem:[#allocation7 + $0x1360] sm:$0xff]
    %v750 = vld [vmem:[#allocation7 + $0x1368] sm:$0xff]
    %v751 = vld [vmem:[#allocation7 + $0x1370] sm:$0xff]
    %v752 = vld [vmem:[#allocation7 + $0x1378] sm:$0xff]
    %v753 = vld [vmem:[#allocation7 + $0x1380] sm:$0xff]
    %v754 = vld [vmem:[#allocation7 + $0x1388] sm:$0xff]
    %v755 = vld [vmem:[#allocation7 + $0x1390] sm:$0xff]
    %v756 = vld [vmem:[#allocation7 + $0x1398] sm:$0xff]
    %v757 = vld [vmem:[#allocation7 + $0x13a0] sm:$0xff]
    %v758 = vld [vmem:[#allocation7 + $0x13a8] sm:$0xff]
    %v759 = vld [vmem:[#allocation7 + $0x13b0] sm:$0xff]
    %v760 = vld [vmem:[#allocation7 + $0x13b8] sm:$0xff]
    %v761 = vld [vmem:[#allocation7 + $0x13c0] sm:$0xff]
    %v762 = vld [vmem:[#allocation7 + $0x13c8] sm:$0xff]
    %v763 = vld [vmem:[#allocation7 + $0x13d0] sm:$0xff]
    %v764 = vld [vmem:[#allocation7 + $0x13d8] sm:$0xff]
    %v765 = vld [vmem:[#allocation7 + $0x13e0] sm:$0xff]
    %v766 = vld [vmem:[#allocation7 + $0x13e8] sm:$0xff]
    %v767 = vld [vmem:[#allocation7 + $0x13f0] sm:$0xff]
    %v768 = vld [vmem:[#allocation7 + $0x13f8] sm:$0xff]
    %v769 = vld [vmem:[#allocation7 + $0x1400] sm:$0xff]
    %v770 = vld [vmem:[#allocation7 + $0x1408] sm:$0xff]
    %v771 = vld [vmem:[#allocation7 + $0x1410] sm:$0xff]
    %v772 = vld [vmem:[#allocation7 + $0x1418] sm:$0xff]
    %v773 = vld [vmem:[#allocation7 + $0x1420] sm:$0xff]
    %v774 = vld [vmem:[#allocation7 + $0x1428] sm:$0xff]
    %v775 = vld [vmem:[#allocation7 + $0x1430] sm:$0xff]
    %v776 = vld [vmem:[#allocation7 + $0x1438] sm:$0xff]
    %v777 = vld [vmem:[#allocation7 + $0x1440] sm:$0xff]
    %v778 = vld [vmem:[#allocation7 + $0x1448] sm:$0xff]
    %v779 = vld [vmem:[#allocation7 + $0x1450] sm:$0xff]
    %v780 = vld [vmem:[#allocation7 + $0x1458] sm:$0xff]
    %v781 = vld [vmem:[#allocation7 + $0x1460] sm:$0xff]
    %v782 = vld [vmem:[#allocation7 + $0x1468] sm:$0xff]
    %v783 = vld [vmem:[#allocation7 + $0x1470] sm:$0xff]
    %v784 = vld [vmem:[#allocation7 + $0x1478] sm:$0xff]
    %v785 = vld [vmem:[#allocation7 + $0x1480] sm:$0xff]
    %v786 = vld [vmem:[#allocation7 + $0x1488] sm:$0xff]
    %v787 = vld [vmem:[#allocation7 + $0x1490] sm:$0xff]
    %v788 = vld [vmem:[#allocation7 + $0x1498] sm:$0xff]
    %v789 = vld [vmem:[#allocation7 + $0x14a0] sm:$0xff]
    %v790 = vld [vmem:[#allocation7 + $0x14a8] sm:$0xff]
    %v791 = vld [vmem:[#allocation7 + $0x14b0] sm:$0xff]
    %v792 = vld [vmem:[#allocation7 + $0x14b8] sm:$0xff]
    %v793 = vld [vmem:[#allocation7 + $0x14c0] sm:$0xff]
    %v794 = vld [vmem:[#allocation7 + $0x14c8] sm:$0xff]
    %v795 = vld [vmem:[#allocation7 + $0x14d0] sm:$0xff]
    %v796 = vld [vmem:[#allocation7 + $0x14d8] sm:$0xff]
    %v797 = vld [vmem:[#allocation7 + $0x14e0] sm:$0xff]
    %v798 = vld [vmem:[#allocation7 + $0x14e8] sm:$0xff]
    %v799 = vld [vmem:[#allocation7 + $0x14f0] sm:$0xff]
    %v800 = vld [vmem:[#allocation7 + $0x14f8] sm:$0xff]
    %v801 = vld [vmem:[#allocation7 + $0x1500] sm:$0xff]
    %v802 = vld [vmem:[#allocation7 + $0x1508] sm:$0xff]
    %v803 = vld [vmem:[#allocation7 + $0x1510] sm:$0xff]
    %v804 = vld [vmem:[#allocation7 + $0x1518] sm:$0xff]
    %v805 = vld [vmem:[#allocation7 + $0x1520] sm:$0xff]
    %v806 = vld [vmem:[#allocation7 + $0x1528] sm:$0xff]
    %v807 = vld [vmem:[#allocation7 + $0x1530] sm:$0xff]
    %v808 = vld [vmem:[#allocation7 + $0x1538] sm:$0xff]
    %v809 = vld [vmem:[#allocation7 + $0x1540] sm:$0xff]
    %v810 = vld [vmem:[#allocation7 + $0x1548] sm:$0xff]
    %v811 = vld [vmem:[#allocation7 + $0x1550] sm:$0xff]
    %v812 = vld [vmem:[#allocation7 + $0x1558] sm:$0xff]
    %v813 = vld [vmem:[#allocation7 + $0x1560] sm:$0xff]
    %v814 = vld [vmem:[#allocation7 + $0x1568] sm:$0xff]
    %v815 = vld [vmem:[#allocation7 + $0x1570] sm:$0xff]
    %v816 = vld [vmem:[#allocation7 + $0x1578] sm:$0xff]
    %v817 = vld [vmem:[#allocation7 + $0x1580] sm:$0xff]
    %v818 = vld [vmem:[#allocation7 + $0x1588] sm:$0xff]
    %v819 = vld [vmem:[#allocation7 + $0x1590] sm:$0xff]
    %v820 = vld [vmem:[#allocation7 + $0x1598] sm:$0xff]
    %v821 = vld [vmem:[#allocation7 + $0x15a0] sm:$0xff]
    %v822 = vld [vmem:[#allocation7 + $0x15a8] sm:$0xff]
    %v823 = vld [vmem:[#allocation7 + $0x15b0] sm:$0xff]
    %v824 = vld [vmem:[#allocation7 + $0x15b8] sm:$0xff]
    %v825 = vld [vmem:[#allocation7 + $0x15c0] sm:$0xff]
    %v826 = vld [vmem:[#allocation7 + $0x15c8] sm:$0xff]
    %v827 = vld [vmem:[#allocation7 + $0x15d0] sm:$0xff]
    %v828 = vld [vmem:[#allocation7 + $0x15d8] sm:$0xff]
    %v829 = vld [vmem:[#allocation7 + $0x15e0] sm:$0xff]
    %v830 = vld [vmem:[#allocation7 + $0x15e8] sm:$0xff]
    %v831 = vld [vmem:[#allocation7 + $0x15f0] sm:$0xff]
    %v832 = vld [vmem:[#allocation7 + $0x15f8] sm:$0xff]
    %v833 = vld [vmem:[#allocation7 + $0x1600] sm:$0xff]
    %v834 = vld [vmem:[#allocation7 + $0x1608] sm:$0xff]
    %v835 = vld [vmem:[#allocation7 + $0x1610] sm:$0xff]
    %v836 = vld [vmem:[#allocation7 + $0x1618] sm:$0xff]
    %v837 = vld [vmem:[#allocation7 + $0x1620] sm:$0xff]
    %v838 = vld [vmem:[#allocation7 + $0x1628] sm:$0xff]
    %v839 = vld [vmem:[#allocation7 + $0x1630] sm:$0xff]
    %v840 = vld [vmem:[#allocation7 + $0x1638] sm:$0xff]
    %v841 = vld [vmem:[#allocation7 + $0x1640] sm:$0xff]
    %v842 = vld [vmem:[#allocation7 + $0x1648] sm:$0xff]
    %v843 = vld [vmem:[#allocation7 + $0x1650] sm:$0xff]
    %v844 = vld [vmem:[#allocation7 + $0x1658] sm:$0xff]
    %v845 = vld [vmem:[#allocation7 + $0x1660] sm:$0xff]
    %v846 = vld [vmem:[#allocation7 + $0x1668] sm:$0xff]
    %v847 = vld [vmem:[#allocation7 + $0x1670] sm:$0xff]
    %v848 = vld [vmem:[#allocation7 + $0x1678] sm:$0xff]
    %v849 = vld [vmem:[#allocation7 + $0x1680] sm:$0xff]
    %v850 = vld [vmem:[#allocation7 + $0x1688] sm:$0xff]
    %v851 = vld [vmem:[#allocation7 + $0x1690] sm:$0xff]
    %v852 = vld [vmem:[#allocation7 + $0x1698] sm:$0xff]
    %v853 = vld [vmem:[#allocation7 + $0x16a0] sm:$0xff]
    %v854 = vld [vmem:[#allocation7 + $0x16a8] sm:$0xff]
    %v855 = vld [vmem:[#allocation7 + $0x16b0] sm:$0xff]
    %v856 = vld [vmem:[#allocation7 + $0x16b8] sm:$0xff]
    %v857 = vld [vmem:[#allocation7 + $0x16c0] sm:$0xff]
    %v858 = vld [vmem:[#allocation7 + $0x16c8] sm:$0xff]
    %v859 = vld [vmem:[#allocation7 + $0x16d0] sm:$0xff]
    %v860 = vld [vmem:[#allocation7 + $0x16d8] sm:$0xff]
    %v861 = vld [vmem:[#allocation7 + $0x16e0] sm:$0xff]
    %v862 = vld [vmem:[#allocation7 + $0x16e8] sm:$0xff]
    %v863 = vld [vmem:[#allocation7 + $0x16f0] sm:$0xff]
    %v864 = vld [vmem:[#allocation7 + $0x16f8] sm:$0xff]
    %v865 = vld [vmem:[#allocation7 + $0x1700] sm:$0xff]
    %v866 = vld [vmem:[#allocation7 + $0x1708] sm:$0xff]
    %v867 = vld [vmem:[#allocation7 + $0x1710] sm:$0xff]
    %v868 = vld [vmem:[#allocation7 + $0x1718] sm:$0xff]
    %v869 = vld [vmem:[#allocation7 + $0x1720] sm:$0xff]
    %v870 = vld [vmem:[#allocation7 + $0x1728] sm:$0xff]
    %v871 = vld [vmem:[#allocation7 + $0x1730] sm:$0xff]
    %v872 = vld [vmem:[#allocation7 + $0x1738] sm:$0xff]
    %v873 = vld [vmem:[#allocation7 + $0x1740] sm:$0xff]
    %v874 = vld [vmem:[#allocation7 + $0x1748] sm:$0xff]
    %v875 = vld [vmem:[#allocation7 + $0x1750] sm:$0xff]
    %v876 = vld [vmem:[#allocation7 + $0x1758] sm:$0xff]
    %v877 = vld [vmem:[#allocation7 + $0x1760] sm:$0xff]
    %v878 = vld [vmem:[#allocation7 + $0x1768] sm:$0xff]
    %v879 = vld [vmem:[#allocation7 + $0x1770] sm:$0xff]
    %v880 = vld [vmem:[#allocation7 + $0x1778] sm:$0xff]
    %v881 = vld [vmem:[#allocation7 + $0x1780] sm:$0xff]
    %v882 = vld [vmem:[#allocation7 + $0x1788] sm:$0xff]
    %v883 = vld [vmem:[#allocation7 + $0x1790] sm:$0xff]
    %v884 = vld [vmem:[#allocation7 + $0x1798] sm:$0xff]
    %v885 = vld [vmem:[#allocation7 + $0x17a0] sm:$0xff]
    %v886 = vld [vmem:[#allocation7 + $0x17a8] sm:$0xff]
    %v887 = vld [vmem:[#allocation7 + $0x17b0] sm:$0xff]
    %v888 = vld [vmem:[#allocation7 + $0x17b8] sm:$0xff]
    %v889 = vld [vmem:[#allocation7 + $0x17c0] sm:$0xff]
    %v890 = vld [vmem:[#allocation7 + $0x17c8] sm:$0xff]
    %v891 = vld [vmem:[#allocation7 + $0x17d0] sm:$0xff]
    %v892 = vld [vmem:[#allocation7 + $0x17d8] sm:$0xff]
    %v893 = vld [vmem:[#allocation7 + $0x17e0] sm:$0xff]
    %v894 = vld [vmem:[#allocation7 + $0x17e8] sm:$0xff]
    %v895 = vld [vmem:[#allocation7 + $0x17f0] sm:$0xff]
    %v896 = vld [vmem:[#allocation7 + $0x17f8] sm:$0xff]
    %v897 = vld [vmem:[#allocation7 + $0x1800] sm:$0xff]
    %v898 = vld [vmem:[#allocation7 + $0x1808] sm:$0xff]
    %v899 = vld [vmem:[#allocation7 + $0x1810] sm:$0xff]
    %v900 = vld [vmem:[#allocation7 + $0x1818] sm:$0xff]
    %v901 = vld [vmem:[#allocation7 + $0x1820] sm:$0xff]
    %v902 = vld [vmem:[#allocation7 + $0x1828] sm:$0xff]
    %v903 = vld [vmem:[#allocation7 + $0x1830] sm:$0xff]
    %v904 = vld [vmem:[#allocation7 + $0x1838] sm:$0xff]
    %v905 = vld [vmem:[#allocation7 + $0x1840] sm:$0xff]
    %v906 = vld [vmem:[#allocation7 + $0x1848] sm:$0xff]
    %v907 = vld [vmem:[#allocation7 + $0x1850] sm:$0xff]
    %v908 = vld [vmem:[#allocation7 + $0x1858] sm:$0xff]
    %v909 = vld [vmem:[#allocation7 + $0x1860] sm:$0xff]
    %v910 = vld [vmem:[#allocation7 + $0x1868] sm:$0xff]
    %v911 = vld [vmem:[#allocation7 + $0x1870] sm:$0xff]
    %v912 = vld [vmem:[#allocation7 + $0x1878] sm:$0xff]
    %v913 = vld [vmem:[#allocation7 + $0x1880] sm:$0xff]
    %v914 = vld [vmem:[#allocation7 + $0x1888] sm:$0xff]
    %v915 = vld [vmem:[#allocation7 + $0x1890] sm:$0xff]
    %v916 = vld [vmem:[#allocation7 + $0x1898] sm:$0xff]
    %v917 = vld [vmem:[#allocation7 + $0x18a0] sm:$0xff]
    %v918 = vld [vmem:[#allocation7 + $0x18a8] sm:$0xff]
    %v919 = vld [vmem:[#allocation7 + $0x18b0] sm:$0xff]
    %v920 = vld [vmem:[#allocation7 + $0x18b8] sm:$0xff]
    %v921 = vld [vmem:[#allocation7 + $0x18c0] sm:$0xff]
    %v922 = vld [vmem:[#allocation7 + $0x18c8] sm:$0xff]
    %v923 = vld [vmem:[#allocation7 + $0x18d0] sm:$0xff]
    %v924 = vld [vmem:[#allocation7 + $0x18d8] sm:$0xff]
    %v925 = vld [vmem:[#allocation7 + $0x18e0] sm:$0xff]
    %v926 = vld [vmem:[#allocation7 + $0x18e8] sm:$0xff]
    %v927 = vld [vmem:[#allocation7 + $0x18f0] sm:$0xff]
    %v928 = vld [vmem:[#allocation7 + $0x18f8] sm:$0xff]
    %v929 = vld [vmem:[#allocation7 + $0x1900] sm:$0xff]
    %v930 = vld [vmem:[#allocation7 + $0x1908] sm:$0xff]
    %v931 = vld [vmem:[#allocation7 + $0x1910] sm:$0xff]
    %v932 = vld [vmem:[#allocation7 + $0x1918] sm:$0xff]
    %v933 = vld [vmem:[#allocation7 + $0x1920] sm:$0xff]
    %v934 = vld [vmem:[#allocation7 + $0x1928] sm:$0xff]
    %v935 = vld [vmem:[#allocation7 + $0x1930] sm:$0xff]
    %v936 = vld [vmem:[#allocation7 + $0x1938] sm:$0xff]
    %v937 = vld [vmem:[#allocation7 + $0x1940] sm:$0xff]
    %v938 = vld [vmem:[#allocation7 + $0x1948] sm:$0xff]
    %v939 = vld [vmem:[#allocation7 + $0x1950] sm:$0xff]
    %v940 = vld [vmem:[#allocation7 + $0x1958] sm:$0xff]
    %v941 = vld [vmem:[#allocation7 + $0x1960] sm:$0xff]
    %v942 = vld [vmem:[#allocation7 + $0x1968] sm:$0xff]
    %v943 = vld [vmem:[#allocation7 + $0x1970] sm:$0xff]
    %v944 = vld [vmem:[#allocation7 + $0x1978] sm:$0xff]
    %v945 = vld [vmem:[#allocation7 + $0x1980] sm:$0xff]
    %v946 = vld [vmem:[#allocation7 + $0x1988] sm:$0xff]
    %v947 = vld [vmem:[#allocation7 + $0x1990] sm:$0xff]
    %v948 = vld [vmem:[#allocation7 + $0x1998] sm:$0xff]
    %v949 = vld [vmem:[#allocation7 + $0x19a0] sm:$0xff]
    %v950 = vld [vmem:[#allocation7 + $0x19a8] sm:$0xff]
    %v951 = vld [vmem:[#allocation7 + $0x19b0] sm:$0xff]
    %v952 = vld [vmem:[#allocation7 + $0x19b8] sm:$0xff]
    %v953 = vld [vmem:[#allocation7 + $0x19c0] sm:$0xff]
    %v954 = vld [vmem:[#allocation7 + $0x19c8] sm:$0xff]
    %v955 = vld [vmem:[#allocation7 + $0x19d0] sm:$0xff]
    %v956 = vld [vmem:[#allocation7 + $0x19d8] sm:$0xff]
    %v957 = vld [vmem:[#allocation7 + $0x19e0] sm:$0xff]
    %v958 = vld [vmem:[#allocation7 + $0x19e8] sm:$0xff]
    %v959 = vld [vmem:[#allocation7 + $0x19f0] sm:$0xff]
    %v960 = vld [vmem:[#allocation7 + $0x19f8] sm:$0xff]
    %v961 = vld [vmem:[#allocation7 + $0x1a00] sm:$0xff]
    %v962 = vld [vmem:[#allocation7 + $0x1a08] sm:$0xff]
    %v963 = vld [vmem:[#allocation7 + $0x1a10] sm:$0xff]
    %v964 = vld [vmem:[#allocation7 + $0x1a18] sm:$0xff]
    %v965 = vld [vmem:[#allocation7 + $0x1a20] sm:$0xff]
    %v966 = vld [vmem:[#allocation7 + $0x1a28] sm:$0xff]
    %v967 = vld [vmem:[#allocation7 + $0x1a30] sm:$0xff]
    %v968 = vld [vmem:[#allocation7 + $0x1a38] sm:$0xff]
    %v969 = vld [vmem:[#allocation7 + $0x1a40] sm:$0xff]
    %v970 = vld [vmem:[#allocation7 + $0x1a48] sm:$0xff]
    %v971 = vld [vmem:[#allocation7 + $0x1a50] sm:$0xff]
    %v972 = vld [vmem:[#allocation7 + $0x1a58] sm:$0xff]
    %v973 = vld [vmem:[#allocation7 + $0x1a60] sm:$0xff]
    %v974 = vld [vmem:[#allocation7 + $0x1a68] sm:$0xff]
    %v975 = vld [vmem:[#allocation7 + $0x1a70] sm:$0xff]
    %v976 = vld [vmem:[#allocation7 + $0x1a78] sm:$0xff]
    %v977 = vld [vmem:[#allocation7 + $0x1a80] sm:$0xff]
    %v978 = vld [vmem:[#allocation7 + $0x1a88] sm:$0xff]
    %v979 = vld [vmem:[#allocation7 + $0x1a90] sm:$0xff]
    %v980 = vld [vmem:[#allocation7 + $0x1a98] sm:$0xff]
    %v981 = vld [vmem:[#allocation7 + $0x1aa0] sm:$0xff]
    %v982 = vld [vmem:[#allocation7 + $0x1aa8] sm:$0xff]
    %v983 = vld [vmem:[#allocation7 + $0x1ab0] sm:$0xff]
    %v984 = vld [vmem:[#allocation7 + $0x1ab8] sm:$0xff]
    %v985 = vld [vmem:[#allocation7 + $0x1ac0] sm:$0xff]
    %v986 = vld [vmem:[#allocation7 + $0x1ac8] sm:$0xff]
    %v987 = vld [vmem:[#allocation7 + $0x1ad0] sm:$0xff]
    %v988 = vld [vmem:[#allocation7 + $0x1ad8] sm:$0xff]
    %v989 = vld [vmem:[#allocation7 + $0x1ae0] sm:$0xff]
    %v990 = vld [vmem:[#allocation7 + $0x1ae8] sm:$0xff]
    %v991 = vld [vmem:[#allocation7 + $0x1af0] sm:$0xff]
    %v992 = vld [vmem:[#allocation7 + $0x1af8] sm:$0xff]
    %v993 = vld [vmem:[#allocation7 + $0x1b00] sm:$0xff]
    %v994 = vld [vmem:[#allocation7 + $0x1b08] sm:$0xff]
    %v995 = vld [vmem:[#allocation7 + $0x1b10] sm:$0xff]
    %v996 = vld [vmem:[#allocation7 + $0x1b18] sm:$0xff]
    %v997 = vld [vmem:[#allocation7 + $0x1b20] sm:$0xff]
    %v998 = vld [vmem:[#allocation7 + $0x1b28] sm:$0xff]
    %v999 = vld [vmem:[#allocation7 + $0x1b30] sm:$0xff]
    %v1000 = vld [vmem:[#allocation7 + $0x1b38] sm:$0xff]
    %v1001 = vld [vmem:[#allocation7 + $0x1b40] sm:$0xff]
    %v1002 = vld [vmem:[#allocation7 + $0x1b48] sm:$0xff]
    %v1003 = vld [vmem:[#allocation7 + $0x1b50] sm:$0xff]
    %v1004 = vld [vmem:[#allocation7 + $0x1b58] sm:$0xff]
    %v1005 = vld [vmem:[#allocation7 + $0x1b60] sm:$0xff]
    %v1006 = vld [vmem:[#allocation7 + $0x1b68] sm:$0xff]
    %v1007 = vld [vmem:[#allocation7 + $0x1b70] sm:$0xff]
    %v1008 = vld [vmem:[#allocation7 + $0x1b78] sm:$0xff]
    %v1009 = vld [vmem:[#allocation7 + $0x1b80] sm:$0xff]
    %v1010 = vld [vmem:[#allocation7 + $0x1b88] sm:$0xff]
    %v1011 = vld [vmem:[#allocation7 + $0x1b90] sm:$0xff]
    %v1012 = vld [vmem:[#allocation7 + $0x1b98] sm:$0xff]
    %v1013 = vld [vmem:[#allocation7 + $0x1ba0] sm:$0xff]
    %v1014 = vld [vmem:[#allocation7 + $0x1ba8] sm:$0xff]
    %v1015 = vld [vmem:[#allocation7 + $0x1bb0] sm:$0xff]
    %v1016 = vld [vmem:[#allocation7 + $0x1bb8] sm:$0xff]
    %v1017 = vld [vmem:[#allocation7 + $0x1bc0] sm:$0xff]
    %v1018 = vld [vmem:[#allocation7 + $0x1bc8] sm:$0xff]
    %v1019 = vld [vmem:[#allocation7 + $0x1bd0] sm:$0xff]
    %v1020 = vld [vmem:[#allocation7 + $0x1bd8] sm:$0xff]
    %v1021 = vld [vmem:[#allocation7 + $0x1be0] sm:$0xff]
    %v1022 = vld [vmem:[#allocation7 + $0x1be8] sm:$0xff]
    %v1023 = vld [vmem:[#allocation7 + $0x1bf0] sm:$0xff]
    %v1024 = vld [vmem:[#allocation7 + $0x1bf8] sm:$0xff]
    %v1025 = vld [vmem:[#allocation7 + $0x1c00] sm:$0xff]
    %v1026 = vld [vmem:[#allocation7 + $0x1c08] sm:$0xff]
    %v1027 = vld [vmem:[#allocation7 + $0x1c10] sm:$0xff]
    %v1028 = vld [vmem:[#allocation7 + $0x1c18] sm:$0xff]
    %v1029 = vld [vmem:[#allocation7 + $0x1c20] sm:$0xff]
    %v1030 = vld [vmem:[#allocation7 + $0x1c28] sm:$0xff]
    %v1031 = vld [vmem:[#allocation7 + $0x1c30] sm:$0xff]
    %v1032 = vld [vmem:[#allocation7 + $0x1c38] sm:$0xff]
    %v1033 = vld [vmem:[#allocation7 + $0x1c40] sm:$0xff]
    %v1034 = vld [vmem:[#allocation7 + $0x1c48] sm:$0xff]
    %v1035 = vld [vmem:[#allocation7 + $0x1c50] sm:$0xff]
    %v1036 = vld [vmem:[#allocation7 + $0x1c58] sm:$0xff]
    %v1037 = vld [vmem:[#allocation7 + $0x1c60] sm:$0xff]
    %v1038 = vld [vmem:[#allocation7 + $0x1c68] sm:$0xff]
    %v1039 = vld [vmem:[#allocation7 + $0x1c70] sm:$0xff]
    %v1040 = vld [vmem:[#allocation7 + $0x1c78] sm:$0xff]
    %v1041 = vld [vmem:[#allocation7 + $0x1c80] sm:$0xff]
    %v1042 = vld [vmem:[#allocation7 + $0x1c88] sm:$0xff]
    %v1043 = vld [vmem:[#allocation7 + $0x1c90] sm:$0xff]
    %v1044 = vld [vmem:[#allocation7 + $0x1c98] sm:$0xff]
    %v1045 = vld [vmem:[#allocation7 + $0x1ca0] sm:$0xff]
    %v1046 = vld [vmem:[#allocation7 + $0x1ca8] sm:$0xff]
    %v1047 = vld [vmem:[#allocation7 + $0x1cb0] sm:$0xff]
    %v1048 = vld [vmem:[#allocation7 + $0x1cb8] sm:$0xff]
    %v1049 = vld [vmem:[#allocation7 + $0x1cc0] sm:$0xff]
    %v1050 = vld [vmem:[#allocation7 + $0x1cc8] sm:$0xff]
    %v1051 = vld [vmem:[#allocation7 + $0x1cd0] sm:$0xff]
    %v1052 = vld [vmem:[#allocation7 + $0x1cd8] sm:$0xff]
    %v1053 = vld [vmem:[#allocation7 + $0x1ce0] sm:$0xff]
    %v1054 = vld [vmem:[#allocation7 + $0x1ce8] sm:$0xff]
    %v1055 = vld [vmem:[#allocation7 + $0x1cf0] sm:$0xff]
    %v1056 = vld [vmem:[#allocation7 + $0x1cf8] sm:$0xff]
    %v1057 = vld [vmem:[#allocation7 + $0x1d00] sm:$0xff]
    %v1058 = vld [vmem:[#allocation7 + $0x1d08] sm:$0xff]
    %v1059 = vld [vmem:[#allocation7 + $0x1d10] sm:$0xff]
    %v1060 = vld [vmem:[#allocation7 + $0x1d18] sm:$0xff]
    %v1061 = vld [vmem:[#allocation7 + $0x1d20] sm:$0xff]
    %v1062 = vld [vmem:[#allocation7 + $0x1d28] sm:$0xff]
    %v1063 = vld [vmem:[#allocation7 + $0x1d30] sm:$0xff]
    %v1064 = vld [vmem:[#allocation7 + $0x1d38] sm:$0xff]
    %v1065 = vld [vmem:[#allocation7 + $0x1d40] sm:$0xff]
    %v1066 = vld [vmem:[#allocation7 + $0x1d48] sm:$0xff]
    %v1067 = vld [vmem:[#allocation7 + $0x1d50] sm:$0xff]
    %v1068 = vld [vmem:[#allocation7 + $0x1d58] sm:$0xff]
    %v1069 = vld [vmem:[#allocation7 + $0x1d60] sm:$0xff]
    %v1070 = vld [vmem:[#allocation7 + $0x1d68] sm:$0xff]
    %v1071 = vld [vmem:[#allocation7 + $0x1d70] sm:$0xff]
    %v1072 = vld [vmem:[#allocation7 + $0x1d78] sm:$0xff]
    %v1073 = vld [vmem:[#allocation7 + $0x1d80] sm:$0xff]
    %v1074 = vld [vmem:[#allocation7 + $0x1d88] sm:$0xff]
    %v1075 = vld [vmem:[#allocation7 + $0x1d90] sm:$0xff]
    %v1076 = vld [vmem:[#allocation7 + $0x1d98] sm:$0xff]
    %v1077 = vld [vmem:[#allocation7 + $0x1da0] sm:$0xff]
    %v1078 = vld [vmem:[#allocation7 + $0x1da8] sm:$0xff]
    %v1079 = vld [vmem:[#allocation7 + $0x1db0] sm:$0xff]
    %v1080 = vld [vmem:[#allocation7 + $0x1db8] sm:$0xff]
    %v1081 = vld [vmem:[#allocation7 + $0x1dc0] sm:$0xff]
    %v1082 = vld [vmem:[#allocation7 + $0x1dc8] sm:$0xff]
    %v1083 = vld [vmem:[#allocation7 + $0x1dd0] sm:$0xff]
    %v1084 = vld [vmem:[#allocation7 + $0x1dd8] sm:$0xff]
    %v1085 = vld [vmem:[#allocation7 + $0x1de0] sm:$0xff]
    %v1086 = vld [vmem:[#allocation7 + $0x1de8] sm:$0xff]
    %v1087 = vld [vmem:[#allocation7 + $0x1df0] sm:$0xff]
    %v1088 = vld [vmem:[#allocation7 + $0x1df8] sm:$0xff]
    %v1089 = vld [vmem:[#allocation7 + $0x1e00] sm:$0xff]
    %v1090 = vld [vmem:[#allocation7 + $0x1e08] sm:$0xff]
    %v1091 = vld [vmem:[#allocation7 + $0x1e10] sm:$0xff]
    %v1092 = vld [vmem:[#allocation7 + $0x1e18] sm:$0xff]
    %v1093 = vld [vmem:[#allocation7 + $0x1e20] sm:$0xff]
    %v1094 = vld [vmem:[#allocation7 + $0x1e28] sm:$0xff]
    %v1095 = vld [vmem:[#allocation7 + $0x1e30] sm:$0xff]
    %v1096 = vld [vmem:[#allocation7 + $0x1e38] sm:$0xff]
    %v1097 = vld [vmem:[#allocation7 + $0x1e40] sm:$0xff]
    %v1098 = vld [vmem:[#allocation7 + $0x1e48] sm:$0xff]
    %v1099 = vld [vmem:[#allocation7 + $0x1e50] sm:$0xff]
    %v1100 = vld [vmem:[#allocation7 + $0x1e58] sm:$0xff]
    %v1101 = vld [vmem:[#allocation7 + $0x1e60] sm:$0xff]
    %v1102 = vld [vmem:[#allocation7 + $0x1e68] sm:$0xff]
    %v1103 = vld [vmem:[#allocation7 + $0x1e70] sm:$0xff]
    %v1104 = vld [vmem:[#allocation7 + $0x1e78] sm:$0xff]
    %v1105 = vld [vmem:[#allocation7 + $0x1e80] sm:$0xff]
    %v1106 = vld [vmem:[#allocation7 + $0x1e88] sm:$0xff]
    %v1107 = vld [vmem:[#allocation7 + $0x1e90] sm:$0xff]
    %v1108 = vld [vmem:[#allocation7 + $0x1e98] sm:$0xff]
    %v1109 = vld [vmem:[#allocation7 + $0x1ea0] sm:$0xff]
    %v1110 = vld [vmem:[#allocation7 + $0x1ea8] sm:$0xff]
    %v1111 = vld [vmem:[#allocation7 + $0x1eb0] sm:$0xff]
    %v1112 = vld [vmem:[#allocation7 + $0x1eb8] sm:$0xff]
    %v1113 = vld [vmem:[#allocation7 + $0x1ec0] sm:$0xff]
    %v1114 = vld [vmem:[#allocation7 + $0x1ec8] sm:$0xff]
    %v1115 = vld [vmem:[#allocation7 + $0x1ed0] sm:$0xff]
    %v1116 = vld [vmem:[#allocation7 + $0x1ed8] sm:$0xff]
    %v1117 = vld [vmem:[#allocation7 + $0x1ee0] sm:$0xff]
    %v1118 = vld [vmem:[#allocation7 + $0x1ee8] sm:$0xff]
    %v1119 = vld [vmem:[#allocation7 + $0x1ef0] sm:$0xff]
    %v1120 = vld [vmem:[#allocation7 + $0x1ef8] sm:$0xff]
    %v1121 = vld [vmem:[#allocation7 + $0x1f00] sm:$0xff]
    %v1122 = vld [vmem:[#allocation7 + $0x1f08] sm:$0xff]
    %v1123 = vld [vmem:[#allocation7 + $0x1f10] sm:$0xff]
    %v1124 = vld [vmem:[#allocation7 + $0x1f18] sm:$0xff]
    %v1125 = vld [vmem:[#allocation7 + $0x1f20] sm:$0xff]
    %v1126 = vld [vmem:[#allocation7 + $0x1f28] sm:$0xff]
    %v1127 = vld [vmem:[#allocation7 + $0x1f30] sm:$0xff]
    %v1128 = vld [vmem:[#allocation7 + $0x1f38] sm:$0xff]
    %v1129 = vld [vmem:[#allocation7 + $0x1f40] sm:$0xff]
    %v1130 = vld [vmem:[#allocation7 + $0x1f48] sm:$0xff]
    %v1131 = vld [vmem:[#allocation7 + $0x1f50] sm:$0xff]
    %v1132 = vld [vmem:[#allocation7 + $0x1f58] sm:$0xff]
    %v1133 = vld [vmem:[#allocation7 + $0x1f60] sm:$0xff]
    %v1134 = vld [vmem:[#allocation7 + $0x1f68] sm:$0xff]
    %v1135 = vld [vmem:[#allocation7 + $0x1f70] sm:$0xff]
    %v1136 = vld [vmem:[#allocation7 + $0x1f78] sm:$0xff]
    %v1137 = vld [vmem:[#allocation7 + $0x1f80] sm:$0xff]
    %v1138 = vld [vmem:[#allocation7 + $0x1f88] sm:$0xff]
    %v1139 = vld [vmem:[#allocation7 + $0x1f90] sm:$0xff]
    %v1140 = vld [vmem:[#allocation7 + $0x1f98] sm:$0xff]
    %v1141 = vld [vmem:[#allocation7 + $0x1fa0] sm:$0xff]
    %v1142 = vld [vmem:[#allocation7 + $0x1fa8] sm:$0xff]
    %v1143 = vld [vmem:[#allocation7 + $0x1fb0] sm:$0xff]
    %v1144 = vld [vmem:[#allocation7 + $0x1fb8] sm:$0xff]
    %v1145 = vld [vmem:[#allocation7 + $0x1fc0] sm:$0xff]
    %v1146 = vld [vmem:[#allocation7 + $0x1fc8] sm:$0xff]
    %v1147 = vld [vmem:[#allocation7 + $0x1fd0] sm:$0xff]
    %v1148 = vld [vmem:[#allocation7 + $0x1fd8] sm:$0xff]
    %v1149 = vld [vmem:[#allocation7 + $0x1fe0] sm:$0xff]
    %v1150 = vld [vmem:[#allocation7 + $0x1fe8] sm:$0xff]
    %v1151 = vld [vmem:[#allocation7 + $0x1ff0] sm:$0xff]
    %v1152 = vld [vmem:[#allocation7 + $0x1ff8] sm:$0xff]
    %v1153 = vld [vmem:[#allocation7 + $0x2000] sm:$0xff]
    %v1154 = vld [vmem:[#allocation7 + $0x2008] sm:$0xff]
    %v1155 = vld [vmem:[#allocation7 + $0x2010] sm:$0xff]
    %v1156 = vld [vmem:[#allocation7 + $0x2018] sm:$0xff]
    %v1157 = vld [vmem:[#allocation7 + $0x2020] sm:$0xff]
    %v1158 = vld [vmem:[#allocation7 + $0x2028] sm:$0xff]
    %v1159 = vld [vmem:[#allocation7 + $0x2030] sm:$0xff]
    %v1160 = vld [vmem:[#allocation7 + $0x2038] sm:$0xff]
    %v1161 = vld [vmem:[#allocation7 + $0x2040] sm:$0xff]
    %v1162 = vld [vmem:[#allocation7 + $0x2048] sm:$0xff]
    %v1163 = vld [vmem:[#allocation7 + $0x2050] sm:$0xff]
    %v1164 = vld [vmem:[#allocation7 + $0x2058] sm:$0xff]
    %v1165 = vld [vmem:[#allocation7 + $0x2060] sm:$0xff]
    %v1166 = vld [vmem:[#allocation7 + $0x2068] sm:$0xff]
    %v1167 = vld [vmem:[#allocation7 + $0x2070] sm:$0xff]
    %v1168 = vld [vmem:[#allocation7 + $0x2078] sm:$0xff]
    %v1169 = vld [vmem:[#allocation7 + $0x2080] sm:$0xff]
    %v1170 = vld [vmem:[#allocation7 + $0x2088] sm:$0xff]
    %v1171 = vld [vmem:[#allocation7 + $0x2090] sm:$0xff]
    %v1172 = vld [vmem:[#allocation7 + $0x2098] sm:$0xff]
    %v1173 = vld [vmem:[#allocation7 + $0x20a0] sm:$0xff]
    %v1174 = vld [vmem:[#allocation7 + $0x20a8] sm:$0xff]
    %v1175 = vld [vmem:[#allocation7 + $0x20b0] sm:$0xff]
    %v1176 = vld [vmem:[#allocation7 + $0x20b8] sm:$0xff]
    %v1177 = vld [vmem:[#allocation7 + $0x20c0] sm:$0xff]
    %v1178 = vld [vmem:[#allocation7 + $0x20c8] sm:$0xff]
    %v1179 = vld [vmem:[#allocation7 + $0x20d0] sm:$0xff]
    %v1180 = vld [vmem:[#allocation7 + $0x20d8] sm:$0xff]
    %v1181 = vld [vmem:[#allocation7 + $0x20e0] sm:$0xff]
    %v1182 = vld [vmem:[#allocation7 + $0x20e8] sm:$0xff]
    %v1183 = vld [vmem:[#allocation7 + $0x20f0] sm:$0xff]
    %v1184 = vld [vmem:[#allocation7 + $0x20f8] sm:$0xff]
    %v1185 = vld [vmem:[#allocation7 + $0x2100] sm:$0xff]
    %v1186 = vld [vmem:[#allocation7 + $0x2108] sm:$0xff]
    %v1187 = vld [vmem:[#allocation7 + $0x2110] sm:$0xff]
    %v1188 = vld [vmem:[#allocation7 + $0x2118] sm:$0xff]
    %v1189 = vld [vmem:[#allocation7 + $0x2120] sm:$0xff]
    %v1190 = vld [vmem:[#allocation7 + $0x2128] sm:$0xff]
    %v1191 = vld [vmem:[#allocation7 + $0x2130] sm:$0xff]
    %v1192 = vld [vmem:[#allocation7 + $0x2138] sm:$0xff]
    %v1193 = vld [vmem:[#allocation7 + $0x2140] sm:$0xff]
    %v1194 = vld [vmem:[#allocation7 + $0x2148] sm:$0xff]
    %v1195 = vld [vmem:[#allocation7 + $0x2150] sm:$0xff]
    %v1196 = vld [vmem:[#allocation7 + $0x2158] sm:$0xff]
    %v1197 = vld [vmem:[#allocation7 + $0x2160] sm:$0xff]
    %v1198 = vld [vmem:[#allocation7 + $0x2168] sm:$0xff]
    %v1199 = vld [vmem:[#allocation7 + $0x2170] sm:$0xff]
    %v1200 = vld [vmem:[#allocation7 + $0x2178] sm:$0xff]
    %v1201 = vld [vmem:[#allocation7 + $0x2180] sm:$0xff]
    %v1202 = vld [vmem:[#allocation7 + $0x2188] sm:$0xff]
    %v1203 = vld [vmem:[#allocation7 + $0x2190] sm:$0xff]
    %v1204 = vld [vmem:[#allocation7 + $0x2198] sm:$0xff]
    %v1205 = vld [vmem:[#allocation7 + $0x21a0] sm:$0xff]
    %v1206 = vld [vmem:[#allocation7 + $0x21a8] sm:$0xff]
    %v1207 = vld [vmem:[#allocation7 + $0x21b0] sm:$0xff]
    %v1208 = vld [vmem:[#allocation7 + $0x21b8] sm:$0xff]
    %v1209 = vld [vmem:[#allocation7 + $0x21c0] sm:$0xff]
    %v1210 = vld [vmem:[#allocation7 + $0x21c8] sm:$0xff]
    %v1211 = vld [vmem:[#allocation7 + $0x21d0] sm:$0xff]
    %v1212 = vld [vmem:[#allocation7 + $0x21d8] sm:$0xff]
    %v1213 = vld [vmem:[#allocation7 + $0x21e0] sm:$0xff]
    %v1214 = vld [vmem:[#allocation7 + $0x21e8] sm:$0xff]
    %v1215 = vld [vmem:[#allocation7 + $0x21f0] sm:$0xff]
    %v1216 = vld [vmem:[#allocation7 + $0x21f8] sm:$0xff]
    %v1217 = vld [vmem:[#allocation7 + $0x2200] sm:$0xff]
    %v1218 = vld [vmem:[#allocation7 + $0x2208] sm:$0xff]
    %v1219 = vld [vmem:[#allocation7 + $0x2210] sm:$0xff]
    %v1220 = vld [vmem:[#allocation7 + $0x2218] sm:$0xff]
    %v1221 = vld [vmem:[#allocation7 + $0x2220] sm:$0xff]
    %v1222 = vld [vmem:[#allocation7 + $0x2228] sm:$0xff]
    %v1223 = vld [vmem:[#allocation7 + $0x2230] sm:$0xff]
    %v1224 = vld [vmem:[#allocation7 + $0x2238] sm:$0xff]
    %v1225 = vld [vmem:[#allocation7 + $0x2240] sm:$0xff]
    %v1226 = vld [vmem:[#allocation7 + $0x2248] sm:$0xff]
    %v1227 = vld [vmem:[#allocation7 + $0x2250] sm:$0xff]
    %v1228 = vld [vmem:[#allocation7 + $0x2258] sm:$0xff]
    %v1229 = vld [vmem:[#allocation7 + $0x2260] sm:$0xff]
    %v1230 = vld [vmem:[#allocation7 + $0x2268] sm:$0xff]
    %v1231 = vld [vmem:[#allocation7 + $0x2270] sm:$0xff]
    %v1232 = vld [vmem:[#allocation7 + $0x2278] sm:$0xff]
    %v1233 = vld [vmem:[#allocation7 + $0x2280] sm:$0xff]
    %v1234 = vld [vmem:[#allocation7 + $0x2288] sm:$0xff]
    %v1235 = vld [vmem:[#allocation7 + $0x2290] sm:$0xff]
    %v1236 = vld [vmem:[#allocation7 + $0x2298] sm:$0xff]
    %v1237 = vld [vmem:[#allocation7 + $0x22a0] sm:$0xff]
    %v1238 = vld [vmem:[#allocation7 + $0x22a8] sm:$0xff]
    %v1239 = vld [vmem:[#allocation7 + $0x22b0] sm:$0xff]
    %v1240 = vld [vmem:[#allocation7 + $0x22b8] sm:$0xff]
    %v1241 = vld [vmem:[#allocation7 + $0x22c0] sm:$0xff]
    %v1242 = vld [vmem:[#allocation7 + $0x22c8] sm:$0xff]
    %v1243 = vld [vmem:[#allocation7 + $0x22d0] sm:$0xff]
    %v1244 = vld [vmem:[#allocation7 + $0x22d8] sm:$0xff]
    %v1245 = vld [vmem:[#allocation7 + $0x22e0] sm:$0xff]
    %v1246 = vld [vmem:[#allocation7 + $0x22e8] sm:$0xff]
    %v1247 = vld [vmem:[#allocation7 + $0x22f0] sm:$0xff]
    %v1248 = vld [vmem:[#allocation7 + $0x22f8] sm:$0xff]
    %v1249 = vld [vmem:[#allocation7 + $0x2300] sm:$0xff]
    %v1250 = vld [vmem:[#allocation7 + $0x2308] sm:$0xff]
    %v1251 = vld [vmem:[#allocation7 + $0x2310] sm:$0xff]
    %v1252 = vld [vmem:[#allocation7 + $0x2318] sm:$0xff]
    %v1253 = vld [vmem:[#allocation7 + $0x2320] sm:$0xff]
    %v1254 = vld [vmem:[#allocation7 + $0x2328] sm:$0xff]
    %v1255 = vld [vmem:[#allocation7 + $0x2330] sm:$0xff]
    %v1256 = vld [vmem:[#allocation7 + $0x2338] sm:$0xff]
    %v1257 = vld [vmem:[#allocation7 + $0x2340] sm:$0xff]
    %v1258 = vld [vmem:[#allocation7 + $0x2348] sm:$0xff]
    %v1259 = vld [vmem:[#allocation7 + $0x2350] sm:$0xff]
    %v1260 = vld [vmem:[#allocation7 + $0x2358] sm:$0xff]
    %v1261 = vld [vmem:[#allocation7 + $0x2360] sm:$0xff]
    %v1262 = vld [vmem:[#allocation7 + $0x2368] sm:$0xff]
    %v1263 = vld [vmem:[#allocation7 + $0x2370] sm:$0xff]
    %v1264 = vld [vmem:[#allocation7 + $0x2378] sm:$0xff]
    %v1265 = vld [vmem:[#allocation7 + $0x2380] sm:$0xff]
    %v1266 = vld [vmem:[#allocation7 + $0x2388] sm:$0xff]
    %v1267 = vld [vmem:[#allocation7 + $0x2390] sm:$0xff]
    %v1268 = vld [vmem:[#allocation7 + $0x2398] sm:$0xff]
    %v1269 = vld [vmem:[#allocation7 + $0x23a0] sm:$0xff]
    %v1270 = vld [vmem:[#allocation7 + $0x23a8] sm:$0xff]
    %v1271 = vld [vmem:[#allocation7 + $0x23b0] sm:$0xff]
    %v1272 = vld [vmem:[#allocation7 + $0x23b8] sm:$0xff]
    %v1273 = vld [vmem:[#allocation7 + $0x23c0] sm:$0xff]
    %v1274 = vld [vmem:[#allocation7 + $0x23c8] sm:$0xff]
    %v1275 = vld [vmem:[#allocation7 + $0x23d0] sm:$0xff]
    %v1276 = vld [vmem:[#allocation7 + $0x23d8] sm:$0xff]
    %v1277 = vld [vmem:[#allocation7 + $0x23e0] sm:$0xff]
    %v1278 = vld [vmem:[#allocation7 + $0x23e8] sm:$0xff]
    %v1279 = vld [vmem:[#allocation7 + $0x23f0] sm:$0xff]
    %v1280 = vld [vmem:[#allocation7 + $0x23f8] sm:$0xff]
    %v1281 = vld [vmem:[#allocation7 + $0x2400] sm:$0xff]
    %v1282 = vld [vmem:[#allocation7 + $0x2408] sm:$0xff]
    %v1283 = vld [vmem:[#allocation7 + $0x2410] sm:$0xff]
    %v1284 = vld [vmem:[#allocation7 + $0x2418] sm:$0xff]
    %v1285 = vld [vmem:[#allocation7 + $0x2420] sm:$0xff]
    %v1286 = vld [vmem:[#allocation7 + $0x2428] sm:$0xff]
    %v1287 = vld [vmem:[#allocation7 + $0x2430] sm:$0xff]
    %v1288 = vld [vmem:[#allocation7 + $0x2438] sm:$0xff]
    %v1289 = vld [vmem:[#allocation7 + $0x2440] sm:$0xff]
    %v1290 = vld [vmem:[#allocation7 + $0x2448] sm:$0xff]
    %v1291 = vld [vmem:[#allocation7 + $0x2450] sm:$0xff]
    %v1292 = vld [vmem:[#allocation7 + $0x2458] sm:$0xff]
    %v1293 = vld [vmem:[#allocation7 + $0x2460] sm:$0xff]
    %v1294 = vld [vmem:[#allocation7 + $0x2468] sm:$0xff]
    %v1295 = vld [vmem:[#allocation7 + $0x2470] sm:$0xff]
    %v1296 = vld [vmem:[#allocation7 + $0x2478] sm:$0xff]
    %v1297 = vld [vmem:[#allocation7 + $0x2480] sm:$0xff]
    %v1298 = vld [vmem:[#allocation7 + $0x2488] sm:$0xff]
    %v1299 = vld [vmem:[#allocation7 + $0x2490] sm:$0xff]
    %v1300 = vld [vmem:[#allocation7 + $0x2498] sm:$0xff]
    %v1301 = vld [vmem:[#allocation7 + $0x24a0] sm:$0xff]
    %v1302 = vld [vmem:[#allocation7 + $0x24a8] sm:$0xff]
    %v1303 = vld [vmem:[#allocation7 + $0x24b0] sm:$0xff]
    %v1304 = vld [vmem:[#allocation7 + $0x24b8] sm:$0xff]
    %vm1305 = vcmask 130048
    %v1307 = vsel %vm1305, %v128, 0
    %1309 = vmatprep.subr.mxu0 %v310
    %1310 = vmatpush1.msra.mxu0 %v309
    %1311 = vmatprep.subr.mxu0 %v298
    %1312 = vmatpush1.msra.mxu0 %v297
    %1313 = vmatprep.subr.mxu0 %v286
    %1314 = vmatpush1.msra.mxu0 %v285
    %1315 = vmatprep.subr.mxu0 %v274
    %1316 = vmatpush1.msra.mxu0 %v273
    %1317 = vmatprep.subr.mxu0 %v262
    %1318 = vmatpush1.msra.mxu0 %v261
    %1319 = vmatprep.subr.mxu0 %v250
    %1320 = vmatpush1.msra.mxu0 %v249
    %1321 = vmatprep.subr.mxu0 %v238
    %1322 = vmatpush1.msra.mxu0 %v237
    %1323 = vmatprep.subr.mxu0 %v226
    %1324 = vmatpush1.msra.mxu0 %v225
    %1325 = vmatprep.subr.mxu0 %v214
    %1326 = vmatpush1.msra.mxu0 %v213
    %1327 = vmatprep.subr.mxu0 %v202
    %1328 = vmatpush1.msra.mxu0 %v201
    %1329 = vmatprep.subr.mxu0 %v190
    %1330 = vmatpush1.msra.mxu0 %v189
    %1331 = vmatprep.subr.mxu0 %v178
    %1332 = vmatpush1.msra.mxu0 %v177
    %1333 = vmatprep.subr.mxu0 %v166
    %1334 = vmatpush1.msra.mxu0 %v165
    %1335 = vmatprep.subr.mxu0 %v154
    %1336 = vmatpush1.msra.mxu0 %v153
    %1337 = vmatprep.subr.mxu0 %v142
    %1338 = vmatpush1.msra.mxu0 %v141
    %1339 = vmatprep.subr.mxu0 %v130
    %1340 = vmatpush1.msra.mxu0 %v129
    %1341 = vmatprep.subr.mxu0 %v502
    %1342 = vmatpush2.msra.mxu0 %v501
    %1343 = vmatprep.subr.mxu0 %v490
    %1344 = vmatpush2.msra.mxu0 %v489
    %1345 = vmatprep.subr.mxu0 %v478
    %1346 = vmatpush2.msra.mxu0 %v477
    %1347 = vmatprep.subr.mxu0 %v466
    %1348 = vmatpush2.msra.mxu0 %v465
    %1349 = vmatprep.subr.mxu0 %v454
    %1350 = vmatpush2.msra.mxu0 %v453
    %1351 = vmatprep.subr.mxu0 %v442
    %1352 = vmatpush2.msra.mxu0 %v441
    %1353 = vmatprep.subr.mxu0 %v430
    %1354 = vmatpush2.msra.mxu0 %v429
    %1355 = vmatprep.subr.mxu0 %v418
    %1356 = vmatpush2.msra.mxu0 %v417
    %1357 = vmatprep.subr.mxu0 %v406
    %1358 = vmatpush2.msra.mxu0 %v405
    %1359 = vmatprep.subr.mxu0 %v394
    %1360 = vmatpush2.msra.mxu0 %v393
    %1361 = vmatprep.subr.mxu0 %v382
    %1362 = vmatpush2.msra.mxu0 %v381
    %1363 = vmatprep.subr.mxu0 %v370
    %1364 = vmatpush2.msra.mxu0 %v369
    %1365 = vmatprep.subr.mxu0 %v358
    %1366 = vmatpush2.msra.mxu0 %v357
    %1367 = vmatprep.subr.mxu0 %v346
    %1368 = vmatpush2.msra.mxu0 %v345
    %1369 = vmatprep.subr.mxu0 %v334
    %1370 = vmatpush2.msra.mxu0 %v333
    %1371 = vmatprep.subr.mxu0 %v322
    %1372 = vmatpush2.msra.mxu0 %v321
    %1373 = vmatprep.mubr.f32.mxu0 %v123
    %1374 = vmatmul.mubr.f32.gmra.mxu0 %v122
    %v1375 = vpop.f32.mrf.mxu0
    %v1376 = vadd.f32 0.0, %v1375
    %v1377 = vpop.f32.mrf.mxu0
    %v1378 = vadd.f32 0.0, %v1377
    %1379 = vdwg.mxu0
    %1380 = vmatprep.subr.mxu0 %v694
    %1381 = vmatpush1.msra.mxu0 %v693
    %1382 = vmatprep.subr.mxu0 %v682
    %1383 = vmatpush1.msra.mxu0 %v681
    %1384 = vmatprep.subr.mxu0 %v670
    %1385 = vmatpush1.msra.mxu0 %v669
    %1386 = vmatprep.subr.mxu0 %v658
    %1387 = vmatpush1.msra.mxu0 %v657
    %1388 = vmatprep.subr.mxu0 %v646
    %1389 = vmatpush1.msra.mxu0 %v645
    %1390 = vmatprep.subr.mxu0 %v634
    %1391 = vmatpush1.msra.mxu0 %v633
    %1392 = vmatprep.subr.mxu0 %v622
    %1393 = vmatpush1.msra.mxu0 %v621
    %1394 = vmatprep.subr.mxu0 %v610
    %1395 = vmatpush1.msra.mxu0 %v609
    %1396 = vmatprep.subr.mxu0 %v598
    %1397 = vmatpush1.msra.mxu0 %v597
    %1398 = vmatprep.subr.mxu0 %v586
    %1399 = vmatpush1.msra.mxu0 %v585
    %1400 = vmatprep.subr.mxu0 %v574
    %1401 = vmatpush1.msra.mxu0 %v573
    %1402 = vmatprep.subr.mxu0 %v562
    %1403 = vmatpush1.msra.mxu0 %v561
    %1404 = vmatprep.subr.mxu0 %v550
    %1405 = vmatpush1.msra.mxu0 %v549
    %1406 = vmatprep.subr.mxu0 %v538
    %1407 = vmatpush1.msra.mxu0 %v537
    %1408 = vmatprep.subr.mxu0 %v526
    %1409 = vmatpush1.msra.mxu0 %v525
    %1410 = vmatprep.subr.mxu0 %v514
    %1411 = vmatpush1.msra.mxu0 %v513
    %1412 = vmatprep.subr.mxu0 %v886
    %1413 = vmatpush2.msra.mxu0 %v885
    %1414 = vmatprep.subr.mxu0 %v874
    %1415 = vmatpush2.msra.mxu0 %v873
    %1416 = vmatprep.subr.mxu0 %v862
    %1417 = vmatpush2.msra.mxu0 %v861
    %1418 = vmatprep.subr.mxu0 %v850
    %1419 = vmatpush2.msra.mxu0 %v849
    %1420 = vmatprep.subr.mxu0 %v838
    %1421 = vmatpush2.msra.mxu0 %v837
    %1422 = vmatprep.subr.mxu0 %v826
    %1423 = vmatpush2.msra.mxu0 %v825
    %1424 = vmatprep.subr.mxu0 %v814
    %1425 = vmatpush2.msra.mxu0 %v813
    %1426 = vmatprep.subr.mxu0 %v802
    %1427 = vmatpush2.msra.mxu0 %v801
    %1428 = vmatprep.subr.mxu0 %v790
    %1429 = vmatpush2.msra.mxu0 %v789
    %1430 = vmatprep.subr.mxu0 %v778
    %1431 = vmatpush2.msra.mxu0 %v777
    %1432 = vmatprep.subr.mxu0 %v766
    %1433 = vmatpush2.msra.mxu0 %v765
    %1434 = vmatprep.subr.mxu0 %v754
    %1435 = vmatpush2.msra.mxu0 %v753
    %1436 = vmatprep.subr.mxu0 %v742
    %1437 = vmatpush2.msra.mxu0 %v741
    %1438 = vmatprep.subr.mxu0 %v730
    %1439 = vmatpush2.msra.mxu0 %v729
    %1440 = vmatprep.subr.mxu0 %v718
    %1441 = vmatpush2.msra.mxu0 %v717
    %1442 = vmatprep.subr.mxu0 %v706
    %1443 = vmatpush2.msra.mxu0 %v705
    %1444 = vmatprep.mubr.f32.mxu0 %v125
    %1445 = vmatmul.mubr.f32.gmra.mxu0 %v124
    %v1446 = vpop.f32.mrf.mxu0
    %v1447 = vadd.f32 %v1376, %v1446
    %v1448 = vpop.f32.mrf.mxu0
    %v1449 = vadd.f32 %v1378, %v1448
    %1450 = vdwg.mxu0
    %1451 = vmatprep.subr.mxu0 %v1078
    %1452 = vmatpush1.msra.mxu0 %v1077
    %1453 = vmatprep.subr.mxu0 %v1066
    %1454 = vmatpush1.msra.mxu0 %v1065
    %1455 = vmatprep.subr.mxu0 %v1054
    %1456 = vmatpush1.msra.mxu0 %v1053
    %1457 = vmatprep.subr.mxu0 %v1042
    %1458 = vmatpush1.msra.mxu0 %v1041
    %1459 = vmatprep.subr.mxu0 %v1030
    %1460 = vmatpush1.msra.mxu0 %v1029
    %1461 = vmatprep.subr.mxu0 %v1018
    %1462 = vmatpush1.msra.mxu0 %v1017
    %1463 = vmatprep.subr.mxu0 %v1006
    %1464 = vmatpush1.msra.mxu0 %v1005
    %1465 = vmatprep.subr.mxu0 %v994
    %1466 = vmatpush1.msra.mxu0 %v993
    %1467 = vmatprep.subr.mxu0 %v982
    %1468 = vmatpush1.msra.mxu0 %v981
    %1469 = vmatprep.subr.mxu0 %v970
    %1470 = vmatpush1.msra.mxu0 %v969
    %1471 = vmatprep.subr.mxu0 %v958
    %1472 = vmatpush1.msra.mxu0 %v957
    %1473 = vmatprep.subr.mxu0 %v946
    %1474 = vmatpush1.msra.mxu0 %v945
    %1475 = vmatprep.subr.mxu0 %v934
    %1476 = vmatpush1.msra.mxu0 %v933
    %1477 = vmatprep.subr.mxu0 %v922
    %1478 = vmatpush1.msra.mxu0 %v921
    %1479 = vmatprep.subr.mxu0 %v910
    %1480 = vmatpush1.msra.mxu0 %v909
    %1481 = vmatprep.subr.mxu0 %v898
    %1482 = vmatpush1.msra.mxu0 %v897
    %1483 = vmatprep.subr.mxu0 %v1270
    %1484 = vmatpush2.msra.mxu0 %v1269
    %1485 = vmatprep.subr.mxu0 %v1258
    %1486 = vmatpush2.msra.mxu0 %v1257
    %1487 = vmatprep.subr.mxu0 %v1246
    %1488 = vmatpush2.msra.mxu0 %v1245
    %1489 = vmatprep.subr.mxu0 %v1234
    %1490 = vmatpush2.msra.mxu0 %v1233
    %1491 = vmatprep.subr.mxu0 %v1222
    %1492 = vmatpush2.msra.mxu0 %v1221
    %1493 = vmatprep.subr.mxu0 %v1210
    %1494 = vmatpush2.msra.mxu0 %v1209
    %1495 = vmatprep.subr.mxu0 %v1198
    %1496 = vmatpush2.msra.mxu0 %v1197
    %1497 = vmatprep.subr.mxu0 %v1186
    %1498 = vmatpush2.msra.mxu0 %v1185
    %1499 = vmatprep.subr.mxu0 %v1174
    %1500 = vmatpush2.msra.mxu0 %v1173
    %1501 = vmatprep.subr.mxu0 %v1162
    %1502 = vmatpush2.msra.mxu0 %v1161
    %1503 = vmatprep.subr.mxu0 %v1150
    %1504 = vmatpush2.msra.mxu0 %v1149
    %1505 = vmatprep.subr.mxu0 %v1138
    %1506 = vmatpush2.msra.mxu0 %v1137
    %1507 = vmatprep.subr.mxu0 %v1126
    %1508 = vmatpush2.msra.mxu0 %v1125
    %1509 = vmatprep.subr.mxu0 %v1114
    %1510 = vmatpush2.msra.mxu0 %v1113
    %1511 = vmatprep.subr.mxu0 %v1102
    %1512 = vmatpush2.msra.mxu0 %v1101
    %1513 = vmatprep.subr.mxu0 %v1090
    %1514 = vmatpush2.msra.mxu0 %v1089
    %1515 = vmatprep.mubr.f32.mxu0 %v127
    %1516 = vmatmul.mubr.f32.gmra.mxu0 %v126
    %v1517 = vpop.f32.mrf.mxu0
    %v1518 = vadd.f32 %v1447, %v1517
    %v1519 = vpop.f32.mrf.mxu0
    %v1520 = vadd.f32 %v1449, %v1519
    %1521 = vdwg.mxu0
    %1522 = vmatprep.subr.mxu0 0.0
    %1523 = vmatpush1.msra.mxu0 0.0
    %1524 = vmatprep.subr.mxu0 0.0
    %1525 = vmatpush1.msra.mxu0 0.0
    %1526 = vmatprep.subr.mxu0 0.0
    %1527 = vmatpush1.msra.mxu0 0.0
    %1528 = vmatprep.subr.mxu0 0.0
    %1529 = vmatpush1.msra.mxu0 0.0
    %1530 = vmatprep.subr.mxu0 0.0
    %1531 = vmatpush1.msra.mxu0 0.0
    %1532 = vmatprep.subr.mxu0 0.0
    %1533 = vmatpush1.msra.mxu0 0.0
    %1534 = vmatprep.subr.mxu0 0.0
    %1535 = vmatpush1.msra.mxu0 0.0
    %1536 = vmatprep.subr.mxu0 0.0
    %1537 = vmatpush1.msra.mxu0 0.0
    %1538 = vmatprep.subr.mxu0 0.0
    %1539 = vmatpush1.msra.mxu0 0.0
    %1540 = vmatprep.subr.mxu0 0.0
    %1541 = vmatpush1.msra.mxu0 0.0
    %1542 = vmatprep.subr.mxu0 0.0
    %1543 = vmatpush1.msra.mxu0 0.0
    %1544 = vmatprep.subr.mxu0 0.0
    %1545 = vmatpush1.msra.mxu0 0.0
    %1546 = vmatprep.subr.mxu0 0.0
    %1547 = vmatpush1.msra.mxu0 0.0
    %1548 = vmatprep.subr.mxu0 0.0
    %1549 = vmatpush1.msra.mxu0 0.0
    %1550 = vmatprep.subr.mxu0 %v1294
    %1551 = vmatpush1.msra.mxu0 %v1293
    %1552 = vmatprep.subr.mxu0 %v1282
    %1553 = vmatpush1.msra.mxu0 %v1281
    %1554 = vmatprep.subr.mxu0 0.0
    %1555 = vmatpush2.msra.mxu0 0.0
    %1556 = vmatprep.subr.mxu0 0.0
    %1557 = vmatpush2.msra.mxu0 0.0
    %1558 = vmatprep.subr.mxu0 0.0
    %1559 = vmatpush2.msra.mxu0 0.0
    %1560 = vmatprep.subr.mxu0 0.0
    %1561 = vmatpush2.msra.mxu0 0.0
    %1562 = vmatprep.subr.mxu0 0.0
    %1563 = vmatpush2.msra.mxu0 0.0
    %1564 = vmatprep.subr.mxu0 0.0
    %1565 = vmatpush2.msra.mxu0 0.0
    %1566 = vmatprep.subr.mxu0 0.0
    %1567 = vmatpush2.msra.mxu0 0.0
    %1568 = vmatprep.subr.mxu0 0.0
    %1569 = vmatpush2.msra.mxu0 0.0
    %1570 = vmatprep.subr.mxu0 0.0
    %1571 = vmatpush2.msra.mxu0 0.0
    %1572 = vmatprep.subr.mxu0 0.0
    %1573 = vmatpush2.msra.mxu0 0.0
    %1574 = vmatprep.subr.mxu0 0.0
    %1575 = vmatpush2.msra.mxu0 0.0
    %1576 = vmatprep.subr.mxu0 0.0
    %1577 = vmatpush2.msra.mxu0 0.0
    %1578 = vmatprep.subr.mxu0 0.0
    %1579 = vmatpush2.msra.mxu0 0.0
    %1580 = vmatprep.subr.mxu0 0.0
    %1581 = vmatpush2.msra.mxu0 0.0
    %1582 = vmatprep.subr.mxu0 0.0
    %1583 = vmatpush2.msra.mxu0 0.0
    %1584 = vmatprep.subr.mxu0 0.0
    %1585 = vmatpush2.msra.mxu0 0.0
    %1586 = vmatprep.mubr.f32.mxu0 0.0
    %1587 = vmatmul.mubr.f32.gmra.mxu0 %v1307
    %v1588 = vpop.f32.mrf.mxu0
    %v1589 = vadd.f32 %v1518, %v1588
    %v1590 = vpop.f32.mrf.mxu0
    %v1591 = vadd.f32 %v1520, %v1590
    %1592 = vdwg.mxu0
    %1593 = vmatprep.subr.mxu0 %v312
    %1594 = vmatpush1.msra.mxu0 %v311
    %1595 = vmatprep.subr.mxu0 %v300
    %1596 = vmatpush1.msra.mxu0 %v299
    %1597 = vmatprep.subr.mxu0 %v288
    %1598 = vmatpush1.msra.mxu0 %v287
    %1599 = vmatprep.subr.mxu0 %v276
    %1600 = vmatpush1.msra.mxu0 %v275
    %1601 = vmatprep.subr.mxu0 %v264
    %1602 = vmatpush1.msra.mxu0 %v263
    %1603 = vmatprep.subr.mxu0 %v252
    %1604 = vmatpush1.msra.mxu0 %v251
    %1605 = vmatprep.subr.mxu0 %v240
    %1606 = vmatpush1.msra.mxu0 %v239
    %1607 = vmatprep.subr.mxu0 %v228
    %1608 = vmatpush1.msra.mxu0 %v227
    %1609 = vmatprep.subr.mxu0 %v216
    %1610 = vmatpush1.msra.mxu0 %v215
    %1611 = vmatprep.subr.mxu0 %v204
    %1612 = vmatpush1.msra.mxu0 %v203
    %1613 = vmatprep.subr.mxu0 %v192
    %1614 = vmatpush1.msra.mxu0 %v191
    %1615 = vmatprep.subr.mxu0 %v180
    %1616 = vmatpush1.msra.mxu0 %v179
    %1617 = vmatprep.subr.mxu0 %v168
    %1618 = vmatpush1.msra.mxu0 %v167
    %1619 = vmatprep.subr.mxu0 %v156
    %1620 = vmatpush1.msra.mxu0 %v155
    %1621 = vmatprep.subr.mxu0 %v144
    %1622 = vmatpush1.msra.mxu0 %v143
    %1623 = vmatprep.subr.mxu0 %v132
    %1624 = vmatpush1.msra.mxu0 %v131
    %1625 = vmatprep.subr.mxu0 %v504
    %1626 = vmatpush2.msra.mxu0 %v503
    %1627 = vmatprep.subr.mxu0 %v492
    %1628 = vmatpush2.msra.mxu0 %v491
    %1629 = vmatprep.subr.mxu0 %v480
    %1630 = vmatpush2.msra.mxu0 %v479
    %1631 = vmatprep.subr.mxu0 %v468
    %1632 = vmatpush2.msra.mxu0 %v467
    %1633 = vmatprep.subr.mxu0 %v456
    %1634 = vmatpush2.msra.mxu0 %v455
    %1635 = vmatprep.subr.mxu0 %v444
    %1636 = vmatpush2.msra.mxu0 %v443
    %1637 = vmatprep.subr.mxu0 %v432
    %1638 = vmatpush2.msra.mxu0 %v431
    %1639 = vmatprep.subr.mxu0 %v420
    %1640 = vmatpush2.msra.mxu0 %v419
    %1641 = vmatprep.subr.mxu0 %v408
    %1642 = vmatpush2.msra.mxu0 %v407
    %1643 = vmatprep.subr.mxu0 %v396
    %1644 = vmatpush2.msra.mxu0 %v395
    %1645 = vmatprep.subr.mxu0 %v384
    %1646 = vmatpush2.msra.mxu0 %v383
    %1647 = vmatprep.subr.mxu0 %v372
    %1648 = vmatpush2.msra.mxu0 %v371
    %1649 = vmatprep.subr.mxu0 %v360
    %1650 = vmatpush2.msra.mxu0 %v359
    %1651 = vmatprep.subr.mxu0 %v348
    %1652 = vmatpush2.msra.mxu0 %v347
    %1653 = vmatprep.subr.mxu0 %v336
    %1654 = vmatpush2.msra.mxu0 %v335
    %1655 = vmatprep.subr.mxu0 %v324
    %1656 = vmatpush2.msra.mxu0 %v323
    %1657 = vmatprep.mubr.f32.mxu0 %v123
    %1658 = vmatmul.mubr.f32.gmra.mxu0 %v122
    %v1659 = vpop.f32.mrf.mxu0
    %v1660 = vadd.f32 0.0, %v1659
    %v1661 = vpop.f32.mrf.mxu0
    %v1662 = vadd.f32 0.0, %v1661
    %1663 = vdwg.mxu0
    %1664 = vmatprep.subr.mxu0 %v696
    %1665 = vmatpush1.msra.mxu0 %v695
    %1666 = vmatprep.subr.mxu0 %v684
    %1667 = vmatpush1.msra.mxu0 %v683
    %1668 = vmatprep.subr.mxu0 %v672
    %1669 = vmatpush1.msra.mxu0 %v671
    %1670 = vmatprep.subr.mxu0 %v660
    %1671 = vmatpush1.msra.mxu0 %v659
    %1672 = vmatprep.subr.mxu0 %v648
    %1673 = vmatpush1.msra.mxu0 %v647
    %1674 = vmatprep.subr.mxu0 %v636
    %1675 = vmatpush1.msra.mxu0 %v635
    %1676 = vmatprep.subr.mxu0 %v624
    %1677 = vmatpush1.msra.mxu0 %v623
    %1678 = vmatprep.subr.mxu0 %v612
    %1679 = vmatpush1.msra.mxu0 %v611
    %1680 = vmatprep.subr.mxu0 %v600
    %1681 = vmatpush1.msra.mxu0 %v599
    %1682 = vmatprep.subr.mxu0 %v588
    %1683 = vmatpush1.msra.mxu0 %v587
    %1684 = vmatprep.subr.mxu0 %v576
    %1685 = vmatpush1.msra.mxu0 %v575
    %1686 = vmatprep.subr.mxu0 %v564
    %1687 = vmatpush1.msra.mxu0 %v563
    %1688 = vmatprep.subr.mxu0 %v552
    %1689 = vmatpush1.msra.mxu0 %v551
    %1690 = vmatprep.subr.mxu0 %v540
    %1691 = vmatpush1.msra.mxu0 %v539
    %1692 = vmatprep.subr.mxu0 %v528
    %1693 = vmatpush1.msra.mxu0 %v527
    %1694 = vmatprep.subr.mxu0 %v516
    %1695 = vmatpush1.msra.mxu0 %v515
    %1696 = vmatprep.subr.mxu0 %v888
    %1697 = vmatpush2.msra.mxu0 %v887
    %1698 = vmatprep.subr.mxu0 %v876
    %1699 = vmatpush2.msra.mxu0 %v875
    %1700 = vmatprep.subr.mxu0 %v864
    %1701 = vmatpush2.msra.mxu0 %v863
    %1702 = vmatprep.subr.mxu0 %v852
    %1703 = vmatpush2.msra.mxu0 %v851
    %1704 = vmatprep.subr.mxu0 %v840
    %1705 = vmatpush2.msra.mxu0 %v839
    %1706 = vmatprep.subr.mxu0 %v828
    %1707 = vmatpush2.msra.mxu0 %v827
    %1708 = vmatprep.subr.mxu0 %v816
    %1709 = vmatpush2.msra.mxu0 %v815
    %1710 = vmatprep.subr.mxu0 %v804
    %1711 = vmatpush2.msra.mxu0 %v803
    %1712 = vmatprep.subr.mxu0 %v792
    %1713 = vmatpush2.msra.mxu0 %v791
    %1714 = vmatprep.subr.mxu0 %v780
    %1715 = vmatpush2.msra.mxu0 %v779
    %1716 = vmatprep.subr.mxu0 %v768
    %1717 = vmatpush2.msra.mxu0 %v767
    %1718 = vmatprep.subr.mxu0 %v756
    %1719 = vmatpush2.msra.mxu0 %v755
    %1720 = vmatprep.subr.mxu0 %v744
    %1721 = vmatpush2.msra.mxu0 %v743
    %1722 = vmatprep.subr.mxu0 %v732
    %1723 = vmatpush2.msra.mxu0 %v731
    %1724 = vmatprep.subr.mxu0 %v720
    %1725 = vmatpush2.msra.mxu0 %v719
    %1726 = vmatprep.subr.mxu0 %v708
    %1727 = vmatpush2.msra.mxu0 %v707
    %1728 = vmatprep.mubr.f32.mxu0 %v125
    %1729 = vmatmul.mubr.f32.gmra.mxu0 %v124
    %v1730 = vpop.f32.mrf.mxu0
    %v1731 = vadd.f32 %v1660, %v1730
    %v1732 = vpop.f32.mrf.mxu0
    %v1733 = vadd.f32 %v1662, %v1732
    %1734 = vdwg.mxu0
    %1735 = vmatprep.subr.mxu0 %v1080
    %1736 = vmatpush1.msra.mxu0 %v1079
    %1737 = vmatprep.subr.mxu0 %v1068
    %1738 = vmatpush1.msra.mxu0 %v1067
    %1739 = vmatprep.subr.mxu0 %v1056
    %1740 = vmatpush1.msra.mxu0 %v1055
    %1741 = vmatprep.subr.mxu0 %v1044
    %1742 = vmatpush1.msra.mxu0 %v1043
    %1743 = vmatprep.subr.mxu0 %v1032
    %1744 = vmatpush1.msra.mxu0 %v1031
    %1745 = vmatprep.subr.mxu0 %v1020
    %1746 = vmatpush1.msra.mxu0 %v1019
    %1747 = vmatprep.subr.mxu0 %v1008
    %1748 = vmatpush1.msra.mxu0 %v1007
    %1749 = vmatprep.subr.mxu0 %v996
    %1750 = vmatpush1.msra.mxu0 %v995
    %1751 = vmatprep.subr.mxu0 %v984
    %1752 = vmatpush1.msra.mxu0 %v983
    %1753 = vmatprep.subr.mxu0 %v972
    %1754 = vmatpush1.msra.mxu0 %v971
    %1755 = vmatprep.subr.mxu0 %v960
    %1756 = vmatpush1.msra.mxu0 %v959
    %1757 = vmatprep.subr.mxu0 %v948
    %1758 = vmatpush1.msra.mxu0 %v947
    %1759 = vmatprep.subr.mxu0 %v936
    %1760 = vmatpush1.msra.mxu0 %v935
    %1761 = vmatprep.subr.mxu0 %v924
    %1762 = vmatpush1.msra.mxu0 %v923
    %1763 = vmatprep.subr.mxu0 %v912
    %1764 = vmatpush1.msra.mxu0 %v911
    %1765 = vmatprep.subr.mxu0 %v900
    %1766 = vmatpush1.msra.mxu0 %v899
    %1767 = vmatprep.subr.mxu0 %v1272
    %1768 = vmatpush2.msra.mxu0 %v1271
    %1769 = vmatprep.subr.mxu0 %v1260
    %1770 = vmatpush2.msra.mxu0 %v1259
    %1771 = vmatprep.subr.mxu0 %v1248
    %1772 = vmatpush2.msra.mxu0 %v1247
    %1773 = vmatprep.subr.mxu0 %v1236
    %1774 = vmatpush2.msra.mxu0 %v1235
    %1775 = vmatprep.subr.mxu0 %v1224
    %1776 = vmatpush2.msra.mxu0 %v1223
    %1777 = vmatprep.subr.mxu0 %v1212
    %1778 = vmatpush2.msra.mxu0 %v1211
    %1779 = vmatprep.subr.mxu0 %v1200
    %1780 = vmatpush2.msra.mxu0 %v1199
    %1781 = vmatprep.subr.mxu0 %v1188
    %1782 = vmatpush2.msra.mxu0 %v1187
    %1783 = vmatprep.subr.mxu0 %v1176
    %1784 = vmatpush2.msra.mxu0 %v1175
    %1785 = vmatprep.subr.mxu0 %v1164
    %1786 = vmatpush2.msra.mxu0 %v1163
    %1787 = vmatprep.subr.mxu0 %v1152
    %1788 = vmatpush2.msra.mxu0 %v1151
    %1789 = vmatprep.subr.mxu0 %v1140
    %1790 = vmatpush2.msra.mxu0 %v1139
    %1791 = vmatprep.subr.mxu0 %v1128
    %1792 = vmatpush2.msra.mxu0 %v1127
    %1793 = vmatprep.subr.mxu0 %v1116
    %1794 = vmatpush2.msra.mxu0 %v1115
    %1795 = vmatprep.subr.mxu0 %v1104
    %1796 = vmatpush2.msra.mxu0 %v1103
    %1797 = vmatprep.subr.mxu0 %v1092
    %1798 = vmatpush2.msra.mxu0 %v1091
    %1799 = vmatprep.mubr.f32.mxu0 %v127
    %1800 = vmatmul.mubr.f32.gmra.mxu0 %v126
    %v1801 = vpop.f32.mrf.mxu0
    %v1802 = vadd.f32 %v1731, %v1801
    %v1803 = vpop.f32.mrf.mxu0
    %v1804 = vadd.f32 %v1733, %v1803
    %1805 = vdwg.mxu0
    %1806 = vmatprep.subr.mxu0 0.0
    %1807 = vmatpush1.msra.mxu0 0.0
    %1808 = vmatprep.subr.mxu0 0.0
    %1809 = vmatpush1.msra.mxu0 0.0
    %1810 = vmatprep.subr.mxu0 0.0
    %1811 = vmatpush1.msra.mxu0 0.0
    %1812 = vmatprep.subr.mxu0 0.0
    %1813 = vmatpush1.msra.mxu0 0.0
    %1814 = vmatprep.subr.mxu0 0.0
    %1815 = vmatpush1.msra.mxu0 0.0
    %1816 = vmatprep.subr.mxu0 0.0
    %1817 = vmatpush1.msra.mxu0 0.0
    %1818 = vmatprep.subr.mxu0 0.0
    %1819 = vmatpush1.msra.mxu0 0.0
    %1820 = vmatprep.subr.mxu0 0.0
    %1821 = vmatpush1.msra.mxu0 0.0
    %1822 = vmatprep.subr.mxu0 0.0
    %1823 = vmatpush1.msra.mxu0 0.0
    %1824 = vmatprep.subr.mxu0 0.0
    %1825 = vmatpush1.msra.mxu0 0.0
    %1826 = vmatprep.subr.mxu0 0.0
    %1827 = vmatpush1.msra.mxu0 0.0
    %1828 = vmatprep.subr.mxu0 0.0
    %1829 = vmatpush1.msra.mxu0 0.0
    %1830 = vmatprep.subr.mxu0 0.0
    %1831 = vmatpush1.msra.mxu0 0.0
    %1832 = vmatprep.subr.mxu0 0.0
    %1833 = vmatpush1.msra.mxu0 0.0
    %1834 = vmatprep.subr.mxu0 %v1296
    %1835 = vmatpush1.msra.mxu0 %v1295
    %1836 = vmatprep.subr.mxu0 %v1284
    %1837 = vmatpush1.msra.mxu0 %v1283
    %1838 = vmatprep.subr.mxu0 0.0
    %1839 = vmatpush2.msra.mxu0 0.0
    %1840 = vmatprep.subr.mxu0 0.0
    %1841 = vmatpush2.msra.mxu0 0.0
    %1842 = vmatprep.subr.mxu0 0.0
    %1843 = vmatpush2.msra.mxu0 0.0
    %1844 = vmatprep.subr.mxu0 0.0
    %1845 = vmatpush2.msra.mxu0 0.0
    %1846 = vmatprep.subr.mxu0 0.0
    %1847 = vmatpush2.msra.mxu0 0.0
    %1848 = vmatprep.subr.mxu0 0.0
    %1849 = vmatpush2.msra.mxu0 0.0
    %1850 = vmatprep.subr.mxu0 0.0
    %1851 = vmatpush2.msra.mxu0 0.0
    %1852 = vmatprep.subr.mxu0 0.0
    %1853 = vmatpush2.msra.mxu0 0.0
    %1854 = vmatprep.subr.mxu0 0.0
    %1855 = vmatpush2.msra.mxu0 0.0
    %1856 = vmatprep.subr.mxu0 0.0
    %1857 = vmatpush2.msra.mxu0 0.0
    %1858 = vmatprep.subr.mxu0 0.0
    %1859 = vmatpush2.msra.mxu0 0.0
    %1860 = vmatprep.subr.mxu0 0.0
    %1861 = vmatpush2.msra.mxu0 0.0
    %1862 = vmatprep.subr.mxu0 0.0
    %1863 = vmatpush2.msra.mxu0 0.0
    %1864 = vmatprep.subr.mxu0 0.0
    %1865 = vmatpush2.msra.mxu0 0.0
    %1866 = vmatprep.subr.mxu0 0.0
    %1867 = vmatpush2.msra.mxu0 0.0
    %1868 = vmatprep.subr.mxu0 0.0
    %1869 = vmatpush2.msra.mxu0 0.0
    %1870 = vmatprep.mubr.f32.mxu0 0.0
    %1871 = vmatmul.mubr.f32.gmra.mxu0 %v1307
    %v1872 = vpop.f32.mrf.mxu0
    %v1873 = vadd.f32 %v1802, %v1872
    %v1874 = vpop.f32.mrf.mxu0
    %v1875 = vadd.f32 %v1804, %v1874
    %1876 = vdwg.mxu0
    %1877 = vmatprep.subr.mxu0 %v314
    %1878 = vmatpush1.msra.mxu0 %v313
    %1879 = vmatprep.subr.mxu0 %v302
    %1880 = vmatpush1.msra.mxu0 %v301
    %1881 = vmatprep.subr.mxu0 %v290
    %1882 = vmatpush1.msra.mxu0 %v289
    %1883 = vmatprep.subr.mxu0 %v278
    %1884 = vmatpush1.msra.mxu0 %v277
    %1885 = vmatprep.subr.mxu0 %v266
    %1886 = vmatpush1.msra.mxu0 %v265
    %1887 = vmatprep.subr.mxu0 %v254
    %1888 = vmatpush1.msra.mxu0 %v253
    %1889 = vmatprep.subr.mxu0 %v242
    %1890 = vmatpush1.msra.mxu0 %v241
    %1891 = vmatprep.subr.mxu0 %v230
    %1892 = vmatpush1.msra.mxu0 %v229
    %1893 = vmatprep.subr.mxu0 %v218
    %1894 = vmatpush1.msra.mxu0 %v217
    %1895 = vmatprep.subr.mxu0 %v206
    %1896 = vmatpush1.msra.mxu0 %v205
    %1897 = vmatprep.subr.mxu0 %v194
    %1898 = vmatpush1.msra.mxu0 %v193
    %1899 = vmatprep.subr.mxu0 %v182
    %1900 = vmatpush1.msra.mxu0 %v181
    %1901 = vmatprep.subr.mxu0 %v170
    %1902 = vmatpush1.msra.mxu0 %v169
    %1903 = vmatprep.subr.mxu0 %v158
    %1904 = vmatpush1.msra.mxu0 %v157
    %1905 = vmatprep.subr.mxu0 %v146
    %1906 = vmatpush1.msra.mxu0 %v145
    %1907 = vmatprep.subr.mxu0 %v134
    %1908 = vmatpush1.msra.mxu0 %v133
    %1909 = vmatprep.subr.mxu0 %v506
    %1910 = vmatpush2.msra.mxu0 %v505
    %1911 = vmatprep.subr.mxu0 %v494
    %1912 = vmatpush2.msra.mxu0 %v493
    %1913 = vmatprep.subr.mxu0 %v482
    %1914 = vmatpush2.msra.mxu0 %v481
    %1915 = vmatprep.subr.mxu0 %v470
    %1916 = vmatpush2.msra.mxu0 %v469
    %1917 = vmatprep.subr.mxu0 %v458
    %1918 = vmatpush2.msra.mxu0 %v457
    %1919 = vmatprep.subr.mxu0 %v446
    %1920 = vmatpush2.msra.mxu0 %v445
    %1921 = vmatprep.subr.mxu0 %v434
    %1922 = vmatpush2.msra.mxu0 %v433
    %1923 = vmatprep.subr.mxu0 %v422
    %1924 = vmatpush2.msra.mxu0 %v421
    %1925 = vmatprep.subr.mxu0 %v410
    %1926 = vmatpush2.msra.mxu0 %v409
    %1927 = vmatprep.subr.mxu0 %v398
    %1928 = vmatpush2.msra.mxu0 %v397
    %1929 = vmatprep.subr.mxu0 %v386
    %1930 = vmatpush2.msra.mxu0 %v385
    %1931 = vmatprep.subr.mxu0 %v374
    %1932 = vmatpush2.msra.mxu0 %v373
    %1933 = vmatprep.subr.mxu0 %v362
    %1934 = vmatpush2.msra.mxu0 %v361
    %1935 = vmatprep.subr.mxu0 %v350
    %1936 = vmatpush2.msra.mxu0 %v349
    %1937 = vmatprep.subr.mxu0 %v338
    %1938 = vmatpush2.msra.mxu0 %v337
    %1939 = vmatprep.subr.mxu0 %v326
    %1940 = vmatpush2.msra.mxu0 %v325
    %1941 = vmatprep.mubr.f32.mxu0 %v123
    %1942 = vmatmul.mubr.f32.gmra.mxu0 %v122
    %v1943 = vpop.f32.mrf.mxu0
    %v1944 = vadd.f32 0.0, %v1943
    %v1945 = vpop.f32.mrf.mxu0
    %v1946 = vadd.f32 0.0, %v1945
    %1947 = vdwg.mxu0
    %1948 = vmatprep.subr.mxu0 %v698
    %1949 = vmatpush1.msra.mxu0 %v697
    %1950 = vmatprep.subr.mxu0 %v686
    %1951 = vmatpush1.msra.mxu0 %v685
    %1952 = vmatprep.subr.mxu0 %v674
    %1953 = vmatpush1.msra.mxu0 %v673
    %1954 = vmatprep.subr.mxu0 %v662
    %1955 = vmatpush1.msra.mxu0 %v661
    %1956 = vmatprep.subr.mxu0 %v650
    %1957 = vmatpush1.msra.mxu0 %v649
    %1958 = vmatprep.subr.mxu0 %v638
    %1959 = vmatpush1.msra.mxu0 %v637
    %1960 = vmatprep.subr.mxu0 %v626
    %1961 = vmatpush1.msra.mxu0 %v625
    %1962 = vmatprep.subr.mxu0 %v614
    %1963 = vmatpush1.msra.mxu0 %v613
    %1964 = vmatprep.subr.mxu0 %v602
    %1965 = vmatpush1.msra.mxu0 %v601
    %1966 = vmatprep.subr.mxu0 %v590
    %1967 = vmatpush1.msra.mxu0 %v589
    %1968 = vmatprep.subr.mxu0 %v578
    %1969 = vmatpush1.msra.mxu0 %v577
    %1970 = vmatprep.subr.mxu0 %v566
    %1971 = vmatpush1.msra.mxu0 %v565
    %1972 = vmatprep.subr.mxu0 %v554
    %1973 = vmatpush1.msra.mxu0 %v553
    %1974 = vmatprep.subr.mxu0 %v542
    %1975 = vmatpush1.msra.mxu0 %v541
    %1976 = vmatprep.subr.mxu0 %v530
    %1977 = vmatpush1.msra.mxu0 %v529
    %1978 = vmatprep.subr.mxu0 %v518
    %1979 = vmatpush1.msra.mxu0 %v517
    %1980 = vmatprep.subr.mxu0 %v890
    %1981 = vmatpush2.msra.mxu0 %v889
    %1982 = vmatprep.subr.mxu0 %v878
    %1983 = vmatpush2.msra.mxu0 %v877
    %1984 = vmatprep.subr.mxu0 %v866
    %1985 = vmatpush2.msra.mxu0 %v865
    %1986 = vmatprep.subr.mxu0 %v854
    %1987 = vmatpush2.msra.mxu0 %v853
    %1988 = vmatprep.subr.mxu0 %v842
    %1989 = vmatpush2.msra.mxu0 %v841
    %1990 = vmatprep.subr.mxu0 %v830
    %1991 = vmatpush2.msra.mxu0 %v829
    %1992 = vmatprep.subr.mxu0 %v818
    %1993 = vmatpush2.msra.mxu0 %v817
    %1994 = vmatprep.subr.mxu0 %v806
    %1995 = vmatpush2.msra.mxu0 %v805
    %1996 = vmatprep.subr.mxu0 %v794
    %1997 = vmatpush2.msra.mxu0 %v793
    %1998 = vmatprep.subr.mxu0 %v782
    %1999 = vmatpush2.msra.mxu0 %v781
    %2000 = vmatprep.subr.mxu0 %v770
    %2001 = vmatpush2.msra.mxu0 %v769
    %2002 = vmatprep.subr.mxu0 %v758
    %2003 = vmatpush2.msra.mxu0 %v757
    %2004 = vmatprep.subr.mxu0 %v746
    %2005 = vmatpush2.msra.mxu0 %v745
    %2006 = vmatprep.subr.mxu0 %v734
    %2007 = vmatpush2.msra.mxu0 %v733
    %2008 = vmatprep.subr.mxu0 %v722
    %2009 = vmatpush2.msra.mxu0 %v721
    %2010 = vmatprep.subr.mxu0 %v710
    %2011 = vmatpush2.msra.mxu0 %v709
    %2012 = vmatprep.mubr.f32.mxu0 %v125
    %2013 = vmatmul.mubr.f32.gmra.mxu0 %v124
    %v2014 = vpop.f32.mrf.mxu0
    %v2015 = vadd.f32 %v1944, %v2014
    %v2016 = vpop.f32.mrf.mxu0
    %v2017 = vadd.f32 %v1946, %v2016
    %2018 = vdwg.mxu0
    %2019 = vmatprep.subr.mxu0 %v1082
    %2020 = vmatpush1.msra.mxu0 %v1081
    %2021 = vmatprep.subr.mxu0 %v1070
    %2022 = vmatpush1.msra.mxu0 %v1069
    %2023 = vmatprep.subr.mxu0 %v1058
    %2024 = vmatpush1.msra.mxu0 %v1057
    %2025 = vmatprep.subr.mxu0 %v1046
    %2026 = vmatpush1.msra.mxu0 %v1045
    %2027 = vmatprep.subr.mxu0 %v1034
    %2028 = vmatpush1.msra.mxu0 %v1033
    %2029 = vmatprep.subr.mxu0 %v1022
    %2030 = vmatpush1.msra.mxu0 %v1021
    %2031 = vmatprep.subr.mxu0 %v1010
    %2032 = vmatpush1.msra.mxu0 %v1009
    %2033 = vmatprep.subr.mxu0 %v998
    %2034 = vmatpush1.msra.mxu0 %v997
    %2035 = vmatprep.subr.mxu0 %v986
    %2036 = vmatpush1.msra.mxu0 %v985
    %2037 = vmatprep.subr.mxu0 %v974
    %2038 = vmatpush1.msra.mxu0 %v973
    %2039 = vmatprep.subr.mxu0 %v962
    %2040 = vmatpush1.msra.mxu0 %v961
    %2041 = vmatprep.subr.mxu0 %v950
    %2042 = vmatpush1.msra.mxu0 %v949
    %2043 = vmatprep.subr.mxu0 %v938
    %2044 = vmatpush1.msra.mxu0 %v937
    %2045 = vmatprep.subr.mxu0 %v926
    %2046 = vmatpush1.msra.mxu0 %v925
    %2047 = vmatprep.subr.mxu0 %v914
    %2048 = vmatpush1.msra.mxu0 %v913
    %2049 = vmatprep.subr.mxu0 %v902
    %2050 = vmatpush1.msra.mxu0 %v901
    %2051 = vmatprep.subr.mxu0 %v1274
    %2052 = vmatpush2.msra.mxu0 %v1273
    %2053 = vmatprep.subr.mxu0 %v1262
    %2054 = vmatpush2.msra.mxu0 %v1261
    %2055 = vmatprep.subr.mxu0 %v1250
    %2056 = vmatpush2.msra.mxu0 %v1249
    %2057 = vmatprep.subr.mxu0 %v1238
    %2058 = vmatpush2.msra.mxu0 %v1237
    %2059 = vmatprep.subr.mxu0 %v1226
    %2060 = vmatpush2.msra.mxu0 %v1225
    %2061 = vmatprep.subr.mxu0 %v1214
    %2062 = vmatpush2.msra.mxu0 %v1213
    %2063 = vmatprep.subr.mxu0 %v1202
    %2064 = vmatpush2.msra.mxu0 %v1201
    %2065 = vmatprep.subr.mxu0 %v1190
    %2066 = vmatpush2.msra.mxu0 %v1189
    %2067 = vmatprep.subr.mxu0 %v1178
    %2068 = vmatpush2.msra.mxu0 %v1177
    %2069 = vmatprep.subr.mxu0 %v1166
    %2070 = vmatpush2.msra.mxu0 %v1165
    %2071 = vmatprep.subr.mxu0 %v1154
    %2072 = vmatpush2.msra.mxu0 %v1153
    %2073 = vmatprep.subr.mxu0 %v1142
    %2074 = vmatpush2.msra.mxu0 %v1141
    %2075 = vmatprep.subr.mxu0 %v1130
    %2076 = vmatpush2.msra.mxu0 %v1129
    %2077 = vmatprep.subr.mxu0 %v1118
    %2078 = vmatpush2.msra.mxu0 %v1117
    %2079 = vmatprep.subr.mxu0 %v1106
    %2080 = vmatpush2.msra.mxu0 %v1105
    %2081 = vmatprep.subr.mxu0 %v1094
    %2082 = vmatpush2.msra.mxu0 %v1093
    %2083 = vmatprep.mubr.f32.mxu0 %v127
    %2084 = vmatmul.mubr.f32.gmra.mxu0 %v126
    %v2085 = vpop.f32.mrf.mxu0
    %v2086 = vadd.f32 %v2015, %v2085
    %v2087 = vpop.f32.mrf.mxu0
    %v2088 = vadd.f32 %v2017, %v2087
    %2089 = vdwg.mxu0
    %2090 = vmatprep.subr.mxu0 0.0
    %2091 = vmatpush1.msra.mxu0 0.0
    %2092 = vmatprep.subr.mxu0 0.0
    %2093 = vmatpush1.msra.mxu0 0.0
    %2094 = vmatprep.subr.mxu0 0.0
    %2095 = vmatpush1.msra.mxu0 0.0
    %2096 = vmatprep.subr.mxu0 0.0
    %2097 = vmatpush1.msra.mxu0 0.0
    %2098 = vmatprep.subr.mxu0 0.0
    %2099 = vmatpush1.msra.mxu0 0.0
    %2100 = vmatprep.subr.mxu0 0.0
    %2101 = vmatpush1.msra.mxu0 0.0
    %2102 = vmatprep.subr.mxu0 0.0
    %2103 = vmatpush1.msra.mxu0 0.0
    %2104 = vmatprep.subr.mxu0 0.0
    %2105 = vmatpush1.msra.mxu0 0.0
    %2106 = vmatprep.subr.mxu0 0.0
    %2107 = vmatpush1.msra.mxu0 0.0
    %2108 = vmatprep.subr.mxu0 0.0
    %2109 = vmatpush1.msra.mxu0 0.0
    %2110 = vmatprep.subr.mxu0 0.0
    %2111 = vmatpush1.msra.mxu0 0.0
    %2112 = vmatprep.subr.mxu0 0.0
    %2113 = vmatpush1.msra.mxu0 0.0
    %2114 = vmatprep.subr.mxu0 0.0
    %2115 = vmatpush1.msra.mxu0 0.0
    %2116 = vmatprep.subr.mxu0 0.0
    %2117 = vmatpush1.msra.mxu0 0.0
    %2118 = vmatprep.subr.mxu0 %v1298
    %2119 = vmatpush1.msra.mxu0 %v1297
    %2120 = vmatprep.subr.mxu0 %v1286
    %2121 = vmatpush1.msra.mxu0 %v1285
    %2122 = vmatprep.subr.mxu0 0.0
    %2123 = vmatpush2.msra.mxu0 0.0
    %2124 = vmatprep.subr.mxu0 0.0
    %2125 = vmatpush2.msra.mxu0 0.0
    %2126 = vmatprep.subr.mxu0 0.0
    %2127 = vmatpush2.msra.mxu0 0.0
    %2128 = vmatprep.subr.mxu0 0.0
    %2129 = vmatpush2.msra.mxu0 0.0
    %2130 = vmatprep.subr.mxu0 0.0
    %2131 = vmatpush2.msra.mxu0 0.0
    %2132 = vmatprep.subr.mxu0 0.0
    %2133 = vmatpush2.msra.mxu0 0.0
    %2134 = vmatprep.subr.mxu0 0.0
    %2135 = vmatpush2.msra.mxu0 0.0
    %2136 = vmatprep.subr.mxu0 0.0
    %2137 = vmatpush2.msra.mxu0 0.0
    %2138 = vmatprep.subr.mxu0 0.0
    %2139 = vmatpush2.msra.mxu0 0.0
    %2140 = vmatprep.subr.mxu0 0.0
    %2141 = vmatpush2.msra.mxu0 0.0
    %2142 = vmatprep.subr.mxu0 0.0
    %2143 = vmatpush2.msra.mxu0 0.0
    %2144 = vmatprep.subr.mxu0 0.0
    %2145 = vmatpush2.msra.mxu0 0.0
    %2146 = vmatprep.subr.mxu0 0.0
    %2147 = vmatpush2.msra.mxu0 0.0
    %2148 = vmatprep.subr.mxu0 0.0
    %2149 = vmatpush2.msra.mxu0 0.0
    %2150 = vmatprep.subr.mxu0 0.0
    %2151 = vmatpush2.msra.mxu0 0.0
    %2152 = vmatprep.subr.mxu0 0.0
    %2153 = vmatpush2.msra.mxu0 0.0
    %2154 = vmatprep.mubr.f32.mxu0 0.0
    %2155 = vmatmul.mubr.f32.gmra.mxu0 %v1307
    %v2156 = vpop.f32.mrf.mxu0
    %v2157 = vadd.f32 %v2086, %v2156
    %v2158 = vpop.f32.mrf.mxu0
    %v2159 = vadd.f32 %v2088, %v2158
    %2160 = vdwg.mxu0
    %2161 = vmatprep.subr.mxu0 %v316
    %2162 = vmatpush1.msra.mxu0 %v315
    %2163 = vmatprep.subr.mxu0 %v304
    %2164 = vmatpush1.msra.mxu0 %v303
    %2165 = vmatprep.subr.mxu0 %v292
    %2166 = vmatpush1.msra.mxu0 %v291
    %2167 = vmatprep.subr.mxu0 %v280
    %2168 = vmatpush1.msra.mxu0 %v279
    %2169 = vmatprep.subr.mxu0 %v268
    %2170 = vmatpush1.msra.mxu0 %v267
    %2171 = vmatprep.subr.mxu0 %v256
    %2172 = vmatpush1.msra.mxu0 %v255
    %2173 = vmatprep.subr.mxu0 %v244
    %2174 = vmatpush1.msra.mxu0 %v243
    %2175 = vmatprep.subr.mxu0 %v232
    %2176 = vmatpush1.msra.mxu0 %v231
    %2177 = vmatprep.subr.mxu0 %v220
    %2178 = vmatpush1.msra.mxu0 %v219
    %2179 = vmatprep.subr.mxu0 %v208
    %2180 = vmatpush1.msra.mxu0 %v207
    %2181 = vmatprep.subr.mxu0 %v196
    %2182 = vmatpush1.msra.mxu0 %v195
    %2183 = vmatprep.subr.mxu0 %v184
    %2184 = vmatpush1.msra.mxu0 %v183
    %2185 = vmatprep.subr.mxu0 %v172
    %2186 = vmatpush1.msra.mxu0 %v171
    %2187 = vmatprep.subr.mxu0 %v160
    %2188 = vmatpush1.msra.mxu0 %v159
    %2189 = vmatprep.subr.mxu0 %v148
    %2190 = vmatpush1.msra.mxu0 %v147
    %2191 = vmatprep.subr.mxu0 %v136
    %2192 = vmatpush1.msra.mxu0 %v135
    %2193 = vmatprep.subr.mxu0 %v508
    %2194 = vmatpush2.msra.mxu0 %v507
    %2195 = vmatprep.subr.mxu0 %v496
    %2196 = vmatpush2.msra.mxu0 %v495
    %2197 = vmatprep.subr.mxu0 %v484
    %2198 = vmatpush2.msra.mxu0 %v483
    %2199 = vmatprep.subr.mxu0 %v472
    %2200 = vmatpush2.msra.mxu0 %v471
    %2201 = vmatprep.subr.mxu0 %v460
    %2202 = vmatpush2.msra.mxu0 %v459
    %2203 = vmatprep.subr.mxu0 %v448
    %2204 = vmatpush2.msra.mxu0 %v447
    %2205 = vmatprep.subr.mxu0 %v436
    %2206 = vmatpush2.msra.mxu0 %v435
    %2207 = vmatprep.subr.mxu0 %v424
    %2208 = vmatpush2.msra.mxu0 %v423
    %2209 = vmatprep.subr.mxu0 %v412
    %2210 = vmatpush2.msra.mxu0 %v411
    %2211 = vmatprep.subr.mxu0 %v400
    %2212 = vmatpush2.msra.mxu0 %v399
    %2213 = vmatprep.subr.mxu0 %v388
    %2214 = vmatpush2.msra.mxu0 %v387
    %2215 = vmatprep.subr.mxu0 %v376
    %2216 = vmatpush2.msra.mxu0 %v375
    %2217 = vmatprep.subr.mxu0 %v364
    %2218 = vmatpush2.msra.mxu0 %v363
    %2219 = vmatprep.subr.mxu0 %v352
    %2220 = vmatpush2.msra.mxu0 %v351
    %2221 = vmatprep.subr.mxu0 %v340
    %2222 = vmatpush2.msra.mxu0 %v339
    %2223 = vmatprep.subr.mxu0 %v328
    %2224 = vmatpush2.msra.mxu0 %v327
    %2225 = vmatprep.mubr.f32.mxu0 %v123
    %2226 = vmatmul.mubr.f32.gmra.mxu0 %v122
    %v2227 = vpop.f32.mrf.mxu0
    %v2228 = vadd.f32 0.0, %v2227
    %v2229 = vpop.f32.mrf.mxu0
    %v2230 = vadd.f32 0.0, %v2229
    %2231 = vdwg.mxu0
    %2232 = vmatprep.subr.mxu0 %v700
    %2233 = vmatpush1.msra.mxu0 %v699
    %2234 = vmatprep.subr.mxu0 %v688
    %2235 = vmatpush1.msra.mxu0 %v687
    %2236 = vmatprep.subr.mxu0 %v676
    %2237 = vmatpush1.msra.mxu0 %v675
    %2238 = vmatprep.subr.mxu0 %v664
    %2239 = vmatpush1.msra.mxu0 %v663
    %2240 = vmatprep.subr.mxu0 %v652
    %2241 = vmatpush1.msra.mxu0 %v651
    %2242 = vmatprep.subr.mxu0 %v640
    %2243 = vmatpush1.msra.mxu0 %v639
    %2244 = vmatprep.subr.mxu0 %v628
    %2245 = vmatpush1.msra.mxu0 %v627
    %2246 = vmatprep.subr.mxu0 %v616
    %2247 = vmatpush1.msra.mxu0 %v615
    %2248 = vmatprep.subr.mxu0 %v604
    %2249 = vmatpush1.msra.mxu0 %v603
    %2250 = vmatprep.subr.mxu0 %v592
    %2251 = vmatpush1.msra.mxu0 %v591
    %2252 = vmatprep.subr.mxu0 %v580
    %2253 = vmatpush1.msra.mxu0 %v579
    %2254 = vmatprep.subr.mxu0 %v568
    %2255 = vmatpush1.msra.mxu0 %v567
    %2256 = vmatprep.subr.mxu0 %v556
    %2257 = vmatpush1.msra.mxu0 %v555
    %2258 = vmatprep.subr.mxu0 %v544
    %2259 = vmatpush1.msra.mxu0 %v543
    %2260 = vmatprep.subr.mxu0 %v532
    %2261 = vmatpush1.msra.mxu0 %v531
    %2262 = vmatprep.subr.mxu0 %v520
    %2263 = vmatpush1.msra.mxu0 %v519
    %2264 = vmatprep.subr.mxu0 %v892
    %2265 = vmatpush2.msra.mxu0 %v891
    %2266 = vmatprep.subr.mxu0 %v880
    %2267 = vmatpush2.msra.mxu0 %v879
    %2268 = vmatprep.subr.mxu0 %v868
    %2269 = vmatpush2.msra.mxu0 %v867
    %2270 = vmatprep.subr.mxu0 %v856
    %2271 = vmatpush2.msra.mxu0 %v855
    %2272 = vmatprep.subr.mxu0 %v844
    %2273 = vmatpush2.msra.mxu0 %v843
    %2274 = vmatprep.subr.mxu0 %v832
    %2275 = vmatpush2.msra.mxu0 %v831
    %2276 = vmatprep.subr.mxu0 %v820
    %2277 = vmatpush2.msra.mxu0 %v819
    %2278 = vmatprep.subr.mxu0 %v808
    %2279 = vmatpush2.msra.mxu0 %v807
    %2280 = vmatprep.subr.mxu0 %v796
    %2281 = vmatpush2.msra.mxu0 %v795
    %2282 = vmatprep.subr.mxu0 %v784
    %2283 = vmatpush2.msra.mxu0 %v783
    %2284 = vmatprep.subr.mxu0 %v772
    %2285 = vmatpush2.msra.mxu0 %v771
    %2286 = vmatprep.subr.mxu0 %v760
    %2287 = vmatpush2.msra.mxu0 %v759
    %2288 = vmatprep.subr.mxu0 %v748
    %2289 = vmatpush2.msra.mxu0 %v747
    %2290 = vmatprep.subr.mxu0 %v736
    %2291 = vmatpush2.msra.mxu0 %v735
    %2292 = vmatprep.subr.mxu0 %v724
    %2293 = vmatpush2.msra.mxu0 %v723
    %2294 = vmatprep.subr.mxu0 %v712
    %2295 = vmatpush2.msra.mxu0 %v711
    %2296 = vmatprep.mubr.f32.mxu0 %v125
    %2297 = vmatmul.mubr.f32.gmra.mxu0 %v124
    %v2298 = vpop.f32.mrf.mxu0
    %v2299 = vadd.f32 %v2228, %v2298
    %v2300 = vpop.f32.mrf.mxu0
    %v2301 = vadd.f32 %v2230, %v2300
    %2302 = vdwg.mxu0
    %2303 = vmatprep.subr.mxu0 %v1084
    %2304 = vmatpush1.msra.mxu0 %v1083
    %2305 = vmatprep.subr.mxu0 %v1072
    %2306 = vmatpush1.msra.mxu0 %v1071
    %2307 = vmatprep.subr.mxu0 %v1060
    %2308 = vmatpush1.msra.mxu0 %v1059
    %2309 = vmatprep.subr.mxu0 %v1048
    %2310 = vmatpush1.msra.mxu0 %v1047
    %2311 = vmatprep.subr.mxu0 %v1036
    %2312 = vmatpush1.msra.mxu0 %v1035
    %2313 = vmatprep.subr.mxu0 %v1024
    %2314 = vmatpush1.msra.mxu0 %v1023
    %2315 = vmatprep.subr.mxu0 %v1012
    %2316 = vmatpush1.msra.mxu0 %v1011
    %2317 = vmatprep.subr.mxu0 %v1000
    %2318 = vmatpush1.msra.mxu0 %v999
    %2319 = vmatprep.subr.mxu0 %v988
    %2320 = vmatpush1.msra.mxu0 %v987
    %2321 = vmatprep.subr.mxu0 %v976
    %2322 = vmatpush1.msra.mxu0 %v975
    %2323 = vmatprep.subr.mxu0 %v964
    %2324 = vmatpush1.msra.mxu0 %v963
    %2325 = vmatprep.subr.mxu0 %v952
    %2326 = vmatpush1.msra.mxu0 %v951
    %2327 = vmatprep.subr.mxu0 %v940
    %2328 = vmatpush1.msra.mxu0 %v939
    %2329 = vmatprep.subr.mxu0 %v928
    %2330 = vmatpush1.msra.mxu0 %v927
    %2331 = vmatprep.subr.mxu0 %v916
    %2332 = vmatpush1.msra.mxu0 %v915
    %2333 = vmatprep.subr.mxu0 %v904
    %2334 = vmatpush1.msra.mxu0 %v903
    %2335 = vmatprep.subr.mxu0 %v1276
    %2336 = vmatpush2.msra.mxu0 %v1275
    %2337 = vmatprep.subr.mxu0 %v1264
    %2338 = vmatpush2.msra.mxu0 %v1263
    %2339 = vmatprep.subr.mxu0 %v1252
    %2340 = vmatpush2.msra.mxu0 %v1251
    %2341 = vmatprep.subr.mxu0 %v1240
    %2342 = vmatpush2.msra.mxu0 %v1239
    %2343 = vmatprep.subr.mxu0 %v1228
    %2344 = vmatpush2.msra.mxu0 %v1227
    %2345 = vmatprep.subr.mxu0 %v1216
    %2346 = vmatpush2.msra.mxu0 %v1215
    %2347 = vmatprep.subr.mxu0 %v1204
    %2348 = vmatpush2.msra.mxu0 %v1203
    %2349 = vmatprep.subr.mxu0 %v1192
    %2350 = vmatpush2.msra.mxu0 %v1191
    %2351 = vmatprep.subr.mxu0 %v1180
    %2352 = vmatpush2.msra.mxu0 %v1179
    %2353 = vmatprep.subr.mxu0 %v1168
    %2354 = vmatpush2.msra.mxu0 %v1167
    %2355 = vmatprep.subr.mxu0 %v1156
    %2356 = vmatpush2.msra.mxu0 %v1155
    %2357 = vmatprep.subr.mxu0 %v1144
    %2358 = vmatpush2.msra.mxu0 %v1143
    %2359 = vmatprep.subr.mxu0 %v1132
    %2360 = vmatpush2.msra.mxu0 %v1131
    %2361 = vmatprep.subr.mxu0 %v1120
    %2362 = vmatpush2.msra.mxu0 %v1119
    %2363 = vmatprep.subr.mxu0 %v1108
    %2364 = vmatpush2.msra.mxu0 %v1107
    %2365 = vmatprep.subr.mxu0 %v1096
    %2366 = vmatpush2.msra.mxu0 %v1095
    %2367 = vmatprep.mubr.f32.mxu0 %v127
    %2368 = vmatmul.mubr.f32.gmra.mxu0 %v126
    %v2369 = vpop.f32.mrf.mxu0
    %v2370 = vadd.f32 %v2299, %v2369
    %v2371 = vpop.f32.mrf.mxu0
    %v2372 = vadd.f32 %v2301, %v2371
    %2373 = vdwg.mxu0
    %2374 = vmatprep.subr.mxu0 0.0
    %2375 = vmatpush1.msra.mxu0 0.0
    %2376 = vmatprep.subr.mxu0 0.0
    %2377 = vmatpush1.msra.mxu0 0.0
    %2378 = vmatprep.subr.mxu0 0.0
    %2379 = vmatpush1.msra.mxu0 0.0
    %2380 = vmatprep.subr.mxu0 0.0
    %2381 = vmatpush1.msra.mxu0 0.0
    %2382 = vmatprep.subr.mxu0 0.0
    %2383 = vmatpush1.msra.mxu0 0.0
    %2384 = vmatprep.subr.mxu0 0.0
    %2385 = vmatpush1.msra.mxu0 0.0
    %2386 = vmatprep.subr.mxu0 0.0
    %2387 = vmatpush1.msra.mxu0 0.0
    %2388 = vmatprep.subr.mxu0 0.0
    %2389 = vmatpush1.msra.mxu0 0.0
    %2390 = vmatprep.subr.mxu0 0.0
    %2391 = vmatpush1.msra.mxu0 0.0
    %2392 = vmatprep.subr.mxu0 0.0
    %2393 = vmatpush1.msra.mxu0 0.0
    %2394 = vmatprep.subr.mxu0 0.0
    %2395 = vmatpush1.msra.mxu0 0.0
    %2396 = vmatprep.subr.mxu0 0.0
    %2397 = vmatpush1.msra.mxu0 0.0
    %2398 = vmatprep.subr.mxu0 0.0
    %2399 = vmatpush1.msra.mxu0 0.0
    %2400 = vmatprep.subr.mxu0 0.0
    %2401 = vmatpush1.msra.mxu0 0.0
    %2402 = vmatprep.subr.mxu0 %v1300
    %2403 = vmatpush1.msra.mxu0 %v1299
    %2404 = vmatprep.subr.mxu0 %v1288
    %2405 = vmatpush1.msra.mxu0 %v1287
    %2406 = vmatprep.subr.mxu0 0.0
    %2407 = vmatpush2.msra.mxu0 0.0
    %2408 = vmatprep.subr.mxu0 0.0
    %2409 = vmatpush2.msra.mxu0 0.0
    %2410 = vmatprep.subr.mxu0 0.0
    %2411 = vmatpush2.msra.mxu0 0.0
    %2412 = vmatprep.subr.mxu0 0.0
    %2413 = vmatpush2.msra.mxu0 0.0
    %2414 = vmatprep.subr.mxu0 0.0
    %2415 = vmatpush2.msra.mxu0 0.0
    %2416 = vmatprep.subr.mxu0 0.0
    %2417 = vmatpush2.msra.mxu0 0.0
    %2418 = vmatprep.subr.mxu0 0.0
    %2419 = vmatpush2.msra.mxu0 0.0
    %2420 = vmatprep.subr.mxu0 0.0
    %2421 = vmatpush2.msra.mxu0 0.0
    %2422 = vmatprep.subr.mxu0 0.0
    %2423 = vmatpush2.msra.mxu0 0.0
    %2424 = vmatprep.subr.mxu0 0.0
    %2425 = vmatpush2.msra.mxu0 0.0
    %2426 = vmatprep.subr.mxu0 0.0
    %2427 = vmatpush2.msra.mxu0 0.0
    %2428 = vmatprep.subr.mxu0 0.0
    %2429 = vmatpush2.msra.mxu0 0.0
    %2430 = vmatprep.subr.mxu0 0.0
    %2431 = vmatpush2.msra.mxu0 0.0
    %2432 = vmatprep.subr.mxu0 0.0
    %2433 = vmatpush2.msra.mxu0 0.0
    %2434 = vmatprep.subr.mxu0 0.0
    %2435 = vmatpush2.msra.mxu0 0.0
    %2436 = vmatprep.subr.mxu0 0.0
    %2437 = vmatpush2.msra.mxu0 0.0
    %2438 = vmatprep.mubr.f32.mxu0 0.0
    %2439 = vmatmul.mubr.f32.gmra.mxu0 %v1307
    %v2440 = vpop.f32.mrf.mxu0
    %v2441 = vadd.f32 %v2370, %v2440
    %v2442 = vpop.f32.mrf.mxu0
    %v2443 = vadd.f32 %v2372, %v2442
    %2444 = vdwg.mxu0
    %2445 = vmatprep.subr.mxu0 %v318
    %2446 = vmatpush1.msra.mxu0 %v317
    %2447 = vmatprep.subr.mxu0 %v306
    %2448 = vmatpush1.msra.mxu0 %v305
    %2449 = vmatprep.subr.mxu0 %v294
    %2450 = vmatpush1.msra.mxu0 %v293
    %2451 = vmatprep.subr.mxu0 %v282
    %2452 = vmatpush1.msra.mxu0 %v281
    %2453 = vmatprep.subr.mxu0 %v270
    %2454 = vmatpush1.msra.mxu0 %v269
    %2455 = vmatprep.subr.mxu0 %v258
    %2456 = vmatpush1.msra.mxu0 %v257
    %2457 = vmatprep.subr.mxu0 %v246
    %2458 = vmatpush1.msra.mxu0 %v245
    %2459 = vmatprep.subr.mxu0 %v234
    %2460 = vmatpush1.msra.mxu0 %v233
    %2461 = vmatprep.subr.mxu0 %v222
    %2462 = vmatpush1.msra.mxu0 %v221
    %2463 = vmatprep.subr.mxu0 %v210
    %2464 = vmatpush1.msra.mxu0 %v209
    %2465 = vmatprep.subr.mxu0 %v198
    %2466 = vmatpush1.msra.mxu0 %v197
    %2467 = vmatprep.subr.mxu0 %v186
    %2468 = vmatpush1.msra.mxu0 %v185
    %2469 = vmatprep.subr.mxu0 %v174
    %2470 = vmatpush1.msra.mxu0 %v173
    %2471 = vmatprep.subr.mxu0 %v162
    %2472 = vmatpush1.msra.mxu0 %v161
    %2473 = vmatprep.subr.mxu0 %v150
    %2474 = vmatpush1.msra.mxu0 %v149
    %2475 = vmatprep.subr.mxu0 %v138
    %2476 = vmatpush1.msra.mxu0 %v137
    %2477 = vmatprep.subr.mxu0 %v510
    %2478 = vmatpush2.msra.mxu0 %v509
    %2479 = vmatprep.subr.mxu0 %v498
    %2480 = vmatpush2.msra.mxu0 %v497
    %2481 = vmatprep.subr.mxu0 %v486
    %2482 = vmatpush2.msra.mxu0 %v485
    %2483 = vmatprep.subr.mxu0 %v474
    %2484 = vmatpush2.msra.mxu0 %v473
    %2485 = vmatprep.subr.mxu0 %v462
    %2486 = vmatpush2.msra.mxu0 %v461
    %2487 = vmatprep.subr.mxu0 %v450
    %2488 = vmatpush2.msra.mxu0 %v449
    %2489 = vmatprep.subr.mxu0 %v438
    %2490 = vmatpush2.msra.mxu0 %v437
    %2491 = vmatprep.subr.mxu0 %v426
    %2492 = vmatpush2.msra.mxu0 %v425
    %2493 = vmatprep.subr.mxu0 %v414
    %2494 = vmatpush2.msra.mxu0 %v413
    %2495 = vmatprep.subr.mxu0 %v402
    %2496 = vmatpush2.msra.mxu0 %v401
    %2497 = vmatprep.subr.mxu0 %v390
    %2498 = vmatpush2.msra.mxu0 %v389
    %2499 = vmatprep.subr.mxu0 %v378
    %2500 = vmatpush2.msra.mxu0 %v377
    %2501 = vmatprep.subr.mxu0 %v366
    %2502 = vmatpush2.msra.mxu0 %v365
    %2503 = vmatprep.subr.mxu0 %v354
    %2504 = vmatpush2.msra.mxu0 %v353
    %2505 = vmatprep.subr.mxu0 %v342
    %2506 = vmatpush2.msra.mxu0 %v341
    %2507 = vmatprep.subr.mxu0 %v330
    %2508 = vmatpush2.msra.mxu0 %v329
    %2509 = vmatprep.mubr.f32.mxu0 %v123
    %2510 = vmatmul.mubr.f32.gmra.mxu0 %v122
    %v2511 = vpop.f32.mrf.mxu0
    %v2512 = vadd.f32 0.0, %v2511
    %v2513 = vpop.f32.mrf.mxu0
    %v2514 = vadd.f32 0.0, %v2513
    %2515 = vdwg.mxu0
    %2516 = vmatprep.subr.mxu0 %v702
    %2517 = vmatpush1.msra.mxu0 %v701
    %2518 = vmatprep.subr.mxu0 %v690
    %2519 = vmatpush1.msra.mxu0 %v689
    %2520 = vmatprep.subr.mxu0 %v678
    %2521 = vmatpush1.msra.mxu0 %v677
    %2522 = vmatprep.subr.mxu0 %v666
    %2523 = vmatpush1.msra.mxu0 %v665
    %2524 = vmatprep.subr.mxu0 %v654
    %2525 = vmatpush1.msra.mxu0 %v653
    %2526 = vmatprep.subr.mxu0 %v642
    %2527 = vmatpush1.msra.mxu0 %v641
    %2528 = vmatprep.subr.mxu0 %v630
    %2529 = vmatpush1.msra.mxu0 %v629
    %2530 = vmatprep.subr.mxu0 %v618
    %2531 = vmatpush1.msra.mxu0 %v617
    %2532 = vmatprep.subr.mxu0 %v606
    %2533 = vmatpush1.msra.mxu0 %v605
    %2534 = vmatprep.subr.mxu0 %v594
    %2535 = vmatpush1.msra.mxu0 %v593
    %2536 = vmatprep.subr.mxu0 %v582
    %2537 = vmatpush1.msra.mxu0 %v581
    %2538 = vmatprep.subr.mxu0 %v570
    %2539 = vmatpush1.msra.mxu0 %v569
    %2540 = vmatprep.subr.mxu0 %v558
    %2541 = vmatpush1.msra.mxu0 %v557
    %2542 = vmatprep.subr.mxu0 %v546
    %2543 = vmatpush1.msra.mxu0 %v545
    %2544 = vmatprep.subr.mxu0 %v534
    %2545 = vmatpush1.msra.mxu0 %v533
    %2546 = vmatprep.subr.mxu0 %v522
    %2547 = vmatpush1.msra.mxu0 %v521
    %2548 = vmatprep.subr.mxu0 %v894
    %2549 = vmatpush2.msra.mxu0 %v893
    %2550 = vmatprep.subr.mxu0 %v882
    %2551 = vmatpush2.msra.mxu0 %v881
    %2552 = vmatprep.subr.mxu0 %v870
    %2553 = vmatpush2.msra.mxu0 %v869
    %2554 = vmatprep.subr.mxu0 %v858
    %2555 = vmatpush2.msra.mxu0 %v857
    %2556 = vmatprep.subr.mxu0 %v846
    %2557 = vmatpush2.msra.mxu0 %v845
    %2558 = vmatprep.subr.mxu0 %v834
    %2559 = vmatpush2.msra.mxu0 %v833
    %2560 = vmatprep.subr.mxu0 %v822
    %2561 = vmatpush2.msra.mxu0 %v821
    %2562 = vmatprep.subr.mxu0 %v810
    %2563 = vmatpush2.msra.mxu0 %v809
    %2564 = vmatprep.subr.mxu0 %v798
    %2565 = vmatpush2.msra.mxu0 %v797
    %2566 = vmatprep.subr.mxu0 %v786
    %2567 = vmatpush2.msra.mxu0 %v785
    %2568 = vmatprep.subr.mxu0 %v774
    %2569 = vmatpush2.msra.mxu0 %v773
    %2570 = vmatprep.subr.mxu0 %v762
    %2571 = vmatpush2.msra.mxu0 %v761
    %2572 = vmatprep.subr.mxu0 %v750
    %2573 = vmatpush2.msra.mxu0 %v749
    %2574 = vmatprep.subr.mxu0 %v738
    %2575 = vmatpush2.msra.mxu0 %v737
    %2576 = vmatprep.subr.mxu0 %v726
    %2577 = vmatpush2.msra.mxu0 %v725
    %2578 = vmatprep.subr.mxu0 %v714
    %2579 = vmatpush2.msra.mxu0 %v713
    %2580 = vmatprep.mubr.f32.mxu0 %v125
    %2581 = vmatmul.mubr.f32.gmra.mxu0 %v124
    %v2582 = vpop.f32.mrf.mxu0
    %v2583 = vadd.f32 %v2512, %v2582
    %v2584 = vpop.f32.mrf.mxu0
    %v2585 = vadd.f32 %v2514, %v2584
    %2586 = vdwg.mxu0
    %2587 = vmatprep.subr.mxu0 %v1086
    %2588 = vmatpush1.msra.mxu0 %v1085
    %2589 = vmatprep.subr.mxu0 %v1074
    %2590 = vmatpush1.msra.mxu0 %v1073
    %2591 = vmatprep.subr.mxu0 %v1062
    %2592 = vmatpush1.msra.mxu0 %v1061
    %2593 = vmatprep.subr.mxu0 %v1050
    %2594 = vmatpush1.msra.mxu0 %v1049
    %2595 = vmatprep.subr.mxu0 %v1038
    %2596 = vmatpush1.msra.mxu0 %v1037
    %2597 = vmatprep.subr.mxu0 %v1026
    %2598 = vmatpush1.msra.mxu0 %v1025
    %2599 = vmatprep.subr.mxu0 %v1014
    %2600 = vmatpush1.msra.mxu0 %v1013
    %2601 = vmatprep.subr.mxu0 %v1002
    %2602 = vmatpush1.msra.mxu0 %v1001
    %2603 = vmatprep.subr.mxu0 %v990
    %2604 = vmatpush1.msra.mxu0 %v989
    %2605 = vmatprep.subr.mxu0 %v978
    %2606 = vmatpush1.msra.mxu0 %v977
    %2607 = vmatprep.subr.mxu0 %v966
    %2608 = vmatpush1.msra.mxu0 %v965
    %2609 = vmatprep.subr.mxu0 %v954
    %2610 = vmatpush1.msra.mxu0 %v953
    %2611 = vmatprep.subr.mxu0 %v942
    %2612 = vmatpush1.msra.mxu0 %v941
    %2613 = vmatprep.subr.mxu0 %v930
    %2614 = vmatpush1.msra.mxu0 %v929
    %2615 = vmatprep.subr.mxu0 %v918
    %2616 = vmatpush1.msra.mxu0 %v917
    %2617 = vmatprep.subr.mxu0 %v906
    %2618 = vmatpush1.msra.mxu0 %v905
    %2619 = vmatprep.subr.mxu0 %v1278
    %2620 = vmatpush2.msra.mxu0 %v1277
    %2621 = vmatprep.subr.mxu0 %v1266
    %2622 = vmatpush2.msra.mxu0 %v1265
    %2623 = vmatprep.subr.mxu0 %v1254
    %2624 = vmatpush2.msra.mxu0 %v1253
    %2625 = vmatprep.subr.mxu0 %v1242
    %2626 = vmatpush2.msra.mxu0 %v1241
    %2627 = vmatprep.subr.mxu0 %v1230
    %2628 = vmatpush2.msra.mxu0 %v1229
    %2629 = vmatprep.subr.mxu0 %v1218
    %2630 = vmatpush2.msra.mxu0 %v1217
    %2631 = vmatprep.subr.mxu0 %v1206
    %2632 = vmatpush2.msra.mxu0 %v1205
    %2633 = vmatprep.subr.mxu0 %v1194
    %2634 = vmatpush2.msra.mxu0 %v1193
    %2635 = vmatprep.subr.mxu0 %v1182
    %2636 = vmatpush2.msra.mxu0 %v1181
    %2637 = vmatprep.subr.mxu0 %v1170
    %2638 = vmatpush2.msra.mxu0 %v1169
    %2639 = vmatprep.subr.mxu0 %v1158
    %2640 = vmatpush2.msra.mxu0 %v1157
    %2641 = vmatprep.subr.mxu0 %v1146
    %2642 = vmatpush2.msra.mxu0 %v1145
    %2643 = vmatprep.subr.mxu0 %v1134
    %2644 = vmatpush2.msra.mxu0 %v1133
    %2645 = vmatprep.subr.mxu0 %v1122
    %2646 = vmatpush2.msra.mxu0 %v1121
    %2647 = vmatprep.subr.mxu0 %v1110
    %2648 = vmatpush2.msra.mxu0 %v1109
    %2649 = vmatprep.subr.mxu0 %v1098
    %2650 = vmatpush2.msra.mxu0 %v1097
    %2651 = vmatprep.mubr.f32.mxu0 %v127
    %2652 = vmatmul.mubr.f32.gmra.mxu0 %v126
    %v2653 = vpop.f32.mrf.mxu0
    %v2654 = vadd.f32 %v2583, %v2653
    %v2655 = vpop.f32.mrf.mxu0
    %v2656 = vadd.f32 %v2585, %v2655
    %2657 = vdwg.mxu0
    %2658 = vmatprep.subr.mxu0 0.0
    %2659 = vmatpush1.msra.mxu0 0.0
    %2660 = vmatprep.subr.mxu0 0.0
    %2661 = vmatpush1.msra.mxu0 0.0
    %2662 = vmatprep.subr.mxu0 0.0
    %2663 = vmatpush1.msra.mxu0 0.0
    %2664 = vmatprep.subr.mxu0 0.0
    %2665 = vmatpush1.msra.mxu0 0.0
    %2666 = vmatprep.subr.mxu0 0.0
    %2667 = vmatpush1.msra.mxu0 0.0
    %2668 = vmatprep.subr.mxu0 0.0
    %2669 = vmatpush1.msra.mxu0 0.0
    %2670 = vmatprep.subr.mxu0 0.0
    %2671 = vmatpush1.msra.mxu0 0.0
    %2672 = vmatprep.subr.mxu0 0.0
    %2673 = vmatpush1.msra.mxu0 0.0
    %2674 = vmatprep.subr.mxu0 0.0
    %2675 = vmatpush1.msra.mxu0 0.0
    %2676 = vmatprep.subr.mxu0 0.0
    %2677 = vmatpush1.msra.mxu0 0.0
    %2678 = vmatprep.subr.mxu0 0.0
    %2679 = vmatpush1.msra.mxu0 0.0
    %2680 = vmatprep.subr.mxu0 0.0
    %2681 = vmatpush1.msra.mxu0 0.0
    %2682 = vmatprep.subr.mxu0 0.0
    %2683 = vmatpush1.msra.mxu0 0.0
    %2684 = vmatprep.subr.mxu0 0.0
    %2685 = vmatpush1.msra.mxu0 0.0
    %2686 = vmatprep.subr.mxu0 %v1302
    %2687 = vmatpush1.msra.mxu0 %v1301
    %2688 = vmatprep.subr.mxu0 %v1290
    %2689 = vmatpush1.msra.mxu0 %v1289
    %2690 = vmatprep.subr.mxu0 0.0
    %2691 = vmatpush2.msra.mxu0 0.0
    %2692 = vmatprep.subr.mxu0 0.0
    %2693 = vmatpush2.msra.mxu0 0.0
    %2694 = vmatprep.subr.mxu0 0.0
    %2695 = vmatpush2.msra.mxu0 0.0
    %2696 = vmatprep.subr.mxu0 0.0
    %2697 = vmatpush2.msra.mxu0 0.0
    %2698 = vmatprep.subr.mxu0 0.0
    %2699 = vmatpush2.msra.mxu0 0.0
    %2700 = vmatprep.subr.mxu0 0.0
    %2701 = vmatpush2.msra.mxu0 0.0
    %2702 = vmatprep.subr.mxu0 0.0
    %2703 = vmatpush2.msra.mxu0 0.0
    %2704 = vmatprep.subr.mxu0 0.0
    %2705 = vmatpush2.msra.mxu0 0.0
    %2706 = vmatprep.subr.mxu0 0.0
    %2707 = vmatpush2.msra.mxu0 0.0
    %2708 = vmatprep.subr.mxu0 0.0
    %2709 = vmatpush2.msra.mxu0 0.0
    %2710 = vmatprep.subr.mxu0 0.0
    %2711 = vmatpush2.msra.mxu0 0.0
    %2712 = vmatprep.subr.mxu0 0.0
    %2713 = vmatpush2.msra.mxu0 0.0
    %2714 = vmatprep.subr.mxu0 0.0
    %2715 = vmatpush2.msra.mxu0 0.0
    %2716 = vmatprep.subr.mxu0 0.0
    %2717 = vmatpush2.msra.mxu0 0.0
    %2718 = vmatprep.subr.mxu0 0.0
    %2719 = vmatpush2.msra.mxu0 0.0
    %2720 = vmatprep.subr.mxu0 0.0
    %2721 = vmatpush2.msra.mxu0 0.0
    %2722 = vmatprep.mubr.f32.mxu0 0.0
    %2723 = vmatmul.mubr.f32.gmra.mxu0 %v1307
    %v2724 = vpop.f32.mrf.mxu0
    %v2725 = vadd.f32 %v2654, %v2724
    %v2726 = vpop.f32.mrf.mxu0
    %v2727 = vadd.f32 %v2656, %v2726
    %2728 = vdwg.mxu0
    %2729 = vmatprep.subr.mxu0 %v320
    %2730 = vmatpush1.msra.mxu0 %v319
    %2731 = vmatprep.subr.mxu0 %v308
    %2732 = vmatpush1.msra.mxu0 %v307
    %2733 = vmatprep.subr.mxu0 %v296
    %2734 = vmatpush1.msra.mxu0 %v295
    %2735 = vmatprep.subr.mxu0 %v284
    %2736 = vmatpush1.msra.mxu0 %v283
    %2737 = vmatprep.subr.mxu0 %v272
    %2738 = vmatpush1.msra.mxu0 %v271
    %2739 = vmatprep.subr.mxu0 %v260
    %2740 = vmatpush1.msra.mxu0 %v259
    %2741 = vmatprep.subr.mxu0 %v248
    %2742 = vmatpush1.msra.mxu0 %v247
    %2743 = vmatprep.subr.mxu0 %v236
    %2744 = vmatpush1.msra.mxu0 %v235
    %2745 = vmatprep.subr.mxu0 %v224
    %2746 = vmatpush1.msra.mxu0 %v223
    %2747 = vmatprep.subr.mxu0 %v212
    %2748 = vmatpush1.msra.mxu0 %v211
    %2749 = vmatprep.subr.mxu0 %v200
    %2750 = vmatpush1.msra.mxu0 %v199
    %2751 = vmatprep.subr.mxu0 %v188
    %2752 = vmatpush1.msra.mxu0 %v187
    %2753 = vmatprep.subr.mxu0 %v176
    %2754 = vmatpush1.msra.mxu0 %v175
    %2755 = vmatprep.subr.mxu0 %v164
    %2756 = vmatpush1.msra.mxu0 %v163
    %2757 = vmatprep.subr.mxu0 %v152
    %2758 = vmatpush1.msra.mxu0 %v151
    %2759 = vmatprep.subr.mxu0 %v140
    %2760 = vmatpush1.msra.mxu0 %v139
    %2761 = vmatprep.subr.mxu0 %v512
    %2762 = vmatpush2.msra.mxu0 %v511
    %2763 = vmatprep.subr.mxu0 %v500
    %2764 = vmatpush2.msra.mxu0 %v499
    %2765 = vmatprep.subr.mxu0 %v488
    %2766 = vmatpush2.msra.mxu0 %v487
    %2767 = vmatprep.subr.mxu0 %v476
    %2768 = vmatpush2.msra.mxu0 %v475
    %2769 = vmatprep.subr.mxu0 %v464
    %2770 = vmatpush2.msra.mxu0 %v463
    %2771 = vmatprep.subr.mxu0 %v452
    %2772 = vmatpush2.msra.mxu0 %v451
    %2773 = vmatprep.subr.mxu0 %v440
    %2774 = vmatpush2.msra.mxu0 %v439
    %2775 = vmatprep.subr.mxu0 %v428
    %2776 = vmatpush2.msra.mxu0 %v427
    %2777 = vmatprep.subr.mxu0 %v416
    %2778 = vmatpush2.msra.mxu0 %v415
    %2779 = vmatprep.subr.mxu0 %v404
    %2780 = vmatpush2.msra.mxu0 %v403
    %2781 = vmatprep.subr.mxu0 %v392
    %2782 = vmatpush2.msra.mxu0 %v391
    %2783 = vmatprep.subr.mxu0 %v380
    %2784 = vmatpush2.msra.mxu0 %v379
    %2785 = vmatprep.subr.mxu0 %v368
    %2786 = vmatpush2.msra.mxu0 %v367
    %2787 = vmatprep.subr.mxu0 %v356
    %2788 = vmatpush2.msra.mxu0 %v355
    %2789 = vmatprep.subr.mxu0 %v344
    %2790 = vmatpush2.msra.mxu0 %v343
    %2791 = vmatprep.subr.mxu0 %v332
    %2792 = vmatpush2.msra.mxu0 %v331
    %2793 = vmatprep.mubr.f32.mxu0 %v123
    %2794 = vmatmul.mubr.f32.gmra.mxu0 %v122
    %v2795 = vpop.f32.mrf.mxu0
    %v2796 = vadd.f32 0.0, %v2795
    %v2797 = vpop.f32.mrf.mxu0
    %v2798 = vadd.f32 0.0, %v2797
    %2799 = vdwg.mxu0
    %2800 = vmatprep.subr.mxu0 %v704
    %2801 = vmatpush1.msra.mxu0 %v703
    %2802 = vmatprep.subr.mxu0 %v692
    %2803 = vmatpush1.msra.mxu0 %v691
    %2804 = vmatprep.subr.mxu0 %v680
    %2805 = vmatpush1.msra.mxu0 %v679
    %2806 = vmatprep.subr.mxu0 %v668
    %2807 = vmatpush1.msra.mxu0 %v667
    %2808 = vmatprep.subr.mxu0 %v656
    %2809 = vmatpush1.msra.mxu0 %v655
    %2810 = vmatprep.subr.mxu0 %v644
    %2811 = vmatpush1.msra.mxu0 %v643
    %2812 = vmatprep.subr.mxu0 %v632
    %2813 = vmatpush1.msra.mxu0 %v631
    %2814 = vmatprep.subr.mxu0 %v620
    %2815 = vmatpush1.msra.mxu0 %v619
    %2816 = vmatprep.subr.mxu0 %v608
    %2817 = vmatpush1.msra.mxu0 %v607
    %2818 = vmatprep.subr.mxu0 %v596
    %2819 = vmatpush1.msra.mxu0 %v595
    %2820 = vmatprep.subr.mxu0 %v584
    %2821 = vmatpush1.msra.mxu0 %v583
    %2822 = vmatprep.subr.mxu0 %v572
    %2823 = vmatpush1.msra.mxu0 %v571
    %2824 = vmatprep.subr.mxu0 %v560
    %2825 = vmatpush1.msra.mxu0 %v559
    %2826 = vmatprep.subr.mxu0 %v548
    %2827 = vmatpush1.msra.mxu0 %v547
    %2828 = vmatprep.subr.mxu0 %v536
    %2829 = vmatpush1.msra.mxu0 %v535
    %2830 = vmatprep.subr.mxu0 %v524
    %2831 = vmatpush1.msra.mxu0 %v523
    %2832 = vmatprep.subr.mxu0 %v896
    %2833 = vmatpush2.msra.mxu0 %v895
    %2834 = vmatprep.subr.mxu0 %v884
    %2835 = vmatpush2.msra.mxu0 %v883
    %2836 = vmatprep.subr.mxu0 %v872
    %2837 = vmatpush2.msra.mxu0 %v871
    %2838 = vmatprep.subr.mxu0 %v860
    %2839 = vmatpush2.msra.mxu0 %v859
    %2840 = vmatprep.subr.mxu0 %v848
    %2841 = vmatpush2.msra.mxu0 %v847
    %2842 = vmatprep.subr.mxu0 %v836
    %2843 = vmatpush2.msra.mxu0 %v835
    %2844 = vmatprep.subr.mxu0 %v824
    %2845 = vmatpush2.msra.mxu0 %v823
    %2846 = vmatprep.subr.mxu0 %v812
    %2847 = vmatpush2.msra.mxu0 %v811
    %2848 = vmatprep.subr.mxu0 %v800
    %2849 = vmatpush2.msra.mxu0 %v799
    %2850 = vmatprep.subr.mxu0 %v788
    %2851 = vmatpush2.msra.mxu0 %v787
    %2852 = vmatprep.subr.mxu0 %v776
    %2853 = vmatpush2.msra.mxu0 %v775
    %2854 = vmatprep.subr.mxu0 %v764
    %2855 = vmatpush2.msra.mxu0 %v763
    %2856 = vmatprep.subr.mxu0 %v752
    %2857 = vmatpush2.msra.mxu0 %v751
    %2858 = vmatprep.subr.mxu0 %v740
    %2859 = vmatpush2.msra.mxu0 %v739
    %2860 = vmatprep.subr.mxu0 %v728
    %2861 = vmatpush2.msra.mxu0 %v727
    %2862 = vmatprep.subr.mxu0 %v716
    %2863 = vmatpush2.msra.mxu0 %v715
    %2864 = vmatprep.mubr.f32.mxu0 %v125
    %2865 = vmatmul.mubr.f32.gmra.mxu0 %v124
    %v2866 = vpop.f32.mrf.mxu0
    %v2867 = vadd.f32 %v2796, %v2866
    %v2868 = vpop.f32.mrf.mxu0
    %v2869 = vadd.f32 %v2798, %v2868
    %2870 = vdwg.mxu0
    %2871 = vmatprep.subr.mxu0 %v1088
    %2872 = vmatpush1.msra.mxu0 %v1087
    %2873 = vmatprep.subr.mxu0 %v1076
    %2874 = vmatpush1.msra.mxu0 %v1075
    %2875 = vmatprep.subr.mxu0 %v1064
    %2876 = vmatpush1.msra.mxu0 %v1063
    %2877 = vmatprep.subr.mxu0 %v1052
    %2878 = vmatpush1.msra.mxu0 %v1051
    %2879 = vmatprep.subr.mxu0 %v1040
    %2880 = vmatpush1.msra.mxu0 %v1039
    %2881 = vmatprep.subr.mxu0 %v1028
    %2882 = vmatpush1.msra.mxu0 %v1027
    %2883 = vmatprep.subr.mxu0 %v1016
    %2884 = vmatpush1.msra.mxu0 %v1015
    %2885 = vmatprep.subr.mxu0 %v1004
    %2886 = vmatpush1.msra.mxu0 %v1003
    %2887 = vmatprep.subr.mxu0 %v992
    %2888 = vmatpush1.msra.mxu0 %v991
    %2889 = vmatprep.subr.mxu0 %v980
    %2890 = vmatpush1.msra.mxu0 %v979
    %2891 = vmatprep.subr.mxu0 %v968
    %2892 = vmatpush1.msra.mxu0 %v967
    %2893 = vmatprep.subr.mxu0 %v956
    %2894 = vmatpush1.msra.mxu0 %v955
    %2895 = vmatprep.subr.mxu0 %v944
    %2896 = vmatpush1.msra.mxu0 %v943
    %2897 = vmatprep.subr.mxu0 %v932
    %2898 = vmatpush1.msra.mxu0 %v931
    %2899 = vmatprep.subr.mxu0 %v920
    %2900 = vmatpush1.msra.mxu0 %v919
    %2901 = vmatprep.subr.mxu0 %v908
    %2902 = vmatpush1.msra.mxu0 %v907
    %2903 = vmatprep.subr.mxu0 %v1280
    %2904 = vmatpush2.msra.mxu0 %v1279
    %2905 = vmatprep.subr.mxu0 %v1268
    %2906 = vmatpush2.msra.mxu0 %v1267
    %2907 = vmatprep.subr.mxu0 %v1256
    %2908 = vmatpush2.msra.mxu0 %v1255
    %2909 = vmatprep.subr.mxu0 %v1244
    %2910 = vmatpush2.msra.mxu0 %v1243
    %2911 = vmatprep.subr.mxu0 %v1232
    %2912 = vmatpush2.msra.mxu0 %v1231
    %2913 = vmatprep.subr.mxu0 %v1220
    %2914 = vmatpush2.msra.mxu0 %v1219
    %2915 = vmatprep.subr.mxu0 %v1208
    %2916 = vmatpush2.msra.mxu0 %v1207
    %2917 = vmatprep.subr.mxu0 %v1196
    %2918 = vmatpush2.msra.mxu0 %v1195
    %2919 = vmatprep.subr.mxu0 %v1184
    %2920 = vmatpush2.msra.mxu0 %v1183
    %2921 = vmatprep.subr.mxu0 %v1172
    %2922 = vmatpush2.msra.mxu0 %v1171
    %2923 = vmatprep.subr.mxu0 %v1160
    %2924 = vmatpush2.msra.mxu0 %v1159
    %2925 = vmatprep.subr.mxu0 %v1148
    %2926 = vmatpush2.msra.mxu0 %v1147
    %2927 = vmatprep.subr.mxu0 %v1136
    %2928 = vmatpush2.msra.mxu0 %v1135
    %2929 = vmatprep.subr.mxu0 %v1124
    %2930 = vmatpush2.msra.mxu0 %v1123
    %2931 = vmatprep.subr.mxu0 %v1112
    %2932 = vmatpush2.msra.mxu0 %v1111
    %2933 = vmatprep.subr.mxu0 %v1100
    %2934 = vmatpush2.msra.mxu0 %v1099
    %2935 = vmatprep.mubr.f32.mxu0 %v127
    %2936 = vmatmul.mubr.f32.gmra.mxu0 %v126
    %v2937 = vpop.f32.mrf.mxu0
    %v2938 = vadd.f32 %v2867, %v2937
    %v2939 = vpop.f32.mrf.mxu0
    %v2940 = vadd.f32 %v2869, %v2939
    %2941 = vdwg.mxu0
    %2942 = vmatprep.subr.mxu0 0.0
    %2943 = vmatpush1.msra.mxu0 0.0
    %2944 = vmatprep.subr.mxu0 0.0
    %2945 = vmatpush1.msra.mxu0 0.0
    %2946 = vmatprep.subr.mxu0 0.0
    %2947 = vmatpush1.msra.mxu0 0.0
    %2948 = vmatprep.subr.mxu0 0.0
    %2949 = vmatpush1.msra.mxu0 0.0
    %2950 = vmatprep.subr.mxu0 0.0
    %2951 = vmatpush1.msra.mxu0 0.0
    %2952 = vmatprep.subr.mxu0 0.0
    %2953 = vmatpush1.msra.mxu0 0.0
    %2954 = vmatprep.subr.mxu0 0.0
    %2955 = vmatpush1.msra.mxu0 0.0
    %2956 = vmatprep.subr.mxu0 0.0
    %2957 = vmatpush1.msra.mxu0 0.0
    %2958 = vmatprep.subr.mxu0 0.0
    %2959 = vmatpush1.msra.mxu0 0.0
    %2960 = vmatprep.subr.mxu0 0.0
    %2961 = vmatpush1.msra.mxu0 0.0
    %2962 = vmatprep.subr.mxu0 0.0
    %2963 = vmatpush1.msra.mxu0 0.0
    %2964 = vmatprep.subr.mxu0 0.0
    %2965 = vmatpush1.msra.mxu0 0.0
    %2966 = vmatprep.subr.mxu0 0.0
    %2967 = vmatpush1.msra.mxu0 0.0
    %2968 = vmatprep.subr.mxu0 0.0
    %2969 = vmatpush1.msra.mxu0 0.0
    %2970 = vmatprep.subr.mxu0 %v1304
    %2971 = vmatpush1.msra.mxu0 %v1303
    %2972 = vmatprep.subr.mxu0 %v1292
    %2973 = vmatpush1.msra.mxu0 %v1291
    %2974 = vmatprep.subr.mxu0 0.0
    %2975 = vmatpush2.msra.mxu0 0.0
    %2976 = vmatprep.subr.mxu0 0.0
    %2977 = vmatpush2.msra.mxu0 0.0
    %2978 = vmatprep.subr.mxu0 0.0
    %2979 = vmatpush2.msra.mxu0 0.0
    %2980 = vmatprep.subr.mxu0 0.0
    %2981 = vmatpush2.msra.mxu0 0.0
    %2982 = vmatprep.subr.mxu0 0.0
    %2983 = vmatpush2.msra.mxu0 0.0
    %2984 = vmatprep.subr.mxu0 0.0
    %2985 = vmatpush2.msra.mxu0 0.0
    %2986 = vmatprep.subr.mxu0 0.0
    %2987 = vmatpush2.msra.mxu0 0.0
    %2988 = vmatprep.subr.mxu0 0.0
    %2989 = vmatpush2.msra.mxu0 0.0
    %2990 = vmatprep.subr.mxu0 0.0
    %2991 = vmatpush2.msra.mxu0 0.0
    %2992 = vmatprep.subr.mxu0 0.0
    %2993 = vmatpush2.msra.mxu0 0.0
    %2994 = vmatprep.subr.mxu0 0.0
    %2995 = vmatpush2.msra.mxu0 0.0
    %2996 = vmatprep.subr.mxu0 0.0
    %2997 = vmatpush2.msra.mxu0 0.0
    %2998 = vmatprep.subr.mxu0 0.0
    %2999 = vmatpush2.msra.mxu0 0.0
    %3000 = vmatprep.subr.mxu0 0.0
    %3001 = vmatpush2.msra.mxu0 0.0
    %3002 = vmatprep.subr.mxu0 0.0
    %3003 = vmatpush2.msra.mxu0 0.0
    %3004 = vmatprep.subr.mxu0 0.0
    %3005 = vmatpush2.msra.mxu0 0.0
    %3006 = vmatprep.mubr.f32.mxu0 0.0
    %3007 = vmatmul.mubr.f32.gmra.mxu0 %v1307
    %v3008 = vpop.f32.mrf.mxu0
    %v3009 = vadd.f32 %v2938, %v3008
    %v3010 = vpop.f32.mrf.mxu0
    %v3011 = vadd.f32 %v2940, %v3010
    %3012 = vdwg.mxu0
    %v3013 = vmax.f32 %v1589, %v1875
    %v3014 = vmax.f32 %v1591, %v2157
    %v3015 = vmax.f32 %v1873, %v2159
    %v3016 = vmax.f32 %v2441, %v2727
    %v3017 = vmax.f32 %v2443, %v3009
    %v3018 = vmax.f32 %v2725, %v3011
    %v3019 = vmax.f32 %v3013, %v3016
    %v3020 = vmax.f32 %v3014, %v3017
    %v3021 = vmax.f32 %v3015, %v3018
    %v3022 = vld [vmem:[#allocation9] sm:$0x7]
    %v3024 = vlaneseq
    %v3025 = vshrl.u32 %v3024, 7
    %v3026 = vsub.s32 0, %v3025
    %v3027 = vrot.slane %v3022, %v3026
    %v3028 = vlaneseq
    %v3029 = vshrl.u32 %v3028, 7
    %v3030 = vsub.s32 1, %v3029
    %v3031 = vrot.slane %v3022, %v3030
    %v3032 = vlaneseq
    %v3033 = vshrl.u32 %v3032, 7
    %v3034 = vsub.s32 2, %v3033
    %v3035 = vrot.slane %v3022, %v3034
    %v3039 = vadd.f32 %v3019, %v3027
    %v3040 = vadd.f32 %v3020, %v3031
    %v3041 = vadd.f32 %v3021, %v3035
    %v3042 = vmax.f32 %v3039, 0.0
    %v3043 = vmax.f32 %v3040, 0.0
    %v3044 = vmax.f32 %v3041, 0.0
    %v3045 = vld [vmem:[#allocation10] sm:$0xff]
    %v3046 = vld [vmem:[#allocation10 + $0x8] sm:$0xff]
    %v3047 = vld [vmem:[#allocation10 + $0x10] sm:$0xff]
    %v3048 = vld [vmem:[#allocation10 + $0x18] sm:$0xff]
    %v3049 = vld [vmem:[#allocation10 + $0x20] sm:$0xff]
    %v3050 = vld [vmem:[#allocation10 + $0x28] sm:$0xff]
    %v3051 = vld [vmem:[#allocation10 + $0x30] sm:$0xff]
    %v3052 = vld [vmem:[#allocation10 + $0x38] sm:$0xff]
    %v3053 = vld [vmem:[#allocation10 + $0x40] sm:$0xff]
    %v3054 = vld [vmem:[#allocation10 + $0x48] sm:$0xff]
    %v3055 = vld [vmem:[#allocation10 + $0x50] sm:$0xff]
    %v3056 = vld [vmem:[#allocation10 + $0x58] sm:$0xff]
    %v3057 = vld [vmem:[#allocation10 + $0x60] sm:$0xff]
    %v3058 = vld [vmem:[#allocation10 + $0x68] sm:$0xff]
    %v3059 = vld [vmem:[#allocation10 + $0x70] sm:$0xff]
    %v3060 = vld [vmem:[#allocation10 + $0x78] sm:$0xff]
    %v3061 = vld [vmem:[#allocation10 + $0x80] sm:$0xff]
    %v3062 = vld [vmem:[#allocation10 + $0x88] sm:$0xff]
    %v3063 = vld [vmem:[#allocation10 + $0x90] sm:$0xff]
    %v3064 = vld [vmem:[#allocation10 + $0x98] sm:$0xff]
    %v3065 = vld [vmem:[#allocation10 + $0xa0] sm:$0xff]
    %v3066 = vld [vmem:[#allocation10 + $0xa8] sm:$0xff]
    %v3067 = vld [vmem:[#allocation10 + $0xb0] sm:$0xff]
    %v3068 = vld [vmem:[#allocation10 + $0xb8] sm:$0xff]
    %v3069 = vld [vmem:[#allocation10 + $0xc0] sm:$0xff]
    %v3070 = vld [vmem:[#allocation10 + $0xc8] sm:$0xff]
    %v3071 = vld [vmem:[#allocation10 + $0xd0] sm:$0xff]
    %v3072 = vld [vmem:[#allocation10 + $0xd8] sm:$0xff]
    %v3073 = vld [vmem:[#allocation10 + $0xe0] sm:$0xff]
    %v3074 = vld [vmem:[#allocation10 + $0xe8] sm:$0xff]
    %v3075 = vld [vmem:[#allocation10 + $0xf0] sm:$0xff]
    %v3076 = vld [vmem:[#allocation10 + $0xf8] sm:$0xff]
    %v3077 = vld [vmem:[#allocation10 + $0x100] sm:$0xff]
    %v3078 = vld [vmem:[#allocation10 + $0x108] sm:$0xff]
    %v3079 = vld [vmem:[#allocation10 + $0x110] sm:$0xff]
    %v3080 = vld [vmem:[#allocation10 + $0x118] sm:$0xff]
    %v3081 = vld [vmem:[#allocation10 + $0x120] sm:$0xff]
    %v3082 = vld [vmem:[#allocation10 + $0x128] sm:$0xff]
    %v3083 = vld [vmem:[#allocation10 + $0x130] sm:$0xff]
    %v3084 = vld [vmem:[#allocation10 + $0x138] sm:$0xff]
    %v3085 = vld [vmem:[#allocation10 + $0x140] sm:$0xff]
    %v3086 = vld [vmem:[#allocation10 + $0x148] sm:$0xff]
    %v3087 = vld [vmem:[#allocation10 + $0x150] sm:$0xff]
    %v3088 = vld [vmem:[#allocation10 + $0x158] sm:$0xff]
    %v3089 = vld [vmem:[#allocation10 + $0x160] sm:$0xff]
    %v3090 = vld [vmem:[#allocation10 + $0x168] sm:$0xff]
    %v3091 = vld [vmem:[#allocation10 + $0x170] sm:$0xff]
    %v3092 = vld [vmem:[#allocation10 + $0x178] sm:$0xff]
    %v3093 = vld [vmem:[#allocation10 + $0x180] sm:$0xff]
    %v3094 = vld [vmem:[#allocation10 + $0x188] sm:$0xff]
    %v3095 = vld [vmem:[#allocation10 + $0x190] sm:$0xff]
    %v3096 = vld [vmem:[#allocation10 + $0x198] sm:$0xff]
    %v3097 = vld [vmem:[#allocation10 + $0x1a0] sm:$0xff]
    %v3098 = vld [vmem:[#allocation10 + $0x1a8] sm:$0xff]
    %v3099 = vld [vmem:[#allocation10 + $0x1b0] sm:$0xff]
    %v3100 = vld [vmem:[#allocation10 + $0x1b8] sm:$0xff]
    %v3101 = vld [vmem:[#allocation10 + $0x1c0] sm:$0xff]
    %v3102 = vld [vmem:[#allocation10 + $0x1c8] sm:$0xff]
    %v3103 = vld [vmem:[#allocation10 + $0x1d0] sm:$0xff]
    %v3104 = vld [vmem:[#allocation10 + $0x1d8] sm:$0xff]
    %v3105 = vld [vmem:[#allocation10 + $0x1e0] sm:$0xff]
    %v3106 = vld [vmem:[#allocation10 + $0x1e8] sm:$0xff]
    %v3107 = vld [vmem:[#allocation10 + $0x1f0] sm:$0xff]
    %v3108 = vld [vmem:[#allocation10 + $0x1f8] sm:$0xff]
    %v3109 = vld [vmem:[#allocation10 + $0x200] sm:$0xff]
    %v3110 = vld [vmem:[#allocation10 + $0x208] sm:$0xff]
    %v3111 = vld [vmem:[#allocation10 + $0x210] sm:$0xff]
    %v3112 = vld [vmem:[#allocation10 + $0x218] sm:$0xff]
    %v3113 = vld [vmem:[#allocation10 + $0x220] sm:$0xff]
    %v3114 = vld [vmem:[#allocation10 + $0x228] sm:$0xff]
    %v3115 = vld [vmem:[#allocation10 + $0x230] sm:$0xff]
    %v3116 = vld [vmem:[#allocation10 + $0x238] sm:$0xff]
    %v3117 = vld [vmem:[#allocation10 + $0x240] sm:$0xff]
    %v3118 = vld [vmem:[#allocation10 + $0x248] sm:$0xff]
    %v3119 = vld [vmem:[#allocation10 + $0x250] sm:$0xff]
    %v3120 = vld [vmem:[#allocation10 + $0x258] sm:$0xff]
    %v3121 = vld [vmem:[#allocation10 + $0x260] sm:$0xff]
    %v3122 = vld [vmem:[#allocation10 + $0x268] sm:$0xff]
    %v3123 = vld [vmem:[#allocation10 + $0x270] sm:$0xff]
    %v3124 = vld [vmem:[#allocation10 + $0x278] sm:$0xff]
    %v3125 = vld [vmem:[#allocation10 + $0x280] sm:$0xff]
    %v3126 = vld [vmem:[#allocation10 + $0x288] sm:$0xff]
    %v3127 = vld [vmem:[#allocation10 + $0x290] sm:$0xff]
    %v3128 = vld [vmem:[#allocation10 + $0x298] sm:$0xff]
    %v3129 = vld [vmem:[#allocation10 + $0x2a0] sm:$0xff]
    %v3130 = vld [vmem:[#allocation10 + $0x2a8] sm:$0xff]
    %v3131 = vld [vmem:[#allocation10 + $0x2b0] sm:$0xff]
    %v3132 = vld [vmem:[#allocation10 + $0x2b8] sm:$0xff]
    %v3133 = vld [vmem:[#allocation10 + $0x2c0] sm:$0xff]
    %v3134 = vld [vmem:[#allocation10 + $0x2c8] sm:$0xff]
    %v3135 = vld [vmem:[#allocation10 + $0x2d0] sm:$0xff]
    %v3136 = vld [vmem:[#allocation10 + $0x2d8] sm:$0xff]
    %v3137 = vld [vmem:[#allocation10 + $0x2e0] sm:$0xff]
    %v3138 = vld [vmem:[#allocation10 + $0x2e8] sm:$0xff]
    %v3139 = vld [vmem:[#allocation10 + $0x2f0] sm:$0xff]
    %v3140 = vld [vmem:[#allocation10 + $0x2f8] sm:$0xff]
    %v3141 = vld [vmem:[#allocation10 + $0x300] sm:$0xff]
    %v3142 = vld [vmem:[#allocation10 + $0x308] sm:$0xff]
    %v3143 = vld [vmem:[#allocation10 + $0x310] sm:$0xff]
    %v3144 = vld [vmem:[#allocation10 + $0x318] sm:$0xff]
    %v3145 = vld [vmem:[#allocation10 + $0x320] sm:$0xff]
    %v3146 = vld [vmem:[#allocation10 + $0x328] sm:$0xff]
    %v3147 = vld [vmem:[#allocation10 + $0x330] sm:$0xff]
    %v3148 = vld [vmem:[#allocation10 + $0x338] sm:$0xff]
    %v3149 = vld [vmem:[#allocation10 + $0x340] sm:$0xff]
    %v3150 = vld [vmem:[#allocation10 + $0x348] sm:$0xff]
    %v3151 = vld [vmem:[#allocation10 + $0x350] sm:$0xff]
    %v3152 = vld [vmem:[#allocation10 + $0x358] sm:$0xff]
    %v3153 = vld [vmem:[#allocation10 + $0x360] sm:$0xff]
    %v3154 = vld [vmem:[#allocation10 + $0x368] sm:$0xff]
    %v3155 = vld [vmem:[#allocation10 + $0x370] sm:$0xff]
    %v3156 = vld [vmem:[#allocation10 + $0x378] sm:$0xff]
    %v3157 = vld [vmem:[#allocation10 + $0x380] sm:$0xff]
    %v3158 = vld [vmem:[#allocation10 + $0x388] sm:$0xff]
    %v3159 = vld [vmem:[#allocation10 + $0x390] sm:$0xff]
    %v3160 = vld [vmem:[#allocation10 + $0x398] sm:$0xff]
    %v3161 = vld [vmem:[#allocation10 + $0x3a0] sm:$0xff]
    %v3162 = vld [vmem:[#allocation10 + $0x3a8] sm:$0xff]
    %v3163 = vld [vmem:[#allocation10 + $0x3b0] sm:$0xff]
    %v3164 = vld [vmem:[#allocation10 + $0x3b8] sm:$0xff]
    %v3165 = vld [vmem:[#allocation10 + $0x3c0] sm:$0xff]
    %v3166 = vld [vmem:[#allocation10 + $0x3c8] sm:$0xff]
    %v3167 = vld [vmem:[#allocation10 + $0x3d0] sm:$0xff]
    %v3168 = vld [vmem:[#allocation10 + $0x3d8] sm:$0xff]
    %v3169 = vld [vmem:[#allocation10 + $0x3e0] sm:$0xff]
    %v3170 = vld [vmem:[#allocation10 + $0x3e8] sm:$0xff]
    %v3171 = vld [vmem:[#allocation10 + $0x3f0] sm:$0xff]
    %v3172 = vld [vmem:[#allocation10 + $0x3f8] sm:$0xff]
    %v3173 = vld [vmem:[#allocation10 + $0x400] sm:$0xff]
    %v3174 = vld [vmem:[#allocation10 + $0x408] sm:$0xff]
    %v3175 = vld [vmem:[#allocation10 + $0x410] sm:$0xff]
    %v3176 = vld [vmem:[#allocation10 + $0x418] sm:$0xff]
    %v3177 = vld [vmem:[#allocation10 + $0x420] sm:$0xff]
    %v3178 = vld [vmem:[#allocation10 + $0x428] sm:$0xff]
    %v3179 = vld [vmem:[#allocation10 + $0x430] sm:$0xff]
    %v3180 = vld [vmem:[#allocation10 + $0x438] sm:$0xff]
    %v3181 = vld [vmem:[#allocation10 + $0x440] sm:$0xff]
    %v3182 = vld [vmem:[#allocation10 + $0x448] sm:$0xff]
    %v3183 = vld [vmem:[#allocation10 + $0x450] sm:$0xff]
    %v3184 = vld [vmem:[#allocation10 + $0x458] sm:$0xff]
    %v3185 = vld [vmem:[#allocation10 + $0x460] sm:$0xff]
    %v3186 = vld [vmem:[#allocation10 + $0x468] sm:$0xff]
    %v3187 = vld [vmem:[#allocation10 + $0x470] sm:$0xff]
    %v3188 = vld [vmem:[#allocation10 + $0x478] sm:$0xff]
    %v3189 = vld [vmem:[#allocation10 + $0x480] sm:$0xff]
    %v3190 = vld [vmem:[#allocation10 + $0x488] sm:$0xff]
    %v3191 = vld [vmem:[#allocation10 + $0x490] sm:$0xff]
    %v3192 = vld [vmem:[#allocation10 + $0x498] sm:$0xff]
    %v3193 = vld [vmem:[#allocation10 + $0x4a0] sm:$0xff]
    %v3194 = vld [vmem:[#allocation10 + $0x4a8] sm:$0xff]
    %v3195 = vld [vmem:[#allocation10 + $0x4b0] sm:$0xff]
    %v3196 = vld [vmem:[#allocation10 + $0x4b8] sm:$0xff]
    %v3197 = vld [vmem:[#allocation10 + $0x4c0] sm:$0xff]
    %v3198 = vld [vmem:[#allocation10 + $0x4c8] sm:$0xff]
    %v3199 = vld [vmem:[#allocation10 + $0x4d0] sm:$0xff]
    %v3200 = vld [vmem:[#allocation10 + $0x4d8] sm:$0xff]
    %v3201 = vld [vmem:[#allocation10 + $0x4e0] sm:$0xff]
    %v3202 = vld [vmem:[#allocation10 + $0x4e8] sm:$0xff]
    %v3203 = vld [vmem:[#allocation10 + $0x4f0] sm:$0xff]
    %v3204 = vld [vmem:[#allocation10 + $0x4f8] sm:$0xff]
    %v3205 = vld [vmem:[#allocation10 + $0x500] sm:$0xff]
    %v3206 = vld [vmem:[#allocation10 + $0x508] sm:$0xff]
    %v3207 = vld [vmem:[#allocation10 + $0x510] sm:$0xff]
    %v3208 = vld [vmem:[#allocation10 + $0x518] sm:$0xff]
    %v3209 = vld [vmem:[#allocation10 + $0x520] sm:$0xff]
    %v3210 = vld [vmem:[#allocation10 + $0x528] sm:$0xff]
    %v3211 = vld [vmem:[#allocation10 + $0x530] sm:$0xff]
    %v3212 = vld [vmem:[#allocation10 + $0x538] sm:$0xff]
    %v3213 = vld [vmem:[#allocation10 + $0x540] sm:$0xff]
    %v3214 = vld [vmem:[#allocation10 + $0x548] sm:$0xff]
    %v3215 = vld [vmem:[#allocation10 + $0x550] sm:$0xff]
    %v3216 = vld [vmem:[#allocation10 + $0x558] sm:$0xff]
    %v3217 = vld [vmem:[#allocation10 + $0x560] sm:$0xff]
    %v3218 = vld [vmem:[#allocation10 + $0x568] sm:$0xff]
    %v3219 = vld [vmem:[#allocation10 + $0x570] sm:$0xff]
    %v3220 = vld [vmem:[#allocation10 + $0x578] sm:$0xff]
    %v3221 = vld [vmem:[#allocation10 + $0x580] sm:$0xff]
    %v3222 = vld [vmem:[#allocation10 + $0x588] sm:$0xff]
    %v3223 = vld [vmem:[#allocation10 + $0x590] sm:$0xff]
    %v3224 = vld [vmem:[#allocation10 + $0x598] sm:$0xff]
    %v3225 = vld [vmem:[#allocation10 + $0x5a0] sm:$0xff]
    %v3226 = vld [vmem:[#allocation10 + $0x5a8] sm:$0xff]
    %v3227 = vld [vmem:[#allocation10 + $0x5b0] sm:$0xff]
    %v3228 = vld [vmem:[#allocation10 + $0x5b8] sm:$0xff]
    %v3229 = vld [vmem:[#allocation10 + $0x5c0] sm:$0xff]
    %v3230 = vld [vmem:[#allocation10 + $0x5c8] sm:$0xff]
    %v3231 = vld [vmem:[#allocation10 + $0x5d0] sm:$0xff]
    %v3232 = vld [vmem:[#allocation10 + $0x5d8] sm:$0xff]
    %v3233 = vld [vmem:[#allocation10 + $0x5e0] sm:$0xff]
    %v3234 = vld [vmem:[#allocation10 + $0x5e8] sm:$0xff]
    %v3235 = vld [vmem:[#allocation10 + $0x5f0] sm:$0xff]
    %v3236 = vld [vmem:[#allocation10 + $0x5f8] sm:$0xff]
    %v3237 = vld [vmem:[#allocation10 + $0x600] sm:$0xff]
    %v3238 = vld [vmem:[#allocation10 + $0x608] sm:$0xff]
    %v3239 = vld [vmem:[#allocation10 + $0x610] sm:$0xff]
    %v3240 = vld [vmem:[#allocation10 + $0x618] sm:$0xff]
    %v3241 = vld [vmem:[#allocation10 + $0x620] sm:$0xff]
    %v3242 = vld [vmem:[#allocation10 + $0x628] sm:$0xff]
    %v3243 = vld [vmem:[#allocation10 + $0x630] sm:$0xff]
    %v3244 = vld [vmem:[#allocation10 + $0x638] sm:$0xff]
    %v3245 = vld [vmem:[#allocation10 + $0x640] sm:$0xff]
    %v3246 = vld [vmem:[#allocation10 + $0x648] sm:$0xff]
    %v3247 = vld [vmem:[#allocation10 + $0x650] sm:$0xff]
    %v3248 = vld [vmem:[#allocation10 + $0x658] sm:$0xff]
    %v3249 = vld [vmem:[#allocation10 + $0x660] sm:$0xff]
    %v3250 = vld [vmem:[#allocation10 + $0x668] sm:$0xff]
    %v3251 = vld [vmem:[#allocation10 + $0x670] sm:$0xff]
    %v3252 = vld [vmem:[#allocation10 + $0x678] sm:$0xff]
    %v3253 = vld [vmem:[#allocation10 + $0x680] sm:$0xff]
    %v3254 = vld [vmem:[#allocation10 + $0x688] sm:$0xff]
    %v3255 = vld [vmem:[#allocation10 + $0x690] sm:$0xff]
    %v3256 = vld [vmem:[#allocation10 + $0x698] sm:$0xff]
    %v3257 = vld [vmem:[#allocation10 + $0x6a0] sm:$0xff]
    %v3258 = vld [vmem:[#allocation10 + $0x6a8] sm:$0xff]
    %v3259 = vld [vmem:[#allocation10 + $0x6b0] sm:$0xff]
    %v3260 = vld [vmem:[#allocation10 + $0x6b8] sm:$0xff]
    %v3261 = vld [vmem:[#allocation10 + $0x6c0] sm:$0xff]
    %v3262 = vld [vmem:[#allocation10 + $0x6c8] sm:$0xff]
    %v3263 = vld [vmem:[#allocation10 + $0x6d0] sm:$0xff]
    %v3264 = vld [vmem:[#allocation10 + $0x6d8] sm:$0xff]
    %v3265 = vld [vmem:[#allocation10 + $0x6e0] sm:$0xff]
    %v3266 = vld [vmem:[#allocation10 + $0x6e8] sm:$0xff]
    %v3267 = vld [vmem:[#allocation10 + $0x6f0] sm:$0xff]
    %v3268 = vld [vmem:[#allocation10 + $0x6f8] sm:$0xff]
    %v3269 = vld [vmem:[#allocation10 + $0x700] sm:$0xff]
    %v3270 = vld [vmem:[#allocation10 + $0x708] sm:$0xff]
    %v3271 = vld [vmem:[#allocation10 + $0x710] sm:$0xff]
    %v3272 = vld [vmem:[#allocation10 + $0x718] sm:$0xff]
    %v3273 = vld [vmem:[#allocation10 + $0x720] sm:$0xff]
    %v3274 = vld [vmem:[#allocation10 + $0x728] sm:$0xff]
    %v3275 = vld [vmem:[#allocation10 + $0x730] sm:$0xff]
    %v3276 = vld [vmem:[#allocation10 + $0x738] sm:$0xff]
    %v3277 = vld [vmem:[#allocation10 + $0x740] sm:$0xff]
    %v3278 = vld [vmem:[#allocation10 + $0x748] sm:$0xff]
    %v3279 = vld [vmem:[#allocation10 + $0x750] sm:$0xff]
    %v3280 = vld [vmem:[#allocation10 + $0x758] sm:$0xff]
    %v3281 = vld [vmem:[#allocation10 + $0x760] sm:$0xff]
    %v3282 = vld [vmem:[#allocation10 + $0x768] sm:$0xff]
    %v3283 = vld [vmem:[#allocation10 + $0x770] sm:$0xff]
    %v3284 = vld [vmem:[#allocation10 + $0x778] sm:$0xff]
    %v3285 = vld [vmem:[#allocation10 + $0x780] sm:$0xff]
    %v3286 = vld [vmem:[#allocation10 + $0x788] sm:$0xff]
    %v3287 = vld [vmem:[#allocation10 + $0x790] sm:$0xff]
    %v3288 = vld [vmem:[#allocation10 + $0x798] sm:$0xff]
    %v3289 = vld [vmem:[#allocation10 + $0x7a0] sm:$0xff]
    %v3290 = vld [vmem:[#allocation10 + $0x7a8] sm:$0xff]
    %v3291 = vld [vmem:[#allocation10 + $0x7b0] sm:$0xff]
    %v3292 = vld [vmem:[#allocation10 + $0x7b8] sm:$0xff]
    %v3293 = vld [vmem:[#allocation10 + $0x7c0] sm:$0xff]
    %v3294 = vld [vmem:[#allocation10 + $0x7c8] sm:$0xff]
    %v3295 = vld [vmem:[#allocation10 + $0x7d0] sm:$0xff]
    %v3296 = vld [vmem:[#allocation10 + $0x7d8] sm:$0xff]
    %v3297 = vld [vmem:[#allocation10 + $0x7e0] sm:$0xff]
    %v3298 = vld [vmem:[#allocation10 + $0x7e8] sm:$0xff]
    %v3299 = vld [vmem:[#allocation10 + $0x7f0] sm:$0xff]
    %v3300 = vld [vmem:[#allocation10 + $0x7f8] sm:$0xff]
    %v3301 = vld [vmem:[#allocation10 + $0x800] sm:$0xff]
    %v3302 = vld [vmem:[#allocation10 + $0x808] sm:$0xff]
    %v3303 = vld [vmem:[#allocation10 + $0x810] sm:$0xff]
    %v3304 = vld [vmem:[#allocation10 + $0x818] sm:$0xff]
    %v3305 = vld [vmem:[#allocation10 + $0x820] sm:$0xff]
    %v3306 = vld [vmem:[#allocation10 + $0x828] sm:$0xff]
    %v3307 = vld [vmem:[#allocation10 + $0x830] sm:$0xff]
    %v3308 = vld [vmem:[#allocation10 + $0x838] sm:$0xff]
    %v3309 = vld [vmem:[#allocation10 + $0x840] sm:$0xff]
    %v3310 = vld [vmem:[#allocation10 + $0x848] sm:$0xff]
    %v3311 = vld [vmem:[#allocation10 + $0x850] sm:$0xff]
    %v3312 = vld [vmem:[#allocation10 + $0x858] sm:$0xff]
    %v3313 = vld [vmem:[#allocation10 + $0x860] sm:$0xff]
    %v3314 = vld [vmem:[#allocation10 + $0x868] sm:$0xff]
    %v3315 = vld [vmem:[#allocation10 + $0x870] sm:$0xff]
    %v3316 = vld [vmem:[#allocation10 + $0x878] sm:$0xff]
    %v3317 = vld [vmem:[#allocation10 + $0x880] sm:$0xff]
    %v3318 = vld [vmem:[#allocation10 + $0x888] sm:$0xff]
    %v3319 = vld [vmem:[#allocation10 + $0x890] sm:$0xff]
    %v3320 = vld [vmem:[#allocation10 + $0x898] sm:$0xff]
    %v3321 = vld [vmem:[#allocation10 + $0x8a0] sm:$0xff]
    %v3322 = vld [vmem:[#allocation10 + $0x8a8] sm:$0xff]
    %v3323 = vld [vmem:[#allocation10 + $0x8b0] sm:$0xff]
    %v3324 = vld [vmem:[#allocation10 + $0x8b8] sm:$0xff]
    %v3325 = vld [vmem:[#allocation10 + $0x8c0] sm:$0xff]
    %v3326 = vld [vmem:[#allocation10 + $0x8c8] sm:$0xff]
    %v3327 = vld [vmem:[#allocation10 + $0x8d0] sm:$0xff]
    %v3328 = vld [vmem:[#allocation10 + $0x8d8] sm:$0xff]
    %v3329 = vld [vmem:[#allocation10 + $0x8e0] sm:$0xff]
    %v3330 = vld [vmem:[#allocation10 + $0x8e8] sm:$0xff]
    %v3331 = vld [vmem:[#allocation10 + $0x8f0] sm:$0xff]
    %v3332 = vld [vmem:[#allocation10 + $0x8f8] sm:$0xff]
    %v3333 = vld [vmem:[#allocation10 + $0x900] sm:$0xff]
    %v3334 = vld [vmem:[#allocation10 + $0x908] sm:$0xff]
    %v3335 = vld [vmem:[#allocation10 + $0x910] sm:$0xff]
    %v3336 = vld [vmem:[#allocation10 + $0x918] sm:$0xff]
    %v3337 = vld [vmem:[#allocation10 + $0x920] sm:$0xff]
    %v3338 = vld [vmem:[#allocation10 + $0x928] sm:$0xff]
    %v3339 = vld [vmem:[#allocation10 + $0x930] sm:$0xff]
    %v3340 = vld [vmem:[#allocation10 + $0x938] sm:$0xff]
    %v3341 = vld [vmem:[#allocation10 + $0x940] sm:$0xff]
    %v3342 = vld [vmem:[#allocation10 + $0x948] sm:$0xff]
    %v3343 = vld [vmem:[#allocation10 + $0x950] sm:$0xff]
    %v3344 = vld [vmem:[#allocation10 + $0x958] sm:$0xff]
    %v3345 = vld [vmem:[#allocation10 + $0x960] sm:$0xff]
    %v3346 = vld [vmem:[#allocation10 + $0x968] sm:$0xff]
    %v3347 = vld [vmem:[#allocation10 + $0x970] sm:$0xff]
    %v3348 = vld [vmem:[#allocation10 + $0x978] sm:$0xff]
    %v3349 = vld [vmem:[#allocation10 + $0x980] sm:$0xff]
    %v3350 = vld [vmem:[#allocation10 + $0x988] sm:$0xff]
    %v3351 = vld [vmem:[#allocation10 + $0x990] sm:$0xff]
    %v3352 = vld [vmem:[#allocation10 + $0x998] sm:$0xff]
    %v3353 = vld [vmem:[#allocation10 + $0x9a0] sm:$0xff]
    %v3354 = vld [vmem:[#allocation10 + $0x9a8] sm:$0xff]
    %v3355 = vld [vmem:[#allocation10 + $0x9b0] sm:$0xff]
    %v3356 = vld [vmem:[#allocation10 + $0x9b8] sm:$0xff]
    %v3357 = vld [vmem:[#allocation10 + $0x9c0] sm:$0xff]
    %v3358 = vld [vmem:[#allocation10 + $0x9c8] sm:$0xff]
    %v3359 = vld [vmem:[#allocation10 + $0x9d0] sm:$0xff]
    %v3360 = vld [vmem:[#allocation10 + $0x9d8] sm:$0xff]
    %v3361 = vld [vmem:[#allocation10 + $0x9e0] sm:$0xff]
    %v3362 = vld [vmem:[#allocation10 + $0x9e8] sm:$0xff]
    %v3363 = vld [vmem:[#allocation10 + $0x9f0] sm:$0xff]
    %v3364 = vld [vmem:[#allocation10 + $0x9f8] sm:$0xff]
    %v3365 = vld [vmem:[#allocation10 + $0xa00] sm:$0xff]
    %v3366 = vld [vmem:[#allocation10 + $0xa08] sm:$0xff]
    %v3367 = vld [vmem:[#allocation10 + $0xa10] sm:$0xff]
    %v3368 = vld [vmem:[#allocation10 + $0xa18] sm:$0xff]
    %v3369 = vld [vmem:[#allocation10 + $0xa20] sm:$0xff]
    %v3370 = vld [vmem:[#allocation10 + $0xa28] sm:$0xff]
    %v3371 = vld [vmem:[#allocation10 + $0xa30] sm:$0xff]
    %v3372 = vld [vmem:[#allocation10 + $0xa38] sm:$0xff]
    %v3373 = vld [vmem:[#allocation10 + $0xa40] sm:$0xff]
    %v3374 = vld [vmem:[#allocation10 + $0xa48] sm:$0xff]
    %v3375 = vld [vmem:[#allocation10 + $0xa50] sm:$0xff]
    %v3376 = vld [vmem:[#allocation10 + $0xa58] sm:$0xff]
    %v3377 = vld [vmem:[#allocation10 + $0xa60] sm:$0xff]
    %v3378 = vld [vmem:[#allocation10 + $0xa68] sm:$0xff]
    %v3379 = vld [vmem:[#allocation10 + $0xa70] sm:$0xff]
    %v3380 = vld [vmem:[#allocation10 + $0xa78] sm:$0xff]
    %v3381 = vld [vmem:[#allocation10 + $0xa80] sm:$0xff]
    %v3382 = vld [vmem:[#allocation10 + $0xa88] sm:$0xff]
    %v3383 = vld [vmem:[#allocation10 + $0xa90] sm:$0xff]
    %v3384 = vld [vmem:[#allocation10 + $0xa98] sm:$0xff]
    %v3385 = vld [vmem:[#allocation10 + $0xaa0] sm:$0xff]
    %v3386 = vld [vmem:[#allocation10 + $0xaa8] sm:$0xff]
    %v3387 = vld [vmem:[#allocation10 + $0xab0] sm:$0xff]
    %v3388 = vld [vmem:[#allocation10 + $0xab8] sm:$0xff]
    %v3389 = vld [vmem:[#allocation10 + $0xac0] sm:$0xff]
    %v3390 = vld [vmem:[#allocation10 + $0xac8] sm:$0xff]
    %v3391 = vld [vmem:[#allocation10 + $0xad0] sm:$0xff]
    %v3392 = vld [vmem:[#allocation10 + $0xad8] sm:$0xff]
    %v3393 = vld [vmem:[#allocation10 + $0xae0] sm:$0xff]
    %v3394 = vld [vmem:[#allocation10 + $0xae8] sm:$0xff]
    %v3395 = vld [vmem:[#allocation10 + $0xaf0] sm:$0xff]
    %v3396 = vld [vmem:[#allocation10 + $0xaf8] sm:$0xff]
    %v3397 = vld [vmem:[#allocation10 + $0xb00] sm:$0xff]
    %v3398 = vld [vmem:[#allocation10 + $0xb08] sm:$0xff]
    %v3399 = vld [vmem:[#allocation10 + $0xb10] sm:$0xff]
    %v3400 = vld [vmem:[#allocation10 + $0xb18] sm:$0xff]
    %v3401 = vld [vmem:[#allocation10 + $0xb20] sm:$0xff]
    %v3402 = vld [vmem:[#allocation10 + $0xb28] sm:$0xff]
    %v3403 = vld [vmem:[#allocation10 + $0xb30] sm:$0xff]
    %v3404 = vld [vmem:[#allocation10 + $0xb38] sm:$0xff]
    %v3405 = vld [vmem:[#allocation10 + $0xb40] sm:$0xff]
    %v3406 = vld [vmem:[#allocation10 + $0xb48] sm:$0xff]
    %v3407 = vld [vmem:[#allocation10 + $0xb50] sm:$0xff]
    %v3408 = vld [vmem:[#allocation10 + $0xb58] sm:$0xff]
    %v3409 = vld [vmem:[#allocation10 + $0xb60] sm:$0xff]
    %v3410 = vld [vmem:[#allocation10 + $0xb68] sm:$0xff]
    %v3411 = vld [vmem:[#allocation10 + $0xb70] sm:$0xff]
    %v3412 = vld [vmem:[#allocation10 + $0xb78] sm:$0xff]
    %v3413 = vld [vmem:[#allocation10 + $0xb80] sm:$0xff]
    %v3414 = vld [vmem:[#allocation10 + $0xb88] sm:$0xff]
    %v3415 = vld [vmem:[#allocation10 + $0xb90] sm:$0xff]
    %v3416 = vld [vmem:[#allocation10 + $0xb98] sm:$0xff]
    %v3417 = vld [vmem:[#allocation10 + $0xba0] sm:$0xff]
    %v3418 = vld [vmem:[#allocation10 + $0xba8] sm:$0xff]
    %v3419 = vld [vmem:[#allocation10 + $0xbb0] sm:$0xff]
    %v3420 = vld [vmem:[#allocation10 + $0xbb8] sm:$0xff]
    %v3421 = vld [vmem:[#allocation10 + $0xbc0] sm:$0xff]
    %v3422 = vld [vmem:[#allocation10 + $0xbc8] sm:$0xff]
    %v3423 = vld [vmem:[#allocation10 + $0xbd0] sm:$0xff]
    %v3424 = vld [vmem:[#allocation10 + $0xbd8] sm:$0xff]
    %v3425 = vld [vmem:[#allocation10 + $0xbe0] sm:$0xff]
    %v3426 = vld [vmem:[#allocation10 + $0xbe8] sm:$0xff]
    %v3427 = vld [vmem:[#allocation10 + $0xbf0] sm:$0xff]
    %v3428 = vld [vmem:[#allocation10 + $0xbf8] sm:$0xff]
    %3429 = vmatprep.subr.mxu0 0.0
    %3430 = vmatpush1.xpose.msra.mxu0 0.0
    %3431 = vmatprep.subr.mxu0 0.0
    %3432 = vmatpush1.xpose.msra.mxu0 0.0
    %3433 = vmatprep.subr.mxu0 0.0
    %3434 = vmatpush1.xpose.msra.mxu0 0.0
    %3435 = vmatprep.subr.mxu0 0.0
    %3436 = vmatpush1.xpose.msra.mxu0 0.0
    %3437 = vmatprep.subr.mxu0 0.0
    %3438 = vmatpush1.xpose.msra.mxu0 0.0
    %3439 = vmatprep.subr.mxu0 0.0
    %3440 = vmatpush1.xpose.msra.mxu0 0.0
    %3441 = vmatprep.subr.mxu0 0.0
    %3442 = vmatpush1.xpose.msra.mxu0 0.0
    %3443 = vmatprep.subr.mxu0 0.0
    %3444 = vmatpush1.xpose.msra.mxu0 0.0
    %3445 = vmatprep.subr.mxu0 0.0
    %3446 = vmatpush1.xpose.msra.mxu0 0.0
    %3447 = vmatprep.subr.mxu0 0.0
    %3448 = vmatpush1.xpose.msra.mxu0 0.0
    %3449 = vmatprep.subr.mxu0 0.0
    %3450 = vmatpush1.xpose.msra.mxu0 0.0
    %3451 = vmatprep.subr.mxu0 0.0
    %3452 = vmatpush1.xpose.msra.mxu0 0.0
    %3453 = vmatprep.subr.mxu0 0.0
    %3454 = vmatpush1.xpose.msra.mxu0 0.0
    %3455 = vmatprep.subr.mxu0 0.0
    %3456 = vmatpush1.xpose.msra.mxu0 0.0
    %3457 = vmatprep.subr.mxu0 0.0
    %3458 = vmatpush1.xpose.msra.mxu0 0.0
    %3459 = vmatprep.subr.mxu0 %v3043
    %3460 = vmatpush1.xpose.msra.mxu0 %v3042
    %3461 = vmatprep.subr.mxu0 0.0
    %3462 = vmatpush2.xpose.msra.mxu0 0.0
    %3463 = vmatprep.subr.mxu0 0.0
    %3464 = vmatpush2.xpose.msra.mxu0 0.0
    %3465 = vmatprep.subr.mxu0 0.0
    %3466 = vmatpush2.xpose.msra.mxu0 0.0
    %3467 = vmatprep.subr.mxu0 0.0
    %3468 = vmatpush2.xpose.msra.mxu0 0.0
    %3469 = vmatprep.subr.mxu0 0.0
    %3470 = vmatpush2.xpose.msra.mxu0 0.0
    %3471 = vmatprep.subr.mxu0 0.0
    %3472 = vmatpush2.xpose.msra.mxu0 0.0
    %3473 = vmatprep.subr.mxu0 0.0
    %3474 = vmatpush2.xpose.msra.mxu0 0.0
    %3475 = vmatprep.subr.mxu0 0.0
    %3476 = vmatpush2.xpose.msra.mxu0 0.0
    %3477 = vmatprep.subr.mxu0 0.0
    %3478 = vmatpush2.xpose.msra.mxu0 0.0
    %3479 = vmatprep.subr.mxu0 0.0
    %3480 = vmatpush2.xpose.msra.mxu0 0.0
    %3481 = vmatprep.subr.mxu0 0.0
    %3482 = vmatpush2.xpose.msra.mxu0 0.0
    %3483 = vmatprep.subr.mxu0 0.0
    %3484 = vmatpush2.xpose.msra.mxu0 0.0
    %3485 = vmatprep.subr.mxu0 0.0
    %3486 = vmatpush2.xpose.msra.mxu0 0.0
    %3487 = vmatprep.subr.mxu0 0.0
    %3488 = vmatpush2.xpose.msra.mxu0 0.0
    %3489 = vmatprep.subr.mxu0 0.0
    %3490 = vmatpush2.xpose.msra.mxu0 0.0
    %3491 = vmatprep.subr.mxu0 0.0
    %3492 = vmatpush2.xpose.msra.mxu0 0.0
    %3493 = vmatprep.mubr.f32.mxu0 %v3046
    %3494 = vmatmul.mubr.f32.gmra.mxu0 %v3045
    %v3495 = vpop.f32.mrf.mxu0
    %v3496 = vadd.f32 0.0, %v3495
    %v3497 = vpop.f32.mrf.mxu0
    %3498 = vmatprep.mubr.f32.mxu0 %v3049
    %3499 = vmatmul.mubr.f32.gmra.mxu0 %v3048
    %v3500 = vpop.f32.mrf.mxu0
    %v3501 = vadd.f32 0.0, %v3500
    %v3502 = vpop.f32.mrf.mxu0
    %3503 = vmatprep.mubr.f32.mxu0 %v3052
    %3504 = vmatmul.mubr.f32.gmra.mxu0 %v3051
    %v3505 = vpop.f32.mrf.mxu0
    %v3506 = vadd.f32 0.0, %v3505
    %v3507 = vpop.f32.mrf.mxu0
    %3508 = vmatprep.mubr.f32.mxu0 %v3055
    %3509 = vmatmul.mubr.f32.gmra.mxu0 %v3054
    %v3510 = vpop.f32.mrf.mxu0
    %v3511 = vadd.f32 0.0, %v3510
    %v3512 = vpop.f32.mrf.mxu0
    %3513 = vmatprep.mubr.f32.mxu0 %v3058
    %3514 = vmatmul.mubr.f32.gmra.mxu0 %v3057
    %v3515 = vpop.f32.mrf.mxu0
    %v3516 = vadd.f32 0.0, %v3515
    %v3517 = vpop.f32.mrf.mxu0
    %3518 = vmatprep.mubr.f32.mxu0 %v3061
    %3519 = vmatmul.mubr.f32.gmra.mxu0 %v3060
    %v3520 = vpop.f32.mrf.mxu0
    %v3521 = vadd.f32 0.0, %v3520
    %v3522 = vpop.f32.mrf.mxu0
    %3523 = vmatprep.mubr.f32.mxu0 %v3064
    %3524 = vmatmul.mubr.f32.gmra.mxu0 %v3063
    %v3525 = vpop.f32.mrf.mxu0
    %v3526 = vadd.f32 0.0, %v3525
    %v3527 = vpop.f32.mrf.mxu0
    %3528 = vmatprep.mubr.f32.mxu0 %v3067
    %3529 = vmatmul.mubr.f32.gmra.mxu0 %v3066
    %v3530 = vpop.f32.mrf.mxu0
    %v3531 = vadd.f32 0.0, %v3530
    %v3532 = vpop.f32.mrf.mxu0
    %3533 = vmatprep.mubr.f32.mxu0 %v3070
    %3534 = vmatmul.mubr.f32.gmra.mxu0 %v3069
    %v3535 = vpop.f32.mrf.mxu0
    %v3536 = vadd.f32 0.0, %v3535
    %v3537 = vpop.f32.mrf.mxu0
    %3538 = vmatprep.mubr.f32.mxu0 %v3073
    %3539 = vmatmul.mubr.f32.gmra.mxu0 %v3072
    %v3540 = vpop.f32.mrf.mxu0
    %v3541 = vadd.f32 0.0, %v3540
    %v3542 = vpop.f32.mrf.mxu0
    %3543 = vmatprep.mubr.f32.mxu0 %v3076
    %3544 = vmatmul.mubr.f32.gmra.mxu0 %v3075
    %v3545 = vpop.f32.mrf.mxu0
    %v3546 = vadd.f32 0.0, %v3545
    %v3547 = vpop.f32.mrf.mxu0
    %3548 = vmatprep.mubr.f32.mxu0 %v3079
    %3549 = vmatmul.mubr.f32.gmra.mxu0 %v3078
    %v3550 = vpop.f32.mrf.mxu0
    %v3551 = vadd.f32 0.0, %v3550
    %v3552 = vpop.f32.mrf.mxu0
    %3553 = vmatprep.mubr.f32.mxu0 %v3082
    %3554 = vmatmul.mubr.f32.gmra.mxu0 %v3081
    %v3555 = vpop.f32.mrf.mxu0
    %v3556 = vadd.f32 0.0, %v3555
    %v3557 = vpop.f32.mrf.mxu0
    %3558 = vmatprep.mubr.f32.mxu0 %v3085
    %3559 = vmatmul.mubr.f32.gmra.mxu0 %v3084
    %v3560 = vpop.f32.mrf.mxu0
    %v3561 = vadd.f32 0.0, %v3560
    %v3562 = vpop.f32.mrf.mxu0
    %3563 = vmatprep.mubr.f32.mxu0 %v3088
    %3564 = vmatmul.mubr.f32.gmra.mxu0 %v3087
    %v3565 = vpop.f32.mrf.mxu0
    %v3566 = vadd.f32 0.0, %v3565
    %v3567 = vpop.f32.mrf.mxu0
    %3568 = vmatprep.mubr.f32.mxu0 %v3091
    %3569 = vmatmul.mubr.f32.gmra.mxu0 %v3090
    %v3570 = vpop.f32.mrf.mxu0
    %v3571 = vadd.f32 0.0, %v3570
    %v3572 = vpop.f32.mrf.mxu0
    %3573 = vmatprep.mubr.f32.mxu0 %v3094
    %3574 = vmatmul.mubr.f32.gmra.mxu0 %v3093
    %v3575 = vpop.f32.mrf.mxu0
    %v3576 = vadd.f32 0.0, %v3575
    %v3577 = vpop.f32.mrf.mxu0
    %3578 = vmatprep.mubr.f32.mxu0 %v3097
    %3579 = vmatmul.mubr.f32.gmra.mxu0 %v3096
    %v3580 = vpop.f32.mrf.mxu0
    %v3581 = vadd.f32 0.0, %v3580
    %v3582 = vpop.f32.mrf.mxu0
    %3583 = vmatprep.mubr.f32.mxu0 %v3100
    %3584 = vmatmul.mubr.f32.gmra.mxu0 %v3099
    %v3585 = vpop.f32.mrf.mxu0
    %v3586 = vadd.f32 0.0, %v3585
    %v3587 = vpop.f32.mrf.mxu0
    %3588 = vmatprep.mubr.f32.mxu0 %v3103
    %3589 = vmatmul.mubr.f32.gmra.mxu0 %v3102
    %v3590 = vpop.f32.mrf.mxu0
    %v3591 = vadd.f32 0.0, %v3590
    %v3592 = vpop.f32.mrf.mxu0
    %3593 = vmatprep.mubr.f32.mxu0 %v3106
    %3594 = vmatmul.mubr.f32.gmra.mxu0 %v3105
    %v3595 = vpop.f32.mrf.mxu0
    %v3596 = vadd.f32 0.0, %v3595
    %v3597 = vpop.f32.mrf.mxu0
    %3598 = vmatprep.mubr.f32.mxu0 %v3109
    %3599 = vmatmul.mubr.f32.gmra.mxu0 %v3108
    %v3600 = vpop.f32.mrf.mxu0
    %v3601 = vadd.f32 0.0, %v3600
    %v3602 = vpop.f32.mrf.mxu0
    %3603 = vmatprep.mubr.f32.mxu0 %v3112
    %3604 = vmatmul.mubr.f32.gmra.mxu0 %v3111
    %v3605 = vpop.f32.mrf.mxu0
    %v3606 = vadd.f32 0.0, %v3605
    %v3607 = vpop.f32.mrf.mxu0
    %3608 = vmatprep.mubr.f32.mxu0 %v3115
    %3609 = vmatmul.mubr.f32.gmra.mxu0 %v3114
    %v3610 = vpop.f32.mrf.mxu0
    %v3611 = vadd.f32 0.0, %v3610
    %v3612 = vpop.f32.mrf.mxu0
    %3613 = vmatprep.mubr.f32.mxu0 %v3118
    %3614 = vmatmul.mubr.f32.gmra.mxu0 %v3117
    %v3615 = vpop.f32.mrf.mxu0
    %v3616 = vadd.f32 0.0, %v3615
    %v3617 = vpop.f32.mrf.mxu0
    %3618 = vmatprep.mubr.f32.mxu0 %v3121
    %3619 = vmatmul.mubr.f32.gmra.mxu0 %v3120
    %v3620 = vpop.f32.mrf.mxu0
    %v3621 = vadd.f32 0.0, %v3620
    %v3622 = vpop.f32.mrf.mxu0
    %3623 = vmatprep.mubr.f32.mxu0 %v3124
    %3624 = vmatmul.mubr.f32.gmra.mxu0 %v3123
    %v3625 = vpop.f32.mrf.mxu0
    %v3626 = vadd.f32 0.0, %v3625
    %v3627 = vpop.f32.mrf.mxu0
    %3628 = vmatprep.mubr.f32.mxu0 %v3127
    %3629 = vmatmul.mubr.f32.gmra.mxu0 %v3126
    %v3630 = vpop.f32.mrf.mxu0
    %v3631 = vadd.f32 0.0, %v3630
    %v3632 = vpop.f32.mrf.mxu0
    %3633 = vmatprep.mubr.f32.mxu0 %v3130
    %3634 = vmatmul.mubr.f32.gmra.mxu0 %v3129
    %v3635 = vpop.f32.mrf.mxu0
    %v3636 = vadd.f32 0.0, %v3635
    %v3637 = vpop.f32.mrf.mxu0
    %3638 = vmatprep.mubr.f32.mxu0 %v3133
    %3639 = vmatmul.mubr.f32.gmra.mxu0 %v3132
    %v3640 = vpop.f32.mrf.mxu0
    %v3641 = vadd.f32 0.0, %v3640
    %v3642 = vpop.f32.mrf.mxu0
    %3643 = vmatprep.mubr.f32.mxu0 %v3136
    %3644 = vmatmul.mubr.f32.gmra.mxu0 %v3135
    %v3645 = vpop.f32.mrf.mxu0
    %v3646 = vadd.f32 0.0, %v3645
    %v3647 = vpop.f32.mrf.mxu0
    %3648 = vmatprep.mubr.f32.mxu0 %v3139
    %3649 = vmatmul.mubr.f32.gmra.mxu0 %v3138
    %v3650 = vpop.f32.mrf.mxu0
    %v3651 = vadd.f32 0.0, %v3650
    %v3652 = vpop.f32.mrf.mxu0
    %3653 = vmatprep.mubr.f32.mxu0 %v3142
    %3654 = vmatmul.mubr.f32.gmra.mxu0 %v3141
    %v3655 = vpop.f32.mrf.mxu0
    %v3656 = vadd.f32 0.0, %v3655
    %v3657 = vpop.f32.mrf.mxu0
    %3658 = vmatprep.mubr.f32.mxu0 %v3145
    %3659 = vmatmul.mubr.f32.gmra.mxu0 %v3144
    %v3660 = vpop.f32.mrf.mxu0
    %v3661 = vadd.f32 0.0, %v3660
    %v3662 = vpop.f32.mrf.mxu0
    %3663 = vmatprep.mubr.f32.mxu0 %v3148
    %3664 = vmatmul.mubr.f32.gmra.mxu0 %v3147
    %v3665 = vpop.f32.mrf.mxu0
    %v3666 = vadd.f32 0.0, %v3665
    %v3667 = vpop.f32.mrf.mxu0
    %3668 = vmatprep.mubr.f32.mxu0 %v3151
    %3669 = vmatmul.mubr.f32.gmra.mxu0 %v3150
    %v3670 = vpop.f32.mrf.mxu0
    %v3671 = vadd.f32 0.0, %v3670
    %v3672 = vpop.f32.mrf.mxu0
    %3673 = vmatprep.mubr.f32.mxu0 %v3154
    %3674 = vmatmul.mubr.f32.gmra.mxu0 %v3153
    %v3675 = vpop.f32.mrf.mxu0
    %v3676 = vadd.f32 0.0, %v3675
    %v3677 = vpop.f32.mrf.mxu0
    %3678 = vmatprep.mubr.f32.mxu0 %v3157
    %3679 = vmatmul.mubr.f32.gmra.mxu0 %v3156
    %v3680 = vpop.f32.mrf.mxu0
    %v3681 = vadd.f32 0.0, %v3680
    %v3682 = vpop.f32.mrf.mxu0
    %3683 = vmatprep.mubr.f32.mxu0 %v3160
    %3684 = vmatmul.mubr.f32.gmra.mxu0 %v3159
    %v3685 = vpop.f32.mrf.mxu0
    %v3686 = vadd.f32 0.0, %v3685
    %v3687 = vpop.f32.mrf.mxu0
    %3688 = vmatprep.mubr.f32.mxu0 %v3163
    %3689 = vmatmul.mubr.f32.gmra.mxu0 %v3162
    %v3690 = vpop.f32.mrf.mxu0
    %v3691 = vadd.f32 0.0, %v3690
    %v3692 = vpop.f32.mrf.mxu0
    %3693 = vmatprep.mubr.f32.mxu0 %v3166
    %3694 = vmatmul.mubr.f32.gmra.mxu0 %v3165
    %v3695 = vpop.f32.mrf.mxu0
    %v3696 = vadd.f32 0.0, %v3695
    %v3697 = vpop.f32.mrf.mxu0
    %3698 = vmatprep.mubr.f32.mxu0 %v3169
    %3699 = vmatmul.mubr.f32.gmra.mxu0 %v3168
    %v3700 = vpop.f32.mrf.mxu0
    %v3701 = vadd.f32 0.0, %v3700
    %v3702 = vpop.f32.mrf.mxu0
    %3703 = vmatprep.mubr.f32.mxu0 %v3172
    %3704 = vmatmul.mubr.f32.gmra.mxu0 %v3171
    %v3705 = vpop.f32.mrf.mxu0
    %v3706 = vadd.f32 0.0, %v3705
    %v3707 = vpop.f32.mrf.mxu0
    %3708 = vmatprep.mubr.f32.mxu0 %v3175
    %3709 = vmatmul.mubr.f32.gmra.mxu0 %v3174
    %v3710 = vpop.f32.mrf.mxu0
    %v3711 = vadd.f32 0.0, %v3710
    %v3712 = vpop.f32.mrf.mxu0
    %3713 = vmatprep.mubr.f32.mxu0 %v3178
    %3714 = vmatmul.mubr.f32.gmra.mxu0 %v3177
    %v3715 = vpop.f32.mrf.mxu0
    %v3716 = vadd.f32 0.0, %v3715
    %v3717 = vpop.f32.mrf.mxu0
    %3718 = vmatprep.mubr.f32.mxu0 %v3181
    %3719 = vmatmul.mubr.f32.gmra.mxu0 %v3180
    %v3720 = vpop.f32.mrf.mxu0
    %v3721 = vadd.f32 0.0, %v3720
    %v3722 = vpop.f32.mrf.mxu0
    %3723 = vmatprep.mubr.f32.mxu0 %v3184
    %3724 = vmatmul.mubr.f32.gmra.mxu0 %v3183
    %v3725 = vpop.f32.mrf.mxu0
    %v3726 = vadd.f32 0.0, %v3725
    %v3727 = vpop.f32.mrf.mxu0
    %3728 = vmatprep.mubr.f32.mxu0 %v3187
    %3729 = vmatmul.mubr.f32.gmra.mxu0 %v3186
    %v3730 = vpop.f32.mrf.mxu0
    %v3731 = vadd.f32 0.0, %v3730
    %v3732 = vpop.f32.mrf.mxu0
    %3733 = vmatprep.mubr.f32.mxu0 %v3190
    %3734 = vmatmul.mubr.f32.gmra.mxu0 %v3189
    %v3735 = vpop.f32.mrf.mxu0
    %v3736 = vadd.f32 0.0, %v3735
    %v3737 = vpop.f32.mrf.mxu0
    %3738 = vmatprep.mubr.f32.mxu0 %v3193
    %3739 = vmatmul.mubr.f32.gmra.mxu0 %v3192
    %v3740 = vpop.f32.mrf.mxu0
    %v3741 = vadd.f32 0.0, %v3740
    %v3742 = vpop.f32.mrf.mxu0
    %3743 = vmatprep.mubr.f32.mxu0 %v3196
    %3744 = vmatmul.mubr.f32.gmra.mxu0 %v3195
    %v3745 = vpop.f32.mrf.mxu0
    %v3746 = vadd.f32 0.0, %v3745
    %v3747 = vpop.f32.mrf.mxu0
    %3748 = vmatprep.mubr.f32.mxu0 %v3199
    %3749 = vmatmul.mubr.f32.gmra.mxu0 %v3198
    %v3750 = vpop.f32.mrf.mxu0
    %v3751 = vadd.f32 0.0, %v3750
    %v3752 = vpop.f32.mrf.mxu0
    %3753 = vmatprep.mubr.f32.mxu0 %v3202
    %3754 = vmatmul.mubr.f32.gmra.mxu0 %v3201
    %v3755 = vpop.f32.mrf.mxu0
    %v3756 = vadd.f32 0.0, %v3755
    %v3757 = vpop.f32.mrf.mxu0
    %3758 = vmatprep.mubr.f32.mxu0 %v3205
    %3759 = vmatmul.mubr.f32.gmra.mxu0 %v3204
    %v3760 = vpop.f32.mrf.mxu0
    %v3761 = vadd.f32 0.0, %v3760
    %v3762 = vpop.f32.mrf.mxu0
    %3763 = vmatprep.mubr.f32.mxu0 %v3208
    %3764 = vmatmul.mubr.f32.gmra.mxu0 %v3207
    %v3765 = vpop.f32.mrf.mxu0
    %v3766 = vadd.f32 0.0, %v3765
    %v3767 = vpop.f32.mrf.mxu0
    %3768 = vmatprep.mubr.f32.mxu0 %v3211
    %3769 = vmatmul.mubr.f32.gmra.mxu0 %v3210
    %v3770 = vpop.f32.mrf.mxu0
    %v3771 = vadd.f32 0.0, %v3770
    %v3772 = vpop.f32.mrf.mxu0
    %3773 = vmatprep.mubr.f32.mxu0 %v3214
    %3774 = vmatmul.mubr.f32.gmra.mxu0 %v3213
    %v3775 = vpop.f32.mrf.mxu0
    %v3776 = vadd.f32 0.0, %v3775
    %v3777 = vpop.f32.mrf.mxu0
    %3778 = vmatprep.mubr.f32.mxu0 %v3217
    %3779 = vmatmul.mubr.f32.gmra.mxu0 %v3216
    %v3780 = vpop.f32.mrf.mxu0
    %v3781 = vadd.f32 0.0, %v3780
    %v3782 = vpop.f32.mrf.mxu0
    %3783 = vmatprep.mubr.f32.mxu0 %v3220
    %3784 = vmatmul.mubr.f32.gmra.mxu0 %v3219
    %v3785 = vpop.f32.mrf.mxu0
    %v3786 = vadd.f32 0.0, %v3785
    %v3787 = vpop.f32.mrf.mxu0
    %3788 = vmatprep.mubr.f32.mxu0 %v3223
    %3789 = vmatmul.mubr.f32.gmra.mxu0 %v3222
    %v3790 = vpop.f32.mrf.mxu0
    %v3791 = vadd.f32 0.0, %v3790
    %v3792 = vpop.f32.mrf.mxu0
    %3793 = vmatprep.mubr.f32.mxu0 %v3226
    %3794 = vmatmul.mubr.f32.gmra.mxu0 %v3225
    %v3795 = vpop.f32.mrf.mxu0
    %v3796 = vadd.f32 0.0, %v3795
    %v3797 = vpop.f32.mrf.mxu0
    %3798 = vmatprep.mubr.f32.mxu0 %v3229
    %3799 = vmatmul.mubr.f32.gmra.mxu0 %v3228
    %v3800 = vpop.f32.mrf.mxu0
    %v3801 = vadd.f32 0.0, %v3800
    %v3802 = vpop.f32.mrf.mxu0
    %3803 = vmatprep.mubr.f32.mxu0 %v3232
    %3804 = vmatmul.mubr.f32.gmra.mxu0 %v3231
    %v3805 = vpop.f32.mrf.mxu0
    %v3806 = vadd.f32 0.0, %v3805
    %v3807 = vpop.f32.mrf.mxu0
    %3808 = vmatprep.mubr.f32.mxu0 %v3235
    %3809 = vmatmul.mubr.f32.gmra.mxu0 %v3234
    %v3810 = vpop.f32.mrf.mxu0
    %v3811 = vadd.f32 0.0, %v3810
    %v3812 = vpop.f32.mrf.mxu0
    %3813 = vmatprep.mubr.f32.mxu0 %v3238
    %3814 = vmatmul.mubr.f32.gmra.mxu0 %v3237
    %v3815 = vpop.f32.mrf.mxu0
    %v3816 = vadd.f32 0.0, %v3815
    %v3817 = vpop.f32.mrf.mxu0
    %3818 = vmatprep.mubr.f32.mxu0 %v3241
    %3819 = vmatmul.mubr.f32.gmra.mxu0 %v3240
    %v3820 = vpop.f32.mrf.mxu0
    %v3821 = vadd.f32 0.0, %v3820
    %v3822 = vpop.f32.mrf.mxu0
    %3823 = vmatprep.mubr.f32.mxu0 %v3244
    %3824 = vmatmul.mubr.f32.gmra.mxu0 %v3243
    %v3825 = vpop.f32.mrf.mxu0
    %v3826 = vadd.f32 0.0, %v3825
    %v3827 = vpop.f32.mrf.mxu0
    %3828 = vmatprep.mubr.f32.mxu0 %v3247
    %3829 = vmatmul.mubr.f32.gmra.mxu0 %v3246
    %v3830 = vpop.f32.mrf.mxu0
    %v3831 = vadd.f32 0.0, %v3830
    %v3832 = vpop.f32.mrf.mxu0
    %3833 = vmatprep.mubr.f32.mxu0 %v3250
    %3834 = vmatmul.mubr.f32.gmra.mxu0 %v3249
    %v3835 = vpop.f32.mrf.mxu0
    %v3836 = vadd.f32 0.0, %v3835
    %v3837 = vpop.f32.mrf.mxu0
    %3838 = vmatprep.mubr.f32.mxu0 %v3253
    %3839 = vmatmul.mubr.f32.gmra.mxu0 %v3252
    %v3840 = vpop.f32.mrf.mxu0
    %v3841 = vadd.f32 0.0, %v3840
    %v3842 = vpop.f32.mrf.mxu0
    %3843 = vmatprep.mubr.f32.mxu0 %v3256
    %3844 = vmatmul.mubr.f32.gmra.mxu0 %v3255
    %v3845 = vpop.f32.mrf.mxu0
    %v3846 = vadd.f32 0.0, %v3845
    %v3847 = vpop.f32.mrf.mxu0
    %3848 = vmatprep.mubr.f32.mxu0 %v3259
    %3849 = vmatmul.mubr.f32.gmra.mxu0 %v3258
    %v3850 = vpop.f32.mrf.mxu0
    %v3851 = vadd.f32 0.0, %v3850
    %v3852 = vpop.f32.mrf.mxu0
    %3853 = vmatprep.mubr.f32.mxu0 %v3262
    %3854 = vmatmul.mubr.f32.gmra.mxu0 %v3261
    %v3855 = vpop.f32.mrf.mxu0
    %v3856 = vadd.f32 0.0, %v3855
    %v3857 = vpop.f32.mrf.mxu0
    %3858 = vmatprep.mubr.f32.mxu0 %v3265
    %3859 = vmatmul.mubr.f32.gmra.mxu0 %v3264
    %v3860 = vpop.f32.mrf.mxu0
    %v3861 = vadd.f32 0.0, %v3860
    %v3862 = vpop.f32.mrf.mxu0
    %3863 = vmatprep.mubr.f32.mxu0 %v3268
    %3864 = vmatmul.mubr.f32.gmra.mxu0 %v3267
    %v3865 = vpop.f32.mrf.mxu0
    %v3866 = vadd.f32 0.0, %v3865
    %v3867 = vpop.f32.mrf.mxu0
    %3868 = vmatprep.mubr.f32.mxu0 %v3271
    %3869 = vmatmul.mubr.f32.gmra.mxu0 %v3270
    %v3870 = vpop.f32.mrf.mxu0
    %v3871 = vadd.f32 0.0, %v3870
    %v3872 = vpop.f32.mrf.mxu0
    %3873 = vmatprep.mubr.f32.mxu0 %v3274
    %3874 = vmatmul.mubr.f32.gmra.mxu0 %v3273
    %v3875 = vpop.f32.mrf.mxu0
    %v3876 = vadd.f32 0.0, %v3875
    %v3877 = vpop.f32.mrf.mxu0
    %3878 = vmatprep.mubr.f32.mxu0 %v3277
    %3879 = vmatmul.mubr.f32.gmra.mxu0 %v3276
    %v3880 = vpop.f32.mrf.mxu0
    %v3881 = vadd.f32 0.0, %v3880
    %v3882 = vpop.f32.mrf.mxu0
    %3883 = vmatprep.mubr.f32.mxu0 %v3280
    %3884 = vmatmul.mubr.f32.gmra.mxu0 %v3279
    %v3885 = vpop.f32.mrf.mxu0
    %v3886 = vadd.f32 0.0, %v3885
    %v3887 = vpop.f32.mrf.mxu0
    %3888 = vmatprep.mubr.f32.mxu0 %v3283
    %3889 = vmatmul.mubr.f32.gmra.mxu0 %v3282
    %v3890 = vpop.f32.mrf.mxu0
    %v3891 = vadd.f32 0.0, %v3890
    %v3892 = vpop.f32.mrf.mxu0
    %3893 = vmatprep.mubr.f32.mxu0 %v3286
    %3894 = vmatmul.mubr.f32.gmra.mxu0 %v3285
    %v3895 = vpop.f32.mrf.mxu0
    %v3896 = vadd.f32 0.0, %v3895
    %v3897 = vpop.f32.mrf.mxu0
    %3898 = vmatprep.mubr.f32.mxu0 %v3289
    %3899 = vmatmul.mubr.f32.gmra.mxu0 %v3288
    %v3900 = vpop.f32.mrf.mxu0
    %v3901 = vadd.f32 0.0, %v3900
    %v3902 = vpop.f32.mrf.mxu0
    %3903 = vmatprep.mubr.f32.mxu0 %v3292
    %3904 = vmatmul.mubr.f32.gmra.mxu0 %v3291
    %v3905 = vpop.f32.mrf.mxu0
    %v3906 = vadd.f32 0.0, %v3905
    %v3907 = vpop.f32.mrf.mxu0
    %3908 = vmatprep.mubr.f32.mxu0 %v3295
    %3909 = vmatmul.mubr.f32.gmra.mxu0 %v3294
    %v3910 = vpop.f32.mrf.mxu0
    %v3911 = vadd.f32 0.0, %v3910
    %v3912 = vpop.f32.mrf.mxu0
    %3913 = vmatprep.mubr.f32.mxu0 %v3298
    %3914 = vmatmul.mubr.f32.gmra.mxu0 %v3297
    %v3915 = vpop.f32.mrf.mxu0
    %v3916 = vadd.f32 0.0, %v3915
    %v3917 = vpop.f32.mrf.mxu0
    %3918 = vmatprep.mubr.f32.mxu0 %v3301
    %3919 = vmatmul.mubr.f32.gmra.mxu0 %v3300
    %v3920 = vpop.f32.mrf.mxu0
    %v3921 = vadd.f32 0.0, %v3920
    %v3922 = vpop.f32.mrf.mxu0
    %3923 = vmatprep.mubr.f32.mxu0 %v3304
    %3924 = vmatmul.mubr.f32.gmra.mxu0 %v3303
    %v3925 = vpop.f32.mrf.mxu0
    %v3926 = vadd.f32 0.0, %v3925
    %v3927 = vpop.f32.mrf.mxu0
    %3928 = vmatprep.mubr.f32.mxu0 %v3307
    %3929 = vmatmul.mubr.f32.gmra.mxu0 %v3306
    %v3930 = vpop.f32.mrf.mxu0
    %v3931 = vadd.f32 0.0, %v3930
    %v3932 = vpop.f32.mrf.mxu0
    %3933 = vmatprep.mubr.f32.mxu0 %v3310
    %3934 = vmatmul.mubr.f32.gmra.mxu0 %v3309
    %v3935 = vpop.f32.mrf.mxu0
    %v3936 = vadd.f32 0.0, %v3935
    %v3937 = vpop.f32.mrf.mxu0
    %3938 = vmatprep.mubr.f32.mxu0 %v3313
    %3939 = vmatmul.mubr.f32.gmra.mxu0 %v3312
    %v3940 = vpop.f32.mrf.mxu0
    %v3941 = vadd.f32 0.0, %v3940
    %v3942 = vpop.f32.mrf.mxu0
    %3943 = vmatprep.mubr.f32.mxu0 %v3316
    %3944 = vmatmul.mubr.f32.gmra.mxu0 %v3315
    %v3945 = vpop.f32.mrf.mxu0
    %v3946 = vadd.f32 0.0, %v3945
    %v3947 = vpop.f32.mrf.mxu0
    %3948 = vmatprep.mubr.f32.mxu0 %v3319
    %3949 = vmatmul.mubr.f32.gmra.mxu0 %v3318
    %v3950 = vpop.f32.mrf.mxu0
    %v3951 = vadd.f32 0.0, %v3950
    %v3952 = vpop.f32.mrf.mxu0
    %3953 = vmatprep.mubr.f32.mxu0 %v3322
    %3954 = vmatmul.mubr.f32.gmra.mxu0 %v3321
    %v3955 = vpop.f32.mrf.mxu0
    %v3956 = vadd.f32 0.0, %v3955
    %v3957 = vpop.f32.mrf.mxu0
    %3958 = vmatprep.mubr.f32.mxu0 %v3325
    %3959 = vmatmul.mubr.f32.gmra.mxu0 %v3324
    %v3960 = vpop.f32.mrf.mxu0
    %v3961 = vadd.f32 0.0, %v3960
    %v3962 = vpop.f32.mrf.mxu0
    %3963 = vmatprep.mubr.f32.mxu0 %v3328
    %3964 = vmatmul.mubr.f32.gmra.mxu0 %v3327
    %v3965 = vpop.f32.mrf.mxu0
    %v3966 = vadd.f32 0.0, %v3965
    %v3967 = vpop.f32.mrf.mxu0
    %3968 = vmatprep.mubr.f32.mxu0 %v3331
    %3969 = vmatmul.mubr.f32.gmra.mxu0 %v3330
    %v3970 = vpop.f32.mrf.mxu0
    %v3971 = vadd.f32 0.0, %v3970
    %v3972 = vpop.f32.mrf.mxu0
    %3973 = vmatprep.mubr.f32.mxu0 %v3334
    %3974 = vmatmul.mubr.f32.gmra.mxu0 %v3333
    %v3975 = vpop.f32.mrf.mxu0
    %v3976 = vadd.f32 0.0, %v3975
    %v3977 = vpop.f32.mrf.mxu0
    %3978 = vmatprep.mubr.f32.mxu0 %v3337
    %3979 = vmatmul.mubr.f32.gmra.mxu0 %v3336
    %v3980 = vpop.f32.mrf.mxu0
    %v3981 = vadd.f32 0.0, %v3980
    %v3982 = vpop.f32.mrf.mxu0
    %3983 = vmatprep.mubr.f32.mxu0 %v3340
    %3984 = vmatmul.mubr.f32.gmra.mxu0 %v3339
    %v3985 = vpop.f32.mrf.mxu0
    %v3986 = vadd.f32 0.0, %v3985
    %v3987 = vpop.f32.mrf.mxu0
    %3988 = vmatprep.mubr.f32.mxu0 %v3343
    %3989 = vmatmul.mubr.f32.gmra.mxu0 %v3342
    %v3990 = vpop.f32.mrf.mxu0
    %v3991 = vadd.f32 0.0, %v3990
    %v3992 = vpop.f32.mrf.mxu0
    %3993 = vmatprep.mubr.f32.mxu0 %v3346
    %3994 = vmatmul.mubr.f32.gmra.mxu0 %v3345
    %v3995 = vpop.f32.mrf.mxu0
    %v3996 = vadd.f32 0.0, %v3995
    %v3997 = vpop.f32.mrf.mxu0
    %3998 = vmatprep.mubr.f32.mxu0 %v3349
    %3999 = vmatmul.mubr.f32.gmra.mxu0 %v3348
    %v4000 = vpop.f32.mrf.mxu0
    %v4001 = vadd.f32 0.0, %v4000
    %v4002 = vpop.f32.mrf.mxu0
    %4003 = vmatprep.mubr.f32.mxu0 %v3352
    %4004 = vmatmul.mubr.f32.gmra.mxu0 %v3351
    %v4005 = vpop.f32.mrf.mxu0
    %v4006 = vadd.f32 0.0, %v4005
    %v4007 = vpop.f32.mrf.mxu0
    %4008 = vmatprep.mubr.f32.mxu0 %v3355
    %4009 = vmatmul.mubr.f32.gmra.mxu0 %v3354
    %v4010 = vpop.f32.mrf.mxu0
    %v4011 = vadd.f32 0.0, %v4010
    %v4012 = vpop.f32.mrf.mxu0
    %4013 = vmatprep.mubr.f32.mxu0 %v3358
    %4014 = vmatmul.mubr.f32.gmra.mxu0 %v3357
    %v4015 = vpop.f32.mrf.mxu0
    %v4016 = vadd.f32 0.0, %v4015
    %v4017 = vpop.f32.mrf.mxu0
    %4018 = vmatprep.mubr.f32.mxu0 %v3361
    %4019 = vmatmul.mubr.f32.gmra.mxu0 %v3360
    %v4020 = vpop.f32.mrf.mxu0
    %v4021 = vadd.f32 0.0, %v4020
    %v4022 = vpop.f32.mrf.mxu0
    %4023 = vmatprep.mubr.f32.mxu0 %v3364
    %4024 = vmatmul.mubr.f32.gmra.mxu0 %v3363
    %v4025 = vpop.f32.mrf.mxu0
    %v4026 = vadd.f32 0.0, %v4025
    %v4027 = vpop.f32.mrf.mxu0
    %4028 = vmatprep.mubr.f32.mxu0 %v3367
    %4029 = vmatmul.mubr.f32.gmra.mxu0 %v3366
    %v4030 = vpop.f32.mrf.mxu0
    %v4031 = vadd.f32 0.0, %v4030
    %v4032 = vpop.f32.mrf.mxu0
    %4033 = vmatprep.mubr.f32.mxu0 %v3370
    %4034 = vmatmul.mubr.f32.gmra.mxu0 %v3369
    %v4035 = vpop.f32.mrf.mxu0
    %v4036 = vadd.f32 0.0, %v4035
    %v4037 = vpop.f32.mrf.mxu0
    %4038 = vmatprep.mubr.f32.mxu0 %v3373
    %4039 = vmatmul.mubr.f32.gmra.mxu0 %v3372
    %v4040 = vpop.f32.mrf.mxu0
    %v4041 = vadd.f32 0.0, %v4040
    %v4042 = vpop.f32.mrf.mxu0
    %4043 = vmatprep.mubr.f32.mxu0 %v3376
    %4044 = vmatmul.mubr.f32.gmra.mxu0 %v3375
    %v4045 = vpop.f32.mrf.mxu0
    %v4046 = vadd.f32 0.0, %v4045
    %v4047 = vpop.f32.mrf.mxu0
    %4048 = vmatprep.mubr.f32.mxu0 %v3379
    %4049 = vmatmul.mubr.f32.gmra.mxu0 %v3378
    %v4050 = vpop.f32.mrf.mxu0
    %v4051 = vadd.f32 0.0, %v4050
    %v4052 = vpop.f32.mrf.mxu0
    %4053 = vmatprep.mubr.f32.mxu0 %v3382
    %4054 = vmatmul.mubr.f32.gmra.mxu0 %v3381
    %v4055 = vpop.f32.mrf.mxu0
    %v4056 = vadd.f32 0.0, %v4055
    %v4057 = vpop.f32.mrf.mxu0
    %4058 = vmatprep.mubr.f32.mxu0 %v3385
    %4059 = vmatmul.mubr.f32.gmra.mxu0 %v3384
    %v4060 = vpop.f32.mrf.mxu0
    %v4061 = vadd.f32 0.0, %v4060
    %v4062 = vpop.f32.mrf.mxu0
    %4063 = vmatprep.mubr.f32.mxu0 %v3388
    %4064 = vmatmul.mubr.f32.gmra.mxu0 %v3387
    %v4065 = vpop.f32.mrf.mxu0
    %v4066 = vadd.f32 0.0, %v4065
    %v4067 = vpop.f32.mrf.mxu0
    %4068 = vmatprep.mubr.f32.mxu0 %v3391
    %4069 = vmatmul.mubr.f32.gmra.mxu0 %v3390
    %v4070 = vpop.f32.mrf.mxu0
    %v4071 = vadd.f32 0.0, %v4070
    %v4072 = vpop.f32.mrf.mxu0
    %4073 = vmatprep.mubr.f32.mxu0 %v3394
    %4074 = vmatmul.mubr.f32.gmra.mxu0 %v3393
    %v4075 = vpop.f32.mrf.mxu0
    %v4076 = vadd.f32 0.0, %v4075
    %v4077 = vpop.f32.mrf.mxu0
    %4078 = vmatprep.mubr.f32.mxu0 %v3397
    %4079 = vmatmul.mubr.f32.gmra.mxu0 %v3396
    %v4080 = vpop.f32.mrf.mxu0
    %v4081 = vadd.f32 0.0, %v4080
    %v4082 = vpop.f32.mrf.mxu0
    %4083 = vmatprep.mubr.f32.mxu0 %v3400
    %4084 = vmatmul.mubr.f32.gmra.mxu0 %v3399
    %v4085 = vpop.f32.mrf.mxu0
    %v4086 = vadd.f32 0.0, %v4085
    %v4087 = vpop.f32.mrf.mxu0
    %4088 = vmatprep.mubr.f32.mxu0 %v3403
    %4089 = vmatmul.mubr.f32.gmra.mxu0 %v3402
    %v4090 = vpop.f32.mrf.mxu0
    %v4091 = vadd.f32 0.0, %v4090
    %v4092 = vpop.f32.mrf.mxu0
    %4093 = vmatprep.mubr.f32.mxu0 %v3406
    %4094 = vmatmul.mubr.f32.gmra.mxu0 %v3405
    %v4095 = vpop.f32.mrf.mxu0
    %v4096 = vadd.f32 0.0, %v4095
    %v4097 = vpop.f32.mrf.mxu0
    %4098 = vmatprep.mubr.f32.mxu0 %v3409
    %4099 = vmatmul.mubr.f32.gmra.mxu0 %v3408
    %v4100 = vpop.f32.mrf.mxu0
    %v4101 = vadd.f32 0.0, %v4100
    %v4102 = vpop.f32.mrf.mxu0
    %4103 = vmatprep.mubr.f32.mxu0 %v3412
    %4104 = vmatmul.mubr.f32.gmra.mxu0 %v3411
    %v4105 = vpop.f32.mrf.mxu0
    %v4106 = vadd.f32 0.0, %v4105
    %v4107 = vpop.f32.mrf.mxu0
    %4108 = vmatprep.mubr.f32.mxu0 %v3415
    %4109 = vmatmul.mubr.f32.gmra.mxu0 %v3414
    %v4110 = vpop.f32.mrf.mxu0
    %v4111 = vadd.f32 0.0, %v4110
    %v4112 = vpop.f32.mrf.mxu0
    %4113 = vmatprep.mubr.f32.mxu0 %v3418
    %4114 = vmatmul.mubr.f32.gmra.mxu0 %v3417
    %v4115 = vpop.f32.mrf.mxu0
    %v4116 = vadd.f32 0.0, %v4115
    %v4117 = vpop.f32.mrf.mxu0
    %4118 = vmatprep.mubr.f32.mxu0 %v3421
    %4119 = vmatmul.mubr.f32.gmra.mxu0 %v3420
    %v4120 = vpop.f32.mrf.mxu0
    %v4121 = vadd.f32 0.0, %v4120
    %v4122 = vpop.f32.mrf.mxu0
    %4123 = vmatprep.mubr.f32.mxu0 %v3424
    %4124 = vmatmul.mubr.f32.gmra.mxu0 %v3423
    %v4125 = vpop.f32.mrf.mxu0
    %v4126 = vadd.f32 0.0, %v4125
    %v4127 = vpop.f32.mrf.mxu0
    %4128 = vmatprep.mubr.f32.mxu0 %v3427
    %4129 = vmatmul.mubr.f32.gmra.mxu0 %v3426
    %v4130 = vpop.f32.mrf.mxu0
    %v4131 = vadd.f32 0.0, %v4130
    %v4132 = vpop.f32.mrf.mxu0
    %4133 = vdwg.mxu0
    %4134 = vmatprep.subr.mxu0 0.0
    %4135 = vmatpush1.xpose.msra.mxu0 0.0
    %4136 = vmatprep.subr.mxu0 0.0
    %4137 = vmatpush1.xpose.msra.mxu0 0.0
    %4138 = vmatprep.subr.mxu0 0.0
    %4139 = vmatpush1.xpose.msra.mxu0 0.0
    %4140 = vmatprep.subr.mxu0 0.0
    %4141 = vmatpush1.xpose.msra.mxu0 0.0
    %4142 = vmatprep.subr.mxu0 0.0
    %4143 = vmatpush1.xpose.msra.mxu0 0.0
    %4144 = vmatprep.subr.mxu0 0.0
    %4145 = vmatpush1.xpose.msra.mxu0 0.0
    %4146 = vmatprep.subr.mxu0 0.0
    %4147 = vmatpush1.xpose.msra.mxu0 0.0
    %4148 = vmatprep.subr.mxu0 0.0
    %4149 = vmatpush1.xpose.msra.mxu0 0.0
    %4150 = vmatprep.subr.mxu0 0.0
    %4151 = vmatpush1.xpose.msra.mxu0 0.0
    %4152 = vmatprep.subr.mxu0 0.0
    %4153 = vmatpush1.xpose.msra.mxu0 0.0
    %4154 = vmatprep.subr.mxu0 0.0
    %4155 = vmatpush1.xpose.msra.mxu0 0.0
    %4156 = vmatprep.subr.mxu0 0.0
    %4157 = vmatpush1.xpose.msra.mxu0 0.0
    %4158 = vmatprep.subr.mxu0 0.0
    %4159 = vmatpush1.xpose.msra.mxu0 0.0
    %4160 = vmatprep.subr.mxu0 0.0
    %4161 = vmatpush1.xpose.msra.mxu0 0.0
    %4162 = vmatprep.subr.mxu0 0.0
    %4163 = vmatpush1.xpose.msra.mxu0 0.0
    %4164 = vmatprep.subr.mxu0 0.0
    %4165 = vmatpush1.xpose.msra.mxu0 %v3044
    %4166 = vmatprep.subr.mxu0 0.0
    %4167 = vmatpush2.xpose.msra.mxu0 0.0
    %4168 = vmatprep.subr.mxu0 0.0
    %4169 = vmatpush2.xpose.msra.mxu0 0.0
    %4170 = vmatprep.subr.mxu0 0.0
    %4171 = vmatpush2.xpose.msra.mxu0 0.0
    %4172 = vmatprep.subr.mxu0 0.0
    %4173 = vmatpush2.xpose.msra.mxu0 0.0
    %4174 = vmatprep.subr.mxu0 0.0
    %4175 = vmatpush2.xpose.msra.mxu0 0.0
    %4176 = vmatprep.subr.mxu0 0.0
    %4177 = vmatpush2.xpose.msra.mxu0 0.0
    %4178 = vmatprep.subr.mxu0 0.0
    %4179 = vmatpush2.xpose.msra.mxu0 0.0
    %4180 = vmatprep.subr.mxu0 0.0
    %4181 = vmatpush2.xpose.msra.mxu0 0.0
    %4182 = vmatprep.subr.mxu0 0.0
    %4183 = vmatpush2.xpose.msra.mxu0 0.0
    %4184 = vmatprep.subr.mxu0 0.0
    %4185 = vmatpush2.xpose.msra.mxu0 0.0
    %4186 = vmatprep.subr.mxu0 0.0
    %4187 = vmatpush2.xpose.msra.mxu0 0.0
    %4188 = vmatprep.subr.mxu0 0.0
    %4189 = vmatpush2.xpose.msra.mxu0 0.0
    %4190 = vmatprep.subr.mxu0 0.0
    %4191 = vmatpush2.xpose.msra.mxu0 0.0
    %4192 = vmatprep.subr.mxu0 0.0
    %4193 = vmatpush2.xpose.msra.mxu0 0.0
    %4194 = vmatprep.subr.mxu0 0.0
    %4195 = vmatpush2.xpose.msra.mxu0 0.0
    %4196 = vmatprep.subr.mxu0 0.0
    %4197 = vmatpush2.xpose.msra.mxu0 0.0
    %4198 = vmatprep.mubr.f32.mxu0 0.0
    %4199 = vmatmul.mubr.f32.gmra.mxu0 %v3047
    %v4200 = vpop.f32.mrf.mxu0
    %v4201 = vadd.f32 %v3496, %v4200
    %v4202 = vpop.f32.mrf.mxu0
    %4203 = vmatprep.mubr.f32.mxu0 0.0
    %4204 = vmatmul.mubr.f32.gmra.mxu0 %v3050
    %v4205 = vpop.f32.mrf.mxu0
    %v4206 = vadd.f32 %v3501, %v4205
    %v4207 = vpop.f32.mrf.mxu0
    %4208 = vmatprep.mubr.f32.mxu0 0.0
    %4209 = vmatmul.mubr.f32.gmra.mxu0 %v3053
    %v4210 = vpop.f32.mrf.mxu0
    %v4211 = vadd.f32 %v3506, %v4210
    %v4212 = vpop.f32.mrf.mxu0
    %4213 = vmatprep.mubr.f32.mxu0 0.0
    %4214 = vmatmul.mubr.f32.gmra.mxu0 %v3056
    %v4215 = vpop.f32.mrf.mxu0
    %v4216 = vadd.f32 %v3511, %v4215
    %v4217 = vpop.f32.mrf.mxu0
    %4218 = vmatprep.mubr.f32.mxu0 0.0
    %4219 = vmatmul.mubr.f32.gmra.mxu0 %v3059
    %v4220 = vpop.f32.mrf.mxu0
    %v4221 = vadd.f32 %v3516, %v4220
    %v4222 = vpop.f32.mrf.mxu0
    %4223 = vmatprep.mubr.f32.mxu0 0.0
    %4224 = vmatmul.mubr.f32.gmra.mxu0 %v3062
    %v4225 = vpop.f32.mrf.mxu0
    %v4226 = vadd.f32 %v3521, %v4225
    %v4227 = vpop.f32.mrf.mxu0
    %4228 = vmatprep.mubr.f32.mxu0 0.0
    %4229 = vmatmul.mubr.f32.gmra.mxu0 %v3065
    %v4230 = vpop.f32.mrf.mxu0
    %v4231 = vadd.f32 %v3526, %v4230
    %v4232 = vpop.f32.mrf.mxu0
    %4233 = vmatprep.mubr.f32.mxu0 0.0
    %4234 = vmatmul.mubr.f32.gmra.mxu0 %v3068
    %v4235 = vpop.f32.mrf.mxu0
    %v4236 = vadd.f32 %v3531, %v4235
    %v4237 = vpop.f32.mrf.mxu0
    %4238 = vmatprep.mubr.f32.mxu0 0.0
    %4239 = vmatmul.mubr.f32.gmra.mxu0 %v3071
    %v4240 = vpop.f32.mrf.mxu0
    %v4241 = vadd.f32 %v3536, %v4240
    %v4242 = vpop.f32.mrf.mxu0
    %4243 = vmatprep.mubr.f32.mxu0 0.0
    %4244 = vmatmul.mubr.f32.gmra.mxu0 %v3074
    %v4245 = vpop.f32.mrf.mxu0
    %v4246 = vadd.f32 %v3541, %v4245
    %v4247 = vpop.f32.mrf.mxu0
    %4248 = vmatprep.mubr.f32.mxu0 0.0
    %4249 = vmatmul.mubr.f32.gmra.mxu0 %v3077
    %v4250 = vpop.f32.mrf.mxu0
    %v4251 = vadd.f32 %v3546, %v4250
    %v4252 = vpop.f32.mrf.mxu0
    %4253 = vmatprep.mubr.f32.mxu0 0.0
    %4254 = vmatmul.mubr.f32.gmra.mxu0 %v3080
    %v4255 = vpop.f32.mrf.mxu0
    %v4256 = vadd.f32 %v3551, %v4255
    %v4257 = vpop.f32.mrf.mxu0
    %4258 = vmatprep.mubr.f32.mxu0 0.0
    %4259 = vmatmul.mubr.f32.gmra.mxu0 %v3083
    %v4260 = vpop.f32.mrf.mxu0
    %v4261 = vadd.f32 %v3556, %v4260
    %v4262 = vpop.f32.mrf.mxu0
    %4263 = vmatprep.mubr.f32.mxu0 0.0
    %4264 = vmatmul.mubr.f32.gmra.mxu0 %v3086
    %v4265 = vpop.f32.mrf.mxu0
    %v4266 = vadd.f32 %v3561, %v4265
    %v4267 = vpop.f32.mrf.mxu0
    %4268 = vmatprep.mubr.f32.mxu0 0.0
    %4269 = vmatmul.mubr.f32.gmra.mxu0 %v3089
    %v4270 = vpop.f32.mrf.mxu0
    %v4271 = vadd.f32 %v3566, %v4270
    %v4272 = vpop.f32.mrf.mxu0
    %4273 = vmatprep.mubr.f32.mxu0 0.0
    %4274 = vmatmul.mubr.f32.gmra.mxu0 %v3092
    %v4275 = vpop.f32.mrf.mxu0
    %v4276 = vadd.f32 %v3571, %v4275
    %v4277 = vpop.f32.mrf.mxu0
    %4278 = vmatprep.mubr.f32.mxu0 0.0
    %4279 = vmatmul.mubr.f32.gmra.mxu0 %v3095
    %v4280 = vpop.f32.mrf.mxu0
    %v4281 = vadd.f32 %v3576, %v4280
    %v4282 = vpop.f32.mrf.mxu0
    %4283 = vmatprep.mubr.f32.mxu0 0.0
    %4284 = vmatmul.mubr.f32.gmra.mxu0 %v3098
    %v4285 = vpop.f32.mrf.mxu0
    %v4286 = vadd.f32 %v3581, %v4285
    %v4287 = vpop.f32.mrf.mxu0
    %4288 = vmatprep.mubr.f32.mxu0 0.0
    %4289 = vmatmul.mubr.f32.gmra.mxu0 %v3101
    %v4290 = vpop.f32.mrf.mxu0
    %v4291 = vadd.f32 %v3586, %v4290
    %v4292 = vpop.f32.mrf.mxu0
    %4293 = vmatprep.mubr.f32.mxu0 0.0
    %4294 = vmatmul.mubr.f32.gmra.mxu0 %v3104
    %v4295 = vpop.f32.mrf.mxu0
    %v4296 = vadd.f32 %v3591, %v4295
    %v4297 = vpop.f32.mrf.mxu0
    %4298 = vmatprep.mubr.f32.mxu0 0.0
    %4299 = vmatmul.mubr.f32.gmra.mxu0 %v3107
    %v4300 = vpop.f32.mrf.mxu0
    %v4301 = vadd.f32 %v3596, %v4300
    %v4302 = vpop.f32.mrf.mxu0
    %4303 = vmatprep.mubr.f32.mxu0 0.0
    %4304 = vmatmul.mubr.f32.gmra.mxu0 %v3110
    %v4305 = vpop.f32.mrf.mxu0
    %v4306 = vadd.f32 %v3601, %v4305
    %v4307 = vpop.f32.mrf.mxu0
    %4308 = vmatprep.mubr.f32.mxu0 0.0
    %4309 = vmatmul.mubr.f32.gmra.mxu0 %v3113
    %v4310 = vpop.f32.mrf.mxu0
    %v4311 = vadd.f32 %v3606, %v4310
    %v4312 = vpop.f32.mrf.mxu0
    %4313 = vmatprep.mubr.f32.mxu0 0.0
    %4314 = vmatmul.mubr.f32.gmra.mxu0 %v3116
    %v4315 = vpop.f32.mrf.mxu0
    %v4316 = vadd.f32 %v3611, %v4315
    %v4317 = vpop.f32.mrf.mxu0
    %4318 = vmatprep.mubr.f32.mxu0 0.0
    %4319 = vmatmul.mubr.f32.gmra.mxu0 %v3119
    %v4320 = vpop.f32.mrf.mxu0
    %v4321 = vadd.f32 %v3616, %v4320
    %v4322 = vpop.f32.mrf.mxu0
    %4323 = vmatprep.mubr.f32.mxu0 0.0
    %4324 = vmatmul.mubr.f32.gmra.mxu0 %v3122
    %v4325 = vpop.f32.mrf.mxu0
    %v4326 = vadd.f32 %v3621, %v4325
    %v4327 = vpop.f32.mrf.mxu0
    %4328 = vmatprep.mubr.f32.mxu0 0.0
    %4329 = vmatmul.mubr.f32.gmra.mxu0 %v3125
    %v4330 = vpop.f32.mrf.mxu0
    %v4331 = vadd.f32 %v3626, %v4330
    %v4332 = vpop.f32.mrf.mxu0
    %4333 = vmatprep.mubr.f32.mxu0 0.0
    %4334 = vmatmul.mubr.f32.gmra.mxu0 %v3128
    %v4335 = vpop.f32.mrf.mxu0
    %v4336 = vadd.f32 %v3631, %v4335
    %v4337 = vpop.f32.mrf.mxu0
    %4338 = vmatprep.mubr.f32.mxu0 0.0
    %4339 = vmatmul.mubr.f32.gmra.mxu0 %v3131
    %v4340 = vpop.f32.mrf.mxu0
    %v4341 = vadd.f32 %v3636, %v4340
    %v4342 = vpop.f32.mrf.mxu0
    %4343 = vmatprep.mubr.f32.mxu0 0.0
    %4344 = vmatmul.mubr.f32.gmra.mxu0 %v3134
    %v4345 = vpop.f32.mrf.mxu0
    %v4346 = vadd.f32 %v3641, %v4345
    %v4347 = vpop.f32.mrf.mxu0
    %4348 = vmatprep.mubr.f32.mxu0 0.0
    %4349 = vmatmul.mubr.f32.gmra.mxu0 %v3137
    %v4350 = vpop.f32.mrf.mxu0
    %v4351 = vadd.f32 %v3646, %v4350
    %v4352 = vpop.f32.mrf.mxu0
    %4353 = vmatprep.mubr.f32.mxu0 0.0
    %4354 = vmatmul.mubr.f32.gmra.mxu0 %v3140
    %v4355 = vpop.f32.mrf.mxu0
    %v4356 = vadd.f32 %v3651, %v4355
    %v4357 = vpop.f32.mrf.mxu0
    %4358 = vmatprep.mubr.f32.mxu0 0.0
    %4359 = vmatmul.mubr.f32.gmra.mxu0 %v3143
    %v4360 = vpop.f32.mrf.mxu0
    %v4361 = vadd.f32 %v3656, %v4360
    %v4362 = vpop.f32.mrf.mxu0
    %4363 = vmatprep.mubr.f32.mxu0 0.0
    %4364 = vmatmul.mubr.f32.gmra.mxu0 %v3146
    %v4365 = vpop.f32.mrf.mxu0
    %v4366 = vadd.f32 %v3661, %v4365
    %v4367 = vpop.f32.mrf.mxu0
    %4368 = vmatprep.mubr.f32.mxu0 0.0
    %4369 = vmatmul.mubr.f32.gmra.mxu0 %v3149
    %v4370 = vpop.f32.mrf.mxu0
    %v4371 = vadd.f32 %v3666, %v4370
    %v4372 = vpop.f32.mrf.mxu0
    %4373 = vmatprep.mubr.f32.mxu0 0.0
    %4374 = vmatmul.mubr.f32.gmra.mxu0 %v3152
    %v4375 = vpop.f32.mrf.mxu0
    %v4376 = vadd.f32 %v3671, %v4375
    %v4377 = vpop.f32.mrf.mxu0
    %4378 = vmatprep.mubr.f32.mxu0 0.0
    %4379 = vmatmul.mubr.f32.gmra.mxu0 %v3155
    %v4380 = vpop.f32.mrf.mxu0
    %v4381 = vadd.f32 %v3676, %v4380
    %v4382 = vpop.f32.mrf.mxu0
    %4383 = vmatprep.mubr.f32.mxu0 0.0
    %4384 = vmatmul.mubr.f32.gmra.mxu0 %v3158
    %v4385 = vpop.f32.mrf.mxu0
    %v4386 = vadd.f32 %v3681, %v4385
    %v4387 = vpop.f32.mrf.mxu0
    %4388 = vmatprep.mubr.f32.mxu0 0.0
    %4389 = vmatmul.mubr.f32.gmra.mxu0 %v3161
    %v4390 = vpop.f32.mrf.mxu0
    %v4391 = vadd.f32 %v3686, %v4390
    %v4392 = vpop.f32.mrf.mxu0
    %4393 = vmatprep.mubr.f32.mxu0 0.0
    %4394 = vmatmul.mubr.f32.gmra.mxu0 %v3164
    %v4395 = vpop.f32.mrf.mxu0
    %v4396 = vadd.f32 %v3691, %v4395
    %v4397 = vpop.f32.mrf.mxu0
    %4398 = vmatprep.mubr.f32.mxu0 0.0
    %4399 = vmatmul.mubr.f32.gmra.mxu0 %v3167
    %v4400 = vpop.f32.mrf.mxu0
    %v4401 = vadd.f32 %v3696, %v4400
    %v4402 = vpop.f32.mrf.mxu0
    %4403 = vmatprep.mubr.f32.mxu0 0.0
    %4404 = vmatmul.mubr.f32.gmra.mxu0 %v3170
    %v4405 = vpop.f32.mrf.mxu0
    %v4406 = vadd.f32 %v3701, %v4405
    %v4407 = vpop.f32.mrf.mxu0
    %4408 = vmatprep.mubr.f32.mxu0 0.0
    %4409 = vmatmul.mubr.f32.gmra.mxu0 %v3173
    %v4410 = vpop.f32.mrf.mxu0
    %v4411 = vadd.f32 %v3706, %v4410
    %v4412 = vpop.f32.mrf.mxu0
    %4413 = vmatprep.mubr.f32.mxu0 0.0
    %4414 = vmatmul.mubr.f32.gmra.mxu0 %v3176
    %v4415 = vpop.f32.mrf.mxu0
    %v4416 = vadd.f32 %v3711, %v4415
    %v4417 = vpop.f32.mrf.mxu0
    %4418 = vmatprep.mubr.f32.mxu0 0.0
    %4419 = vmatmul.mubr.f32.gmra.mxu0 %v3179
    %v4420 = vpop.f32.mrf.mxu0
    %v4421 = vadd.f32 %v3716, %v4420
    %v4422 = vpop.f32.mrf.mxu0
    %4423 = vmatprep.mubr.f32.mxu0 0.0
    %4424 = vmatmul.mubr.f32.gmra.mxu0 %v3182
    %v4425 = vpop.f32.mrf.mxu0
    %v4426 = vadd.f32 %v3721, %v4425
    %v4427 = vpop.f32.mrf.mxu0
    %4428 = vmatprep.mubr.f32.mxu0 0.0
    %4429 = vmatmul.mubr.f32.gmra.mxu0 %v3185
    %v4430 = vpop.f32.mrf.mxu0
    %v4431 = vadd.f32 %v3726, %v4430
    %v4432 = vpop.f32.mrf.mxu0
    %4433 = vmatprep.mubr.f32.mxu0 0.0
    %4434 = vmatmul.mubr.f32.gmra.mxu0 %v3188
    %v4435 = vpop.f32.mrf.mxu0
    %v4436 = vadd.f32 %v3731, %v4435
    %v4437 = vpop.f32.mrf.mxu0
    %4438 = vmatprep.mubr.f32.mxu0 0.0
    %4439 = vmatmul.mubr.f32.gmra.mxu0 %v3191
    %v4440 = vpop.f32.mrf.mxu0
    %v4441 = vadd.f32 %v3736, %v4440
    %v4442 = vpop.f32.mrf.mxu0
    %4443 = vmatprep.mubr.f32.mxu0 0.0
    %4444 = vmatmul.mubr.f32.gmra.mxu0 %v3194
    %v4445 = vpop.f32.mrf.mxu0
    %v4446 = vadd.f32 %v3741, %v4445
    %v4447 = vpop.f32.mrf.mxu0
    %4448 = vmatprep.mubr.f32.mxu0 0.0
    %4449 = vmatmul.mubr.f32.gmra.mxu0 %v3197
    %v4450 = vpop.f32.mrf.mxu0
    %v4451 = vadd.f32 %v3746, %v4450
    %v4452 = vpop.f32.mrf.mxu0
    %4453 = vmatprep.mubr.f32.mxu0 0.0
    %4454 = vmatmul.mubr.f32.gmra.mxu0 %v3200
    %v4455 = vpop.f32.mrf.mxu0
    %v4456 = vadd.f32 %v3751, %v4455
    %v4457 = vpop.f32.mrf.mxu0
    %4458 = vmatprep.mubr.f32.mxu0 0.0
    %4459 = vmatmul.mubr.f32.gmra.mxu0 %v3203
    %v4460 = vpop.f32.mrf.mxu0
    %v4461 = vadd.f32 %v3756, %v4460
    %v4462 = vpop.f32.mrf.mxu0
    %4463 = vmatprep.mubr.f32.mxu0 0.0
    %4464 = vmatmul.mubr.f32.gmra.mxu0 %v3206
    %v4465 = vpop.f32.mrf.mxu0
    %v4466 = vadd.f32 %v3761, %v4465
    %v4467 = vpop.f32.mrf.mxu0
    %4468 = vmatprep.mubr.f32.mxu0 0.0
    %4469 = vmatmul.mubr.f32.gmra.mxu0 %v3209
    %v4470 = vpop.f32.mrf.mxu0
    %v4471 = vadd.f32 %v3766, %v4470
    %v4472 = vpop.f32.mrf.mxu0
    %4473 = vmatprep.mubr.f32.mxu0 0.0
    %4474 = vmatmul.mubr.f32.gmra.mxu0 %v3212
    %v4475 = vpop.f32.mrf.mxu0
    %v4476 = vadd.f32 %v3771, %v4475
    %v4477 = vpop.f32.mrf.mxu0
    %4478 = vmatprep.mubr.f32.mxu0 0.0
    %4479 = vmatmul.mubr.f32.gmra.mxu0 %v3215
    %v4480 = vpop.f32.mrf.mxu0
    %v4481 = vadd.f32 %v3776, %v4480
    %v4482 = vpop.f32.mrf.mxu0
    %4483 = vmatprep.mubr.f32.mxu0 0.0
    %4484 = vmatmul.mubr.f32.gmra.mxu0 %v3218
    %v4485 = vpop.f32.mrf.mxu0
    %v4486 = vadd.f32 %v3781, %v4485
    %v4487 = vpop.f32.mrf.mxu0
    %4488 = vmatprep.mubr.f32.mxu0 0.0
    %4489 = vmatmul.mubr.f32.gmra.mxu0 %v3221
    %v4490 = vpop.f32.mrf.mxu0
    %v4491 = vadd.f32 %v3786, %v4490
    %v4492 = vpop.f32.mrf.mxu0
    %4493 = vmatprep.mubr.f32.mxu0 0.0
    %4494 = vmatmul.mubr.f32.gmra.mxu0 %v3224
    %v4495 = vpop.f32.mrf.mxu0
    %v4496 = vadd.f32 %v3791, %v4495
    %v4497 = vpop.f32.mrf.mxu0
    %4498 = vmatprep.mubr.f32.mxu0 0.0
    %4499 = vmatmul.mubr.f32.gmra.mxu0 %v3227
    %v4500 = vpop.f32.mrf.mxu0
    %v4501 = vadd.f32 %v3796, %v4500
    %v4502 = vpop.f32.mrf.mxu0
    %4503 = vmatprep.mubr.f32.mxu0 0.0
    %4504 = vmatmul.mubr.f32.gmra.mxu0 %v3230
    %v4505 = vpop.f32.mrf.mxu0
    %v4506 = vadd.f32 %v3801, %v4505
    %v4507 = vpop.f32.mrf.mxu0
    %4508 = vmatprep.mubr.f32.mxu0 0.0
    %4509 = vmatmul.mubr.f32.gmra.mxu0 %v3233
    %v4510 = vpop.f32.mrf.mxu0
    %v4511 = vadd.f32 %v3806, %v4510
    %v4512 = vpop.f32.mrf.mxu0
    %4513 = vmatprep.mubr.f32.mxu0 0.0
    %4514 = vmatmul.mubr.f32.gmra.mxu0 %v3236
    %v4515 = vpop.f32.mrf.mxu0
    %v4516 = vadd.f32 %v3811, %v4515
    %v4517 = vpop.f32.mrf.mxu0
    %4518 = vmatprep.mubr.f32.mxu0 0.0
    %4519 = vmatmul.mubr.f32.gmra.mxu0 %v3239
    %v4520 = vpop.f32.mrf.mxu0
    %v4521 = vadd.f32 %v3816, %v4520
    %v4522 = vpop.f32.mrf.mxu0
    %4523 = vmatprep.mubr.f32.mxu0 0.0
    %4524 = vmatmul.mubr.f32.gmra.mxu0 %v3242
    %v4525 = vpop.f32.mrf.mxu0
    %v4526 = vadd.f32 %v3821, %v4525
    %v4527 = vpop.f32.mrf.mxu0
    %4528 = vmatprep.mubr.f32.mxu0 0.0
    %4529 = vmatmul.mubr.f32.gmra.mxu0 %v3245
    %v4530 = vpop.f32.mrf.mxu0
    %v4531 = vadd.f32 %v3826, %v4530
    %v4532 = vpop.f32.mrf.mxu0
    %4533 = vmatprep.mubr.f32.mxu0 0.0
    %4534 = vmatmul.mubr.f32.gmra.mxu0 %v3248
    %v4535 = vpop.f32.mrf.mxu0
    %v4536 = vadd.f32 %v3831, %v4535
    %v4537 = vpop.f32.mrf.mxu0
    %4538 = vmatprep.mubr.f32.mxu0 0.0
    %4539 = vmatmul.mubr.f32.gmra.mxu0 %v3251
    %v4540 = vpop.f32.mrf.mxu0
    %v4541 = vadd.f32 %v3836, %v4540
    %v4542 = vpop.f32.mrf.mxu0
    %4543 = vmatprep.mubr.f32.mxu0 0.0
    %4544 = vmatmul.mubr.f32.gmra.mxu0 %v3254
    %v4545 = vpop.f32.mrf.mxu0
    %v4546 = vadd.f32 %v3841, %v4545
    %v4547 = vpop.f32.mrf.mxu0
    %4548 = vmatprep.mubr.f32.mxu0 0.0
    %4549 = vmatmul.mubr.f32.gmra.mxu0 %v3257
    %v4550 = vpop.f32.mrf.mxu0
    %v4551 = vadd.f32 %v3846, %v4550
    %v4552 = vpop.f32.mrf.mxu0
    %4553 = vmatprep.mubr.f32.mxu0 0.0
    %4554 = vmatmul.mubr.f32.gmra.mxu0 %v3260
    %v4555 = vpop.f32.mrf.mxu0
    %v4556 = vadd.f32 %v3851, %v4555
    %v4557 = vpop.f32.mrf.mxu0
    %4558 = vmatprep.mubr.f32.mxu0 0.0
    %4559 = vmatmul.mubr.f32.gmra.mxu0 %v3263
    %v4560 = vpop.f32.mrf.mxu0
    %v4561 = vadd.f32 %v3856, %v4560
    %v4562 = vpop.f32.mrf.mxu0
    %4563 = vmatprep.mubr.f32.mxu0 0.0
    %4564 = vmatmul.mubr.f32.gmra.mxu0 %v3266
    %v4565 = vpop.f32.mrf.mxu0
    %v4566 = vadd.f32 %v3861, %v4565
    %v4567 = vpop.f32.mrf.mxu0
    %4568 = vmatprep.mubr.f32.mxu0 0.0
    %4569 = vmatmul.mubr.f32.gmra.mxu0 %v3269
    %v4570 = vpop.f32.mrf.mxu0
    %v4571 = vadd.f32 %v3866, %v4570
    %v4572 = vpop.f32.mrf.mxu0
    %4573 = vmatprep.mubr.f32.mxu0 0.0
    %4574 = vmatmul.mubr.f32.gmra.mxu0 %v3272
    %v4575 = vpop.f32.mrf.mxu0
    %v4576 = vadd.f32 %v3871, %v4575
    %v4577 = vpop.f32.mrf.mxu0
    %4578 = vmatprep.mubr.f32.mxu0 0.0
    %4579 = vmatmul.mubr.f32.gmra.mxu0 %v3275
    %v4580 = vpop.f32.mrf.mxu0
    %v4581 = vadd.f32 %v3876, %v4580
    %v4582 = vpop.f32.mrf.mxu0
    %4583 = vmatprep.mubr.f32.mxu0 0.0
    %4584 = vmatmul.mubr.f32.gmra.mxu0 %v3278
    %v4585 = vpop.f32.mrf.mxu0
    %v4586 = vadd.f32 %v3881, %v4585
    %v4587 = vpop.f32.mrf.mxu0
    %4588 = vmatprep.mubr.f32.mxu0 0.0
    %4589 = vmatmul.mubr.f32.gmra.mxu0 %v3281
    %v4590 = vpop.f32.mrf.mxu0
    %v4591 = vadd.f32 %v3886, %v4590
    %v4592 = vpop.f32.mrf.mxu0
    %4593 = vmatprep.mubr.f32.mxu0 0.0
    %4594 = vmatmul.mubr.f32.gmra.mxu0 %v3284
    %v4595 = vpop.f32.mrf.mxu0
    %v4596 = vadd.f32 %v3891, %v4595
    %v4597 = vpop.f32.mrf.mxu0
    %4598 = vmatprep.mubr.f32.mxu0 0.0
    %4599 = vmatmul.mubr.f32.gmra.mxu0 %v3287
    %v4600 = vpop.f32.mrf.mxu0
    %v4601 = vadd.f32 %v3896, %v4600
    %v4602 = vpop.f32.mrf.mxu0
    %4603 = vmatprep.mubr.f32.mxu0 0.0
    %4604 = vmatmul.mubr.f32.gmra.mxu0 %v3290
    %v4605 = vpop.f32.mrf.mxu0
    %v4606 = vadd.f32 %v3901, %v4605
    %v4607 = vpop.f32.mrf.mxu0
    %4608 = vmatprep.mubr.f32.mxu0 0.0
    %4609 = vmatmul.mubr.f32.gmra.mxu0 %v3293
    %v4610 = vpop.f32.mrf.mxu0
    %v4611 = vadd.f32 %v3906, %v4610
    %v4612 = vpop.f32.mrf.mxu0
    %4613 = vmatprep.mubr.f32.mxu0 0.0
    %4614 = vmatmul.mubr.f32.gmra.mxu0 %v3296
    %v4615 = vpop.f32.mrf.mxu0
    %v4616 = vadd.f32 %v3911, %v4615
    %v4617 = vpop.f32.mrf.mxu0
    %4618 = vmatprep.mubr.f32.mxu0 0.0
    %4619 = vmatmul.mubr.f32.gmra.mxu0 %v3299
    %v4620 = vpop.f32.mrf.mxu0
    %v4621 = vadd.f32 %v3916, %v4620
    %v4622 = vpop.f32.mrf.mxu0
    %4623 = vmatprep.mubr.f32.mxu0 0.0
    %4624 = vmatmul.mubr.f32.gmra.mxu0 %v3302
    %v4625 = vpop.f32.mrf.mxu0
    %v4626 = vadd.f32 %v3921, %v4625
    %v4627 = vpop.f32.mrf.mxu0
    %4628 = vmatprep.mubr.f32.mxu0 0.0
    %4629 = vmatmul.mubr.f32.gmra.mxu0 %v3305
    %v4630 = vpop.f32.mrf.mxu0
    %v4631 = vadd.f32 %v3926, %v4630
    %v4632 = vpop.f32.mrf.mxu0
    %4633 = vmatprep.mubr.f32.mxu0 0.0
    %4634 = vmatmul.mubr.f32.gmra.mxu0 %v3308
    %v4635 = vpop.f32.mrf.mxu0
    %v4636 = vadd.f32 %v3931, %v4635
    %v4637 = vpop.f32.mrf.mxu0
    %4638 = vmatprep.mubr.f32.mxu0 0.0
    %4639 = vmatmul.mubr.f32.gmra.mxu0 %v3311
    %v4640 = vpop.f32.mrf.mxu0
    %v4641 = vadd.f32 %v3936, %v4640
    %v4642 = vpop.f32.mrf.mxu0
    %4643 = vmatprep.mubr.f32.mxu0 0.0
    %4644 = vmatmul.mubr.f32.gmra.mxu0 %v3314
    %v4645 = vpop.f32.mrf.mxu0
    %v4646 = vadd.f32 %v3941, %v4645
    %v4647 = vpop.f32.mrf.mxu0
    %4648 = vmatprep.mubr.f32.mxu0 0.0
    %4649 = vmatmul.mubr.f32.gmra.mxu0 %v3317
    %v4650 = vpop.f32.mrf.mxu0
    %v4651 = vadd.f32 %v3946, %v4650
    %v4652 = vpop.f32.mrf.mxu0
    %4653 = vmatprep.mubr.f32.mxu0 0.0
    %4654 = vmatmul.mubr.f32.gmra.mxu0 %v3320
    %v4655 = vpop.f32.mrf.mxu0
    %v4656 = vadd.f32 %v3951, %v4655
    %v4657 = vpop.f32.mrf.mxu0
    %4658 = vmatprep.mubr.f32.mxu0 0.0
    %4659 = vmatmul.mubr.f32.gmra.mxu0 %v3323
    %v4660 = vpop.f32.mrf.mxu0
    %v4661 = vadd.f32 %v3956, %v4660
    %v4662 = vpop.f32.mrf.mxu0
    %4663 = vmatprep.mubr.f32.mxu0 0.0
    %4664 = vmatmul.mubr.f32.gmra.mxu0 %v3326
    %v4665 = vpop.f32.mrf.mxu0
    %v4666 = vadd.f32 %v3961, %v4665
    %v4667 = vpop.f32.mrf.mxu0
    %4668 = vmatprep.mubr.f32.mxu0 0.0
    %4669 = vmatmul.mubr.f32.gmra.mxu0 %v3329
    %v4670 = vpop.f32.mrf.mxu0
    %v4671 = vadd.f32 %v3966, %v4670
    %v4672 = vpop.f32.mrf.mxu0
    %4673 = vmatprep.mubr.f32.mxu0 0.0
    %4674 = vmatmul.mubr.f32.gmra.mxu0 %v3332
    %v4675 = vpop.f32.mrf.mxu0
    %v4676 = vadd.f32 %v3971, %v4675
    %v4677 = vpop.f32.mrf.mxu0
    %4678 = vmatprep.mubr.f32.mxu0 0.0
    %4679 = vmatmul.mubr.f32.gmra.mxu0 %v3335
    %v4680 = vpop.f32.mrf.mxu0
    %v4681 = vadd.f32 %v3976, %v4680
    %v4682 = vpop.f32.mrf.mxu0
    %4683 = vmatprep.mubr.f32.mxu0 0.0
    %4684 = vmatmul.mubr.f32.gmra.mxu0 %v3338
    %v4685 = vpop.f32.mrf.mxu0
    %v4686 = vadd.f32 %v3981, %v4685
    %v4687 = vpop.f32.mrf.mxu0
    %4688 = vmatprep.mubr.f32.mxu0 0.0
    %4689 = vmatmul.mubr.f32.gmra.mxu0 %v3341
    %v4690 = vpop.f32.mrf.mxu0
    %v4691 = vadd.f32 %v3986, %v4690
    %v4692 = vpop.f32.mrf.mxu0
    %4693 = vmatprep.mubr.f32.mxu0 0.0
    %4694 = vmatmul.mubr.f32.gmra.mxu0 %v3344
    %v4695 = vpop.f32.mrf.mxu0
    %v4696 = vadd.f32 %v3991, %v4695
    %v4697 = vpop.f32.mrf.mxu0
    %4698 = vmatprep.mubr.f32.mxu0 0.0
    %4699 = vmatmul.mubr.f32.gmra.mxu0 %v3347
    %v4700 = vpop.f32.mrf.mxu0
    %v4701 = vadd.f32 %v3996, %v4700
    %v4702 = vpop.f32.mrf.mxu0
    %4703 = vmatprep.mubr.f32.mxu0 0.0
    %4704 = vmatmul.mubr.f32.gmra.mxu0 %v3350
    %v4705 = vpop.f32.mrf.mxu0
    %v4706 = vadd.f32 %v4001, %v4705
    %v4707 = vpop.f32.mrf.mxu0
    %4708 = vmatprep.mubr.f32.mxu0 0.0
    %4709 = vmatmul.mubr.f32.gmra.mxu0 %v3353
    %v4710 = vpop.f32.mrf.mxu0
    %v4711 = vadd.f32 %v4006, %v4710
    %v4712 = vpop.f32.mrf.mxu0
    %4713 = vmatprep.mubr.f32.mxu0 0.0
    %4714 = vmatmul.mubr.f32.gmra.mxu0 %v3356
    %v4715 = vpop.f32.mrf.mxu0
    %v4716 = vadd.f32 %v4011, %v4715
    %v4717 = vpop.f32.mrf.mxu0
    %4718 = vmatprep.mubr.f32.mxu0 0.0
    %4719 = vmatmul.mubr.f32.gmra.mxu0 %v3359
    %v4720 = vpop.f32.mrf.mxu0
    %v4721 = vadd.f32 %v4016, %v4720
    %v4722 = vpop.f32.mrf.mxu0
    %4723 = vmatprep.mubr.f32.mxu0 0.0
    %4724 = vmatmul.mubr.f32.gmra.mxu0 %v3362
    %v4725 = vpop.f32.mrf.mxu0
    %v4726 = vadd.f32 %v4021, %v4725
    %v4727 = vpop.f32.mrf.mxu0
    %4728 = vmatprep.mubr.f32.mxu0 0.0
    %4729 = vmatmul.mubr.f32.gmra.mxu0 %v3365
    %v4730 = vpop.f32.mrf.mxu0
    %v4731 = vadd.f32 %v4026, %v4730
    %v4732 = vpop.f32.mrf.mxu0
    %4733 = vmatprep.mubr.f32.mxu0 0.0
    %4734 = vmatmul.mubr.f32.gmra.mxu0 %v3368
    %v4735 = vpop.f32.mrf.mxu0
    %v4736 = vadd.f32 %v4031, %v4735
    %v4737 = vpop.f32.mrf.mxu0
    %4738 = vmatprep.mubr.f32.mxu0 0.0
    %4739 = vmatmul.mubr.f32.gmra.mxu0 %v3371
    %v4740 = vpop.f32.mrf.mxu0
    %v4741 = vadd.f32 %v4036, %v4740
    %v4742 = vpop.f32.mrf.mxu0
    %4743 = vmatprep.mubr.f32.mxu0 0.0
    %4744 = vmatmul.mubr.f32.gmra.mxu0 %v3374
    %v4745 = vpop.f32.mrf.mxu0
    %v4746 = vadd.f32 %v4041, %v4745
    %v4747 = vpop.f32.mrf.mxu0
    %4748 = vmatprep.mubr.f32.mxu0 0.0
    %4749 = vmatmul.mubr.f32.gmra.mxu0 %v3377
    %v4750 = vpop.f32.mrf.mxu0
    %v4751 = vadd.f32 %v4046, %v4750
    %v4752 = vpop.f32.mrf.mxu0
    %4753 = vmatprep.mubr.f32.mxu0 0.0
    %4754 = vmatmul.mubr.f32.gmra.mxu0 %v3380
    %v4755 = vpop.f32.mrf.mxu0
    %v4756 = vadd.f32 %v4051, %v4755
    %v4757 = vpop.f32.mrf.mxu0
    %4758 = vmatprep.mubr.f32.mxu0 0.0
    %4759 = vmatmul.mubr.f32.gmra.mxu0 %v3383
    %v4760 = vpop.f32.mrf.mxu0
    %v4761 = vadd.f32 %v4056, %v4760
    %v4762 = vpop.f32.mrf.mxu0
    %4763 = vmatprep.mubr.f32.mxu0 0.0
    %4764 = vmatmul.mubr.f32.gmra.mxu0 %v3386
    %v4765 = vpop.f32.mrf.mxu0
    %v4766 = vadd.f32 %v4061, %v4765
    %v4767 = vpop.f32.mrf.mxu0
    %4768 = vmatprep.mubr.f32.mxu0 0.0
    %4769 = vmatmul.mubr.f32.gmra.mxu0 %v3389
    %v4770 = vpop.f32.mrf.mxu0
    %v4771 = vadd.f32 %v4066, %v4770
    %v4772 = vpop.f32.mrf.mxu0
    %4773 = vmatprep.mubr.f32.mxu0 0.0
    %4774 = vmatmul.mubr.f32.gmra.mxu0 %v3392
    %v4775 = vpop.f32.mrf.mxu0
    %v4776 = vadd.f32 %v4071, %v4775
    %v4777 = vpop.f32.mrf.mxu0
    %4778 = vmatprep.mubr.f32.mxu0 0.0
    %4779 = vmatmul.mubr.f32.gmra.mxu0 %v3395
    %v4780 = vpop.f32.mrf.mxu0
    %v4781 = vadd.f32 %v4076, %v4780
    %v4782 = vpop.f32.mrf.mxu0
    %4783 = vmatprep.mubr.f32.mxu0 0.0
    %4784 = vmatmul.mubr.f32.gmra.mxu0 %v3398
    %v4785 = vpop.f32.mrf.mxu0
    %v4786 = vadd.f32 %v4081, %v4785
    %v4787 = vpop.f32.mrf.mxu0
    %4788 = vmatprep.mubr.f32.mxu0 0.0
    %4789 = vmatmul.mubr.f32.gmra.mxu0 %v3401
    %v4790 = vpop.f32.mrf.mxu0
    %v4791 = vadd.f32 %v4086, %v4790
    %v4792 = vpop.f32.mrf.mxu0
    %4793 = vmatprep.mubr.f32.mxu0 0.0
    %4794 = vmatmul.mubr.f32.gmra.mxu0 %v3404
    %v4795 = vpop.f32.mrf.mxu0
    %v4796 = vadd.f32 %v4091, %v4795
    %v4797 = vpop.f32.mrf.mxu0
    %4798 = vmatprep.mubr.f32.mxu0 0.0
    %4799 = vmatmul.mubr.f32.gmra.mxu0 %v3407
    %v4800 = vpop.f32.mrf.mxu0
    %v4801 = vadd.f32 %v4096, %v4800
    %v4802 = vpop.f32.mrf.mxu0
    %4803 = vmatprep.mubr.f32.mxu0 0.0
    %4804 = vmatmul.mubr.f32.gmra.mxu0 %v3410
    %v4805 = vpop.f32.mrf.mxu0
    %v4806 = vadd.f32 %v4101, %v4805
    %v4807 = vpop.f32.mrf.mxu0
    %4808 = vmatprep.mubr.f32.mxu0 0.0
    %4809 = vmatmul.mubr.f32.gmra.mxu0 %v3413
    %v4810 = vpop.f32.mrf.mxu0
    %v4811 = vadd.f32 %v4106, %v4810
    %v4812 = vpop.f32.mrf.mxu0
    %4813 = vmatprep.mubr.f32.mxu0 0.0
    %4814 = vmatmul.mubr.f32.gmra.mxu0 %v3416
    %v4815 = vpop.f32.mrf.mxu0
    %v4816 = vadd.f32 %v4111, %v4815
    %v4817 = vpop.f32.mrf.mxu0
    %4818 = vmatprep.mubr.f32.mxu0 0.0
    %4819 = vmatmul.mubr.f32.gmra.mxu0 %v3419
    %v4820 = vpop.f32.mrf.mxu0
    %v4821 = vadd.f32 %v4116, %v4820
    %v4822 = vpop.f32.mrf.mxu0
    %4823 = vmatprep.mubr.f32.mxu0 0.0
    %4824 = vmatmul.mubr.f32.gmra.mxu0 %v3422
    %v4825 = vpop.f32.mrf.mxu0
    %v4826 = vadd.f32 %v4121, %v4825
    %v4827 = vpop.f32.mrf.mxu0
    %4828 = vmatprep.mubr.f32.mxu0 0.0
    %4829 = vmatmul.mubr.f32.gmra.mxu0 %v3425
    %v4830 = vpop.f32.mrf.mxu0
    %v4831 = vadd.f32 %v4126, %v4830
    %v4832 = vpop.f32.mrf.mxu0
    %4833 = vmatprep.mubr.f32.mxu0 0.0
    %4834 = vmatmul.mubr.f32.gmra.mxu0 %v3428
    %v4835 = vpop.f32.mrf.mxu0
    %v4836 = vadd.f32 %v4131, %v4835
    %v4837 = vpop.f32.mrf.mxu0
    %4838 = vdwg.mxu0
    %v4839 = vmax.f32 %v4201, %v4361
    %v4840 = vmax.f32 %v4206, %v4366
    %v4841 = vmax.f32 %v4211, %v4371
    %v4842 = vmax.f32 %v4216, %v4376
    %v4843 = vmax.f32 %v4221, %v4381
    %v4844 = vmax.f32 %v4226, %v4386
    %v4845 = vmax.f32 %v4231, %v4391
    %v4846 = vmax.f32 %v4236, %v4396
    %v4847 = vmax.f32 %v4241, %v4401
    %v4848 = vmax.f32 %v4246, %v4406
    %v4849 = vmax.f32 %v4251, %v4411
    %v4850 = vmax.f32 %v4256, %v4416
    %v4851 = vmax.f32 %v4261, %v4421
    %v4852 = vmax.f32 %v4266, %v4426
    %v4853 = vmax.f32 %v4271, %v4431
    %v4854 = vmax.f32 %v4276, %v4436
    %v4855 = vmax.f32 %v4281, %v4441
    %v4856 = vmax.f32 %v4286, %v4446
    %v4857 = vmax.f32 %v4291, %v4451
    %v4858 = vmax.f32 %v4296, %v4456
    %v4859 = vmax.f32 %v4301, %v4461
    %v4860 = vmax.f32 %v4306, %v4466
    %v4861 = vmax.f32 %v4311, %v4471
    %v4862 = vmax.f32 %v4316, %v4476
    %v4863 = vmax.f32 %v4321, %v4481
    %v4864 = vmax.f32 %v4326, %v4486
    %v4865 = vmax.f32 %v4331, %v4491
    %v4866 = vmax.f32 %v4336, %v4496
    %v4867 = vmax.f32 %v4341, %v4501
    %v4868 = vmax.f32 %v4346, %v4506
    %v4869 = vmax.f32 %v4351, %v4511
    %v4870 = vmax.f32 %v4356, %v4516
    %v4871 = vmax.f32 %v4521, %v4681
    %v4872 = vmax.f32 %v4526, %v4686
    %v4873 = vmax.f32 %v4531, %v4691
    %v4874 = vmax.f32 %v4536, %v4696
    %v4875 = vmax.f32 %v4541, %v4701
    %v4876 = vmax.f32 %v4546, %v4706
    %v4877 = vmax.f32 %v4551, %v4711
    %v4878 = vmax.f32 %v4556, %v4716
    %v4879 = vmax.f32 %v4561, %v4721
    %v4880 = vmax.f32 %v4566, %v4726
    %v4881 = vmax.f32 %v4571, %v4731
    %v4882 = vmax.f32 %v4576, %v4736
    %v4883 = vmax.f32 %v4581, %v4741
    %v4884 = vmax.f32 %v4586, %v4746
    %v4885 = vmax.f32 %v4591, %v4751
    %v4886 = vmax.f32 %v4596, %v4756
    %v4887 = vmax.f32 %v4601, %v4761
    %v4888 = vmax.f32 %v4606, %v4766
    %v4889 = vmax.f32 %v4611, %v4771
    %v4890 = vmax.f32 %v4616, %v4776
    %v4891 = vmax.f32 %v4621, %v4781
    %v4892 = vmax.f32 %v4626, %v4786
    %v4893 = vmax.f32 %v4631, %v4791
    %v4894 = vmax.f32 %v4636, %v4796
    %v4895 = vmax.f32 %v4641, %v4801
    %v4896 = vmax.f32 %v4646, %v4806
    %v4897 = vmax.f32 %v4651, %v4811
    %v4898 = vmax.f32 %v4656, %v4816
    %v4899 = vmax.f32 %v4661, %v4821
    %v4900 = vmax.f32 %v4666, %v4826
    %v4901 = vmax.f32 %v4671, %v4831
    %v4902 = vmax.f32 %v4676, %v4836
    %v4903 = vmax.f32 %v4839, %v4871
    %v4904 = vmax.f32 %v4840, %v4872
    %v4905 = vmax.f32 %v4841, %v4873
    %v4906 = vmax.f32 %v4842, %v4874
    %v4907 = vmax.f32 %v4843, %v4875
    %v4908 = vmax.f32 %v4844, %v4876
    %v4909 = vmax.f32 %v4845, %v4877
    %v4910 = vmax.f32 %v4846, %v4878
    %v4911 = vmax.f32 %v4847, %v4879
    %v4912 = vmax.f32 %v4848, %v4880
    %v4913 = vmax.f32 %v4849, %v4881
    %v4914 = vmax.f32 %v4850, %v4882
    %v4915 = vmax.f32 %v4851, %v4883
    %v4916 = vmax.f32 %v4852, %v4884
    %v4917 = vmax.f32 %v4853, %v4885
    %v4918 = vmax.f32 %v4854, %v4886
    %v4919 = vmax.f32 %v4855, %v4887
    %v4920 = vmax.f32 %v4856, %v4888
    %v4921 = vmax.f32 %v4857, %v4889
    %v4922 = vmax.f32 %v4858, %v4890
    %v4923 = vmax.f32 %v4859, %v4891
    %v4924 = vmax.f32 %v4860, %v4892
    %v4925 = vmax.f32 %v4861, %v4893
    %v4926 = vmax.f32 %v4862, %v4894
    %v4927 = vmax.f32 %v4863, %v4895
    %v4928 = vmax.f32 %v4864, %v4896
    %v4929 = vmax.f32 %v4865, %v4897
    %v4930 = vmax.f32 %v4866, %v4898
    %v4931 = vmax.f32 %v4867, %v4899
    %v4932 = vmax.f32 %v4868, %v4900
    %v4933 = vmax.f32 %v4869, %v4901
    %v4934 = vmax.f32 %v4870, %v4902
    %v4935 = vld [vmem:[%s4] sm:$0xff]
    %v4936 = vld [vmem:[%s4 + $0x8] sm:$0xff]
    %v4937 = vld [vmem:[%s4 + $0x10] sm:$0xff]
    %v4938 = vld [vmem:[%s4 + $0x18] sm:$0xff]
    %v4939 = vld [vmem:[%s4 + $0x20] sm:$0xff]
    %v4940 = vld [vmem:[%s4 + $0x28] sm:$0xff]
    %v4941 = vld [vmem:[%s4 + $0x30] sm:$0xff]
    %v4942 = vld [vmem:[%s4 + $0x38] sm:$0xff]
    %v4943 = vld [vmem:[%s4 + $0x40] sm:$0xff]
    %v4944 = vld [vmem:[%s4 + $0x48] sm:$0xff]
    %v4945 = vld [vmem:[%s4 + $0x50] sm:$0xff]
    %v4946 = vld [vmem:[%s4 + $0x58] sm:$0xff]
    %v4947 = vld [vmem:[%s4 + $0x60] sm:$0xff]
    %v4948 = vld [vmem:[%s4 + $0x68] sm:$0xff]
    %v4949 = vld [vmem:[%s4 + $0x70] sm:$0xff]
    %v4950 = vld [vmem:[%s4 + $0x78] sm:$0xff]
    %v4951 = vld [vmem:[%s4 + $0x80] sm:$0xff]
    %v4952 = vld [vmem:[%s4 + $0x88] sm:$0xff]
    %v4953 = vld [vmem:[%s4 + $0x90] sm:$0xff]
    %v4954 = vld [vmem:[%s4 + $0x98] sm:$0xff]
    %v4955 = vld [vmem:[%s4 + $0xa0] sm:$0xff]
    %v4956 = vld [vmem:[%s4 + $0xa8] sm:$0xff]
    %v4957 = vld [vmem:[%s4 + $0xb0] sm:$0xff]
    %v4958 = vld [vmem:[%s4 + $0xb8] sm:$0xff]
    %v4959 = vld [vmem:[%s4 + $0xc0] sm:$0xff]
    %v4960 = vld [vmem:[%s4 + $0xc8] sm:$0xff]
    %v4961 = vld [vmem:[%s4 + $0xd0] sm:$0xff]
    %v4962 = vld [vmem:[%s4 + $0xd8] sm:$0xff]
    %v4963 = vld [vmem:[%s4 + $0xe0] sm:$0xff]
    %v4964 = vld [vmem:[%s4 + $0xe8] sm:$0xff]
    %v4965 = vld [vmem:[%s4 + $0xf0] sm:$0xff]
    %v4966 = vld [vmem:[%s4 + $0xf8] sm:$0xff]
    %4968 = vset.pattern.permute.xlu0 0
    %4969 = vperm.xlu0 %4968, %v4935
    %v4970 = vpop.permute.xlu0 %4969
    %4973 = vset.pattern.permute.xlu0 0
    %4974 = vperm.xlu0 %4973, %v4936
    %v4975 = vpop.permute.xlu0 %4974
    %4978 = vset.pattern.permute.xlu0 0
    %4979 = vperm.xlu0 %4978, %v4937
    %v4980 = vpop.permute.xlu0 %4979
    %4983 = vset.pattern.permute.xlu0 0
    %4984 = vperm.xlu0 %4983, %v4938
    %v4985 = vpop.permute.xlu0 %4984
    %4988 = vset.pattern.permute.xlu0 0
    %4989 = vperm.xlu0 %4988, %v4939
    %v4990 = vpop.permute.xlu0 %4989
    %4993 = vset.pattern.permute.xlu0 0
    %4994 = vperm.xlu0 %4993, %v4940
    %v4995 = vpop.permute.xlu0 %4994
    %4998 = vset.pattern.permute.xlu0 0
    %4999 = vperm.xlu0 %4998, %v4941
    %v5000 = vpop.permute.xlu0 %4999
    %5003 = vset.pattern.permute.xlu0 0
    %5004 = vperm.xlu0 %5003, %v4942
    %v5005 = vpop.permute.xlu0 %5004
    %5008 = vset.pattern.permute.xlu0 0
    %5009 = vperm.xlu0 %5008, %v4943
    %v5010 = vpop.permute.xlu0 %5009
    %5013 = vset.pattern.permute.xlu0 0
    %5014 = vperm.xlu0 %5013, %v4944
    %v5015 = vpop.permute.xlu0 %5014
    %5018 = vset.pattern.permute.xlu0 0
    %5019 = vperm.xlu0 %5018, %v4945
    %v5020 = vpop.permute.xlu0 %5019
    %5023 = vset.pattern.permute.xlu0 0
    %5024 = vperm.xlu0 %5023, %v4946
    %v5025 = vpop.permute.xlu0 %5024
    %5028 = vset.pattern.permute.xlu0 0
    %5029 = vperm.xlu0 %5028, %v4947
    %v5030 = vpop.permute.xlu0 %5029
    %5033 = vset.pattern.permute.xlu0 0
    %5034 = vperm.xlu0 %5033, %v4948
    %v5035 = vpop.permute.xlu0 %5034
    %5038 = vset.pattern.permute.xlu0 0
    %5039 = vperm.xlu0 %5038, %v4949
    %v5040 = vpop.permute.xlu0 %5039
    %5043 = vset.pattern.permute.xlu0 0
    %5044 = vperm.xlu0 %5043, %v4950
    %v5045 = vpop.permute.xlu0 %5044
    %5048 = vset.pattern.permute.xlu0 0
    %5049 = vperm.xlu0 %5048, %v4951
    %v5050 = vpop.permute.xlu0 %5049
    %5053 = vset.pattern.permute.xlu0 0
    %5054 = vperm.xlu0 %5053, %v4952
    %v5055 = vpop.permute.xlu0 %5054
    %5058 = vset.pattern.permute.xlu0 0
    %5059 = vperm.xlu0 %5058, %v4953
    %v5060 = vpop.permute.xlu0 %5059
    %5063 = vset.pattern.permute.xlu0 0
    %5064 = vperm.xlu0 %5063, %v4954
    %v5065 = vpop.permute.xlu0 %5064
    %5068 = vset.pattern.permute.xlu0 0
    %5069 = vperm.xlu0 %5068, %v4955
    %v5070 = vpop.permute.xlu0 %5069
    %5073 = vset.pattern.permute.xlu0 0
    %5074 = vperm.xlu0 %5073, %v4956
    %v5075 = vpop.permute.xlu0 %5074
    %5078 = vset.pattern.permute.xlu0 0
    %5079 = vperm.xlu0 %5078, %v4957
    %v5080 = vpop.permute.xlu0 %5079
    %5083 = vset.pattern.permute.xlu0 0
    %5084 = vperm.xlu0 %5083, %v4958
    %v5085 = vpop.permute.xlu0 %5084
    %5088 = vset.pattern.permute.xlu0 0
    %5089 = vperm.xlu0 %5088, %v4959
    %v5090 = vpop.permute.xlu0 %5089
    %5093 = vset.pattern.permute.xlu0 0
    %5094 = vperm.xlu0 %5093, %v4960
    %v5095 = vpop.permute.xlu0 %5094
    %5098 = vset.pattern.permute.xlu0 0
    %5099 = vperm.xlu0 %5098, %v4961
    %v5100 = vpop.permute.xlu0 %5099
    %5103 = vset.pattern.permute.xlu0 0
    %5104 = vperm.xlu0 %5103, %v4962
    %v5105 = vpop.permute.xlu0 %5104
    %5108 = vset.pattern.permute.xlu0 0
    %5109 = vperm.xlu0 %5108, %v4963
    %v5110 = vpop.permute.xlu0 %5109
    %5113 = vset.pattern.permute.xlu0 0
    %5114 = vperm.xlu0 %5113, %v4964
    %v5115 = vpop.permute.xlu0 %5114
    %5118 = vset.pattern.permute.xlu0 0
    %5119 = vperm.xlu0 %5118, %v4965
    %v5120 = vpop.permute.xlu0 %5119
    %5123 = vset.pattern.permute.xlu0 0
    %5124 = vperm.xlu0 %5123, %v4966
    %v5125 = vpop.permute.xlu0 %5124
    %v5127 = vadd.f32 %v4903, %v4970
    %v5128 = vadd.f32 %v4904, %v4975
    %v5129 = vadd.f32 %v4905, %v4980
    %v5130 = vadd.f32 %v4906, %v4985
    %v5131 = vadd.f32 %v4907, %v4990
    %v5132 = vadd.f32 %v4908, %v4995
    %v5133 = vadd.f32 %v4909, %v5000
    %v5134 = vadd.f32 %v4910, %v5005
    %v5135 = vadd.f32 %v4911, %v5010
    %v5136 = vadd.f32 %v4912, %v5015
    %v5137 = vadd.f32 %v4913, %v5020
    %v5138 = vadd.f32 %v4914, %v5025
    %v5139 = vadd.f32 %v4915, %v5030
    %v5140 = vadd.f32 %v4916, %v5035
    %v5141 = vadd.f32 %v4917, %v5040
    %v5142 = vadd.f32 %v4918, %v5045
    %v5143 = vadd.f32 %v4919, %v5050
    %v5144 = vadd.f32 %v4920, %v5055
    %v5145 = vadd.f32 %v4921, %v5060
    %v5146 = vadd.f32 %v4922, %v5065
    %v5147 = vadd.f32 %v4923, %v5070
    %v5148 = vadd.f32 %v4924, %v5075
    %v5149 = vadd.f32 %v4925, %v5080
    %v5150 = vadd.f32 %v4926, %v5085
    %v5151 = vadd.f32 %v4927, %v5090
    %v5152 = vadd.f32 %v4928, %v5095
    %v5153 = vadd.f32 %v4929, %v5100
    %v5154 = vadd.f32 %v4930, %v5105
    %v5155 = vadd.f32 %v4931, %v5110
    %v5156 = vadd.f32 %v4932, %v5115
    %v5157 = vadd.f32 %v4933, %v5120
    %v5158 = vadd.f32 %v4934, %v5125
    %v5159 = vmax.f32 %v5127, 0.0
    %v5160 = vmax.f32 %v5128, 0.0
    %v5161 = vmax.f32 %v5129, 0.0
    %v5162 = vmax.f32 %v5130, 0.0
    %v5163 = vmax.f32 %v5131, 0.0
    %v5164 = vmax.f32 %v5132, 0.0
    %v5165 = vmax.f32 %v5133, 0.0
    %v5166 = vmax.f32 %v5134, 0.0
    %v5167 = vmax.f32 %v5135, 0.0
    %v5168 = vmax.f32 %v5136, 0.0
    %v5169 = vmax.f32 %v5137, 0.0
    %v5170 = vmax.f32 %v5138, 0.0
    %v5171 = vmax.f32 %v5139, 0.0
    %v5172 = vmax.f32 %v5140, 0.0
    %v5173 = vmax.f32 %v5141, 0.0
    %v5174 = vmax.f32 %v5142, 0.0
    %v5175 = vmax.f32 %v5143, 0.0
    %v5176 = vmax.f32 %v5144, 0.0
    %v5177 = vmax.f32 %v5145, 0.0
    %v5178 = vmax.f32 %v5146, 0.0
    %v5179 = vmax.f32 %v5147, 0.0
    %v5180 = vmax.f32 %v5148, 0.0
    %v5181 = vmax.f32 %v5149, 0.0
    %v5182 = vmax.f32 %v5150, 0.0
    %v5183 = vmax.f32 %v5151, 0.0
    %v5184 = vmax.f32 %v5152, 0.0
    %v5185 = vmax.f32 %v5153, 0.0
    %v5186 = vmax.f32 %v5154, 0.0
    %v5187 = vmax.f32 %v5155, 0.0
    %v5188 = vmax.f32 %v5156, 0.0
    %v5189 = vmax.f32 %v5157, 0.0
    %v5190 = vmax.f32 %v5158, 0.0
    %v5191 = vld [vmem:[#allocation12] sm:$0xff]
    %v5192 = vld [vmem:[#allocation12 + $0x8] sm:$0xff]
    %v5193 = vld [vmem:[#allocation12 + $0x10] sm:$0xff]
    %v5194 = vld [vmem:[#allocation12 + $0x18] sm:$0xff]
    %v5195 = vld [vmem:[%s6] sm:$0xff]
    %v5196 = vld [vmem:[%s6 + $0x8] sm:$0xff]
    %5198 = vset.pattern.permute.xlu0 0
    %5199 = vperm.xlu0 %5198, %v5195
    %v5200 = vpop.permute.xlu0 %5199
    %5203 = vset.pattern.permute.xlu0 0
    %5204 = vperm.xlu0 %5203, %v5196
    %v5205 = vpop.permute.xlu0 %5204
    %5207 = vmatprep.subr.mxu0 0.0
    %5208 = vmatpush1.msra.mxu0 %v5174
    %5209 = vmatprep.subr.mxu0 0.0
    %5210 = vmatpush1.msra.mxu0 %v5173
    %5211 = vmatprep.subr.mxu0 0.0
    %5212 = vmatpush1.msra.mxu0 %v5172
    %5213 = vmatprep.subr.mxu0 0.0
    %5214 = vmatpush1.msra.mxu0 %v5171
    %5215 = vmatprep.subr.mxu0 0.0
    %5216 = vmatpush1.msra.mxu0 %v5170
    %5217 = vmatprep.subr.mxu0 0.0
    %5218 = vmatpush1.msra.mxu0 %v5169
    %5219 = vmatprep.subr.mxu0 0.0
    %5220 = vmatpush1.msra.mxu0 %v5168
    %5221 = vmatprep.subr.mxu0 0.0
    %5222 = vmatpush1.msra.mxu0 %v5167
    %5223 = vmatprep.subr.mxu0 0.0
    %5224 = vmatpush1.msra.mxu0 %v5166
    %5225 = vmatprep.subr.mxu0 0.0
    %5226 = vmatpush1.msra.mxu0 %v5165
    %5227 = vmatprep.subr.mxu0 0.0
    %5228 = vmatpush1.msra.mxu0 %v5164
    %5229 = vmatprep.subr.mxu0 0.0
    %5230 = vmatpush1.msra.mxu0 %v5163
    %5231 = vmatprep.subr.mxu0 0.0
    %5232 = vmatpush1.msra.mxu0 %v5162
    %5233 = vmatprep.subr.mxu0 0.0
    %5234 = vmatpush1.msra.mxu0 %v5161
    %5235 = vmatprep.subr.mxu0 0.0
    %5236 = vmatpush1.msra.mxu0 %v5160
    %5237 = vmatprep.subr.mxu0 0.0
    %5238 = vmatpush1.msra.mxu0 %v5159
    %5239 = vmatprep.subr.mxu0 0.0
    %5240 = vmatpush2.msra.mxu0 %v5190
    %5241 = vmatprep.subr.mxu0 0.0
    %5242 = vmatpush2.msra.mxu0 %v5189
    %5243 = vmatprep.subr.mxu0 0.0
    %5244 = vmatpush2.msra.mxu0 %v5188
    %5245 = vmatprep.subr.mxu0 0.0
    %5246 = vmatpush2.msra.mxu0 %v5187
    %5247 = vmatprep.subr.mxu0 0.0
    %5248 = vmatpush2.msra.mxu0 %v5186
    %5249 = vmatprep.subr.mxu0 0.0
    %5250 = vmatpush2.msra.mxu0 %v5185
    %5251 = vmatprep.subr.mxu0 0.0
    %5252 = vmatpush2.msra.mxu0 %v5184
    %5253 = vmatprep.subr.mxu0 0.0
    %5254 = vmatpush2.msra.mxu0 %v5183
    %5255 = vmatprep.subr.mxu0 0.0
    %5256 = vmatpush2.msra.mxu0 %v5182
    %5257 = vmatprep.subr.mxu0 0.0
    %5258 = vmatpush2.msra.mxu0 %v5181
    %5259 = vmatprep.subr.mxu0 0.0
    %5260 = vmatpush2.msra.mxu0 %v5180
    %5261 = vmatprep.subr.mxu0 0.0
    %5262 = vmatpush2.msra.mxu0 %v5179
    %5263 = vmatprep.subr.mxu0 0.0
    %5264 = vmatpush2.msra.mxu0 %v5178
    %5265 = vmatprep.subr.mxu0 0.0
    %5266 = vmatpush2.msra.mxu0 %v5177
    %5267 = vmatprep.subr.mxu0 0.0
    %5268 = vmatpush2.msra.mxu0 %v5176
    %5269 = vmatprep.subr.mxu0 0.0
    %5270 = vmatpush2.msra.mxu0 %v5175
    %5271 = vmatprep.mubr.f32.mxu0 %v5192
    %5272 = vmatmul.mubr.f32.gmra.mxu0 %v5191
    %v5273 = vpop.f32.mrf.mxu0
    %v5274 = vadd.f32 %v5200, %v5273
    %v5275 = vpop.f32.mrf.mxu0
    %5276 = vmatprep.mubr.f32.mxu0 %v5194
    %5277 = vmatmul.mubr.f32.gmra.mxu0 %v5193
    %v5278 = vpop.f32.mrf.mxu0
    %v5279 = vadd.f32 %v5205, %v5278
    %v5280 = vpop.f32.mrf.mxu0
    %5281 = vdwg.mxu0
    %v5282 = vmax.f32 %v5274, 0.0
    %v5283 = vmax.f32 %v5279, 0.0
    %v5284 = vld [vmem:[#allocation13] sm:$0x3]
    %v5285 = vld [vmem:[%s8] sm:$0x3]
    %5287 = vset.pattern.permute.xlu0 0
    %5288 = vperm.xlu0 %5287, %v5285
    %v5289 = vpop.permute.xlu0 %5288
    %v5292 = vsel %vm1305, %v5284, 0
    %5294 = vmatprep.subr.mxu0 0.0
    %5295 = vmatpush1.msra.mxu0 0.0
    %5296 = vmatprep.subr.mxu0 0.0
    %5297 = vmatpush1.msra.mxu0 0.0
    %5298 = vmatprep.subr.mxu0 0.0
    %5299 = vmatpush1.msra.mxu0 0.0
    %5300 = vmatprep.subr.mxu0 0.0
    %5301 = vmatpush1.msra.mxu0 0.0
    %5302 = vmatprep.subr.mxu0 0.0
    %5303 = vmatpush1.msra.mxu0 0.0
    %5304 = vmatprep.subr.mxu0 0.0
    %5305 = vmatpush1.msra.mxu0 0.0
    %5306 = vmatprep.subr.mxu0 0.0
    %5307 = vmatpush1.msra.mxu0 0.0
    %5308 = vmatprep.subr.mxu0 0.0
    %5309 = vmatpush1.msra.mxu0 0.0
    %5310 = vmatprep.subr.mxu0 0.0
    %5311 = vmatpush1.msra.mxu0 0.0
    %5312 = vmatprep.subr.mxu0 0.0
    %5313 = vmatpush1.msra.mxu0 0.0
    %5314 = vmatprep.subr.mxu0 0.0
    %5315 = vmatpush1.msra.mxu0 0.0
    %5316 = vmatprep.subr.mxu0 0.0
    %5317 = vmatpush1.msra.mxu0 0.0
    %5318 = vmatprep.subr.mxu0 0.0
    %5319 = vmatpush1.msra.mxu0 0.0
    %5320 = vmatprep.subr.mxu0 0.0
    %5321 = vmatpush1.msra.mxu0 0.0
    %5322 = vmatprep.subr.mxu0 0.0
    %5323 = vmatpush1.msra.mxu0 %v5283
    %5324 = vmatprep.subr.mxu0 0.0
    %5325 = vmatpush1.msra.mxu0 %v5282
    %5326 = vmatprep.subr.mxu0 0.0
    %5327 = vmatpush2.msra.mxu0 0.0
    %5328 = vmatprep.subr.mxu0 0.0
    %5329 = vmatpush2.msra.mxu0 0.0
    %5330 = vmatprep.subr.mxu0 0.0
    %5331 = vmatpush2.msra.mxu0 0.0
    %5332 = vmatprep.subr.mxu0 0.0
    %5333 = vmatpush2.msra.mxu0 0.0
    %5334 = vmatprep.subr.mxu0 0.0
    %5335 = vmatpush2.msra.mxu0 0.0
    %5336 = vmatprep.subr.mxu0 0.0
    %5337 = vmatpush2.msra.mxu0 0.0
    %5338 = vmatprep.subr.mxu0 0.0
    %5339 = vmatpush2.msra.mxu0 0.0
    %5340 = vmatprep.subr.mxu0 0.0
    %5341 = vmatpush2.msra.mxu0 0.0
    %5342 = vmatprep.subr.mxu0 0.0
    %5343 = vmatpush2.msra.mxu0 0.0
    %5344 = vmatprep.subr.mxu0 0.0
    %5345 = vmatpush2.msra.mxu0 0.0
    %5346 = vmatprep.subr.mxu0 0.0
    %5347 = vmatpush2.msra.mxu0 0.0
    %5348 = vmatprep.subr.mxu0 0.0
    %5349 = vmatpush2.msra.mxu0 0.0
    %5350 = vmatprep.subr.mxu0 0.0
    %5351 = vmatpush2.msra.mxu0 0.0
    %5352 = vmatprep.subr.mxu0 0.0
    %5353 = vmatpush2.msra.mxu0 0.0
    %5354 = vmatprep.subr.mxu0 0.0
    %5355 = vmatpush2.msra.mxu0 0.0
    %5356 = vmatprep.subr.mxu0 0.0
    %5357 = vmatpush2.msra.mxu0 0.0
    %5358 = vmatprep.mubr.f32.mxu0 0.0
    %5359 = vmatmul.mubr.f32.gmra.mxu0 %v5292
    %v5360 = vpop.f32.mrf.mxu0
    %v5361 = vadd.f32 %v5289, %v5360
    %v5362 = vpop.f32.mrf.mxu0
    %5363 = vdwg.mxu0
    %v5364 = vmax.f32 %v5361, 0.0
    %v5365 = vld [vmem:[%s9] sm:$0x3]
    %5367 = vset.pattern.permute.xlu0 0
    %5368 = vperm.xlu0 %5367, %v5365
    %v5369 = vpop.permute.xlu0 %5368
    %v5371 = vadd.f32 %v5364, %v5369
    %v5372 = vtanh.pop %v5371
    %v5374 = vrot.slane %v5372, 1
    %v5376 = vmul.f32 %v5372, %v5374
    %v5377 = vld [vmem:[#allocation2] sm:$0x1]
    %5379 = vset.pattern.permute.xlu0 0
    %5380 = vperm.xlu0 %5379, %v5377
    %v5381 = vpop.permute.xlu0 %5380
    %v5383 = vlaneseq
    %v5384 = vshrl.u32 %v5383, 7
    %v5385 = vsub.s32 0, %v5384
    %v5386 = vrot.slane %v5381, %v5385
    %v5387 = vmul.f32 %v5376, %v5386
    %v5388 = vld [vmem:[#allocation3] sm:$0x1]
    %5390 = vset.pattern.permute.xlu0 0
    %5391 = vperm.xlu0 %5390, %v5388
    %v5392 = vpop.permute.xlu0 %5391
    %v5394 = vlaneseq
    %v5395 = vshrl.u32 %v5394, 7
    %v5396 = vsub.s32 0, %v5395
    %v5397 = vrot.slane %v5392, %v5396
    %v5398 = vadd.f32 %v5387, %v5397
    %v5399 = vmul.f32 %v5398, 0.5
    %v5400 = vtanh.pop %v5399
    %v5401 = vadd.f32 %v5400, 1.0
    %v5402 = vmul.f32 %v5401, 0.5
    %vm5403 = vcmask 57344
    %5404 = vst.msk [vmem:[#allocation15] sm:$0x1] %vm5403, %v5402
    // Predicated region
    $region74: #{tpu_custom_call.1} parent=1 // pred_check
      _
    $region75: #{tpu_custom_call.1} parent=1 // pred_check_branch
      %5406 = sbr.rel (0) target = $region77
    $region76: #{tpu_custom_call.1} parent=1 // pred_region
      %s5408 = ssub.s32 16, 16
      %5409 = vsyncadd [#allocation6], %s5408
      %s5411 = sshll.u32 [#allocation15], 4
      %s5412 = int_to_ptr.vmem [resolvable:$true] %s5411
      %5414 = dma.vmem_to_hbm [thread:$0]  %s5412, 16, %s12, [#allocation6]
    $region77: #{tpu_custom_call.1} parent=1 // pred_fallthru
      _
    // Predicated region
    $region78: #{tpu_custom_call.1} parent=1 // pred_check
      _
    $region79: #{tpu_custom_call.1} parent=1 // pred_check_branch
      %5416 = sbr.rel (0) target = $region81
    $region80: #{tpu_custom_call.1} parent=1 // pred_region
      %5417 = dma.done [#allocation6], 16
    $region81: #{tpu_custom_call.1} parent=1 // pred_fallthru
      _
    %5418 = vsyncpa [#allocation5], 1
    %5419 = vsyncpa [#allocation8], 1
    %5420 = vsyncpa [#allocation11], 1
    %5421 = vsyncpa [#allocation14], 1
    %5422 = vsyncpa [#allocation6], 1

</llo_original>
